<compile_context>
chip_gen: v6e
topology: v6e:2x2x1
jax: 0.10.0
libtpu: 0.0.40
codegen_flags: <defaults>
</compile_context>

<pallas_src>
from functools import partial

import jax
import jax.numpy as jnp
from jax.experimental import pallas as pl
from jax.experimental.pallas import tpu as pltpu


def ffn_kernel(x_ref, w1_ref, b1_ref, w2_ref, b2_ref, o_ref):
    # x_ref: (tm, D) f32    w1_ref: (D, H) bf16   b1_ref: (1, H) f32
    # w2_ref: (H, D) bf16   b2_ref: (1, D) f32    o_ref: (tm, D) f32
    xb = x_ref[...].astype(jnp.bfloat16)           # in-kernel cast: saves an HBM pass
    h = jnp.dot(xb, w1_ref[...], preferred_element_type=jnp.float32)
    h = jnp.maximum(h + b1_ref[...], 0.0)          # bias + ReLU in f32 (VPU)
    h = h.astype(jnp.bfloat16)                     # bf16 feed for second MXU pass
    o = jnp.dot(h, w2_ref[...], preferred_element_type=jnp.float32) + b2_ref[...]
    o_ref[...] = o.astype(o_ref.dtype)             # Dropout == identity (eval)


@partial(jax.jit, static_argnames=("tm",))
def feed_forward(x, w1, b1, w2, b2, *, tm=256):
    """x: (B, T, D). w1: (D, H), w2: (H, D) (transposed vs PyTorch). Returns (B, T, D)."""
    B, T, D = x.shape
    H = w1.shape[1]
    M = B * T

    # MXU-aligned row tile; don't over-pad tiny inputs.
    tm = min(tm, 128 * pl.cdiv(M, 128))
    grid_m = pl.cdiv(M, tm)
    m_pad = grid_m * tm

    x2 = x.reshape(M, D)
    if m_pad != M:
        x2 = jnp.pad(x2, ((0, m_pad - M), (0, 0)))

    # Resident operands: bf16 weights (halved VMEM / HBM bytes), f32 biases.
    w1b = w1.astype(jnp.bfloat16)
    w2b = w2.astype(jnp.bfloat16)
    b1_2 = b1.reshape(1, H).astype(jnp.float32)
    b2_2 = b2.reshape(1, D).astype(jnp.float32)

    flops = 4 * m_pad * D * H                      # two (m x D x H) matmuls
    bytes_accessed = (m_pad * D * 4                # f32 x (streamed, read in-kernel)
                      + D * H * 2 + H * D * 2      # bf16 W1, W2
                      + H * 4 + D * 4              # f32 biases
                      + m_pad * D * 4)             # f32 out

    out = pl.pallas_call(
        ffn_kernel,
        out_shape=jax.ShapeDtypeStruct((m_pad, D), x.dtype),
        grid_spec=pltpu.PrefetchScalarGridSpec(
            num_scalar_prefetch=0,
            grid=(grid_m,),
            in_specs=[
                pl.BlockSpec((tm, D), lambda i: (i, 0)),   # x row tile (streamed, f32)
                pl.BlockSpec((D, H), lambda i: (0, 0)),    # W1 (resident, bf16)
                pl.BlockSpec((1, H), lambda i: (0, 0)),    # b1
                pl.BlockSpec((H, D), lambda i: (0, 0)),    # W2 (resident, bf16)
                pl.BlockSpec((1, D), lambda i: (0, 0)),    # b2
            ],
            out_specs=pl.BlockSpec((tm, D), lambda i: (i, 0)),
        ),
        compiler_params=pltpu.CompilerParams(
            dimension_semantics=("parallel",)),
        cost_estimate=pl.CostEstimate(
            flops=flops, transcendentals=0, bytes_accessed=bytes_accessed),
    )(x2, w1b, b1_2, w2b, b2_2)

    if m_pad != M:
        out = out[:M]
    return out.reshape(B, T, D)


if __name__ == "__main__":
    # Shapes consistent with the module: n_embd = 384, hidden = 4 * 384 = 1536.
    B, T, D = 2, 8, 384
    H = 4 * D

    key = jax.random.PRNGKey(0)
    kx, k1, k2, k3, k4 = jax.random.split(key, 5)

    x = jax.random.normal(kx, (B, T, D), dtype=jnp.float32)
    # Deterministic parameter init (synthetic; PyTorch-like scale 1/sqrt(fan_in))
    w1 = jax.random.normal(k1, (D, H), dtype=jnp.float32) * (1.0 / D) ** 0.5
    b1 = jax.random.normal(k2, (H,), dtype=jnp.float32) * 0.01
    w2 = jax.random.normal(k3, (H, D), dtype=jnp.float32) * (1.0 / H) ** 0.5
    b2 = jax.random.normal(k4, (D,), dtype=jnp.float32) * 0.01

    out = feed_forward(x, w1, b1, w2, b2)
    out = jax.block_until_ready(out)

    # Reference with the same bf16-operand / f32-accumulate numerics as the kernel.
    xb = x.reshape(-1, D).astype(jnp.bfloat16)
    h = jnp.dot(xb, w1.astype(jnp.bfloat16), preferred_element_type=jnp.float32) + b1
    h = jnp.maximum(h, 0.0).astype(jnp.bfloat16)
    ref = jnp.dot(h, w2.astype(jnp.bfloat16), preferred_element_type=jnp.float32) + b2
    ref = ref.reshape(B, T, D)
    assert jnp.allclose(out, ref, atol=1e-3, rtol=1e-3), "mismatch vs bf16/f32 reference"

    # Loose sanity check vs the pure-f32 reference (bf16 operands => looser tolerance).
    ref32 = (jnp.maximum(x.reshape(-1, D) @ w1 + b1, 0.0) @ w2 + b2).reshape(B, T, D)
    assert jnp.allclose(out, ref32, atol=1e-1, rtol=1e-1), "mismatch vs f32 reference"

    print("KERNEL_OK")
</pallas_src>

<mosaic_0001>
module attributes {stable_mosaic.version = 11 : i64} {
  func.func @ffn_kernel(%arg0: i32, %arg1: memref<128x384xf32, #tpu.memory_space<vmem>>, %arg2: memref<384x1536xbf16, #tpu.memory_space<vmem>>, %arg3: memref<1x1536xf32, #tpu.memory_space<vmem>>, %arg4: memref<1536x384xbf16, #tpu.memory_space<vmem>>, %arg5: memref<1x384xf32, #tpu.memory_space<vmem>>, %arg6: memref<128x384xf32, #tpu.memory_space<vmem>>) attributes {dimension_semantics = [#tpu.dimension_semantics<parallel>], iteration_bounds = array<i64: 1>, scalar_prefetch = 0 : i64, scratch_operands = 0 : i64, tpu.core_type = #tpu.core_type<tc>, window_params = [{transform_indices = @transform_0, window_bounds = array<i64: 128, 384>}, {pipeline_mode = #tpu.pipeline_mode<synchronous>, transform_indices = @transform_1, window_bounds = array<i64: 384, 1536>}, {pipeline_mode = #tpu.pipeline_mode<synchronous>, transform_indices = @transform_2, window_bounds = array<i64: 1, 1536>}, {pipeline_mode = #tpu.pipeline_mode<synchronous>, transform_indices = @transform_3, window_bounds = array<i64: 1536, 384>}, {pipeline_mode = #tpu.pipeline_mode<synchronous>, transform_indices = @transform_4, window_bounds = array<i64: 1, 384>}, {transform_indices = @transform_5, window_bounds = array<i64: 128, 384>}]} {
    %c0 = arith.constant 0 : index
    %c0_0 = arith.constant 0 : index
    %0 = vector.load %arg1[%c0, %c0_0] : memref<128x384xf32, #tpu.memory_space<vmem>>, vector<128x384xf32>
    %1 = arith.truncf %0 : vector<128x384xf32> to vector<128x384xbf16>
    %c0_1 = arith.constant 0 : index
    %c0_2 = arith.constant 0 : index
    %2 = vector.load %arg2[%c0_1, %c0_2] : memref<384x1536xbf16, #tpu.memory_space<vmem>>, vector<384x1536xbf16>
    %cst = arith.constant dense<0.000000e+00> : vector<128x1536xf32>
    %3 = tpu.matmul %1, %2, %cst {dimension_numbers = #tpu.dot_dimension_numbers<[1], [0], [0], [1], [0, 0, 1, 1], [], []>} : vector<128x384xbf16>, vector<384x1536xbf16>, vector<128x1536xf32> -> vector<128x1536xf32>
    %c0_3 = arith.constant 0 : index
    %c0_4 = arith.constant 0 : index
    %4 = vector.load %arg3[%c0_3, %c0_4] : memref<1x1536xf32, #tpu.memory_space<vmem>>, vector<1x1536xf32>
    %5 = vector.broadcast %4 : vector<1x1536xf32> to vector<128x1536xf32>
    %6 = arith.addf %3, %5 : vector<128x1536xf32>
    %cst_5 = arith.constant 0.000000e+00 : f32
    %7 = vector.broadcast %cst_5 : f32 to vector<128x1536xf32>
    %8 = arith.maximumf %6, %7 : vector<128x1536xf32>
    %9 = arith.truncf %8 : vector<128x1536xf32> to vector<128x1536xbf16>
    %c0_6 = arith.constant 0 : index
    %c0_7 = arith.constant 0 : index
    %10 = vector.load %arg4[%c0_6, %c0_7] : memref<1536x384xbf16, #tpu.memory_space<vmem>>, vector<1536x384xbf16>
    %cst_8 = arith.constant dense<0.000000e+00> : vector<128x384xf32>
    %11 = tpu.matmul %9, %10, %cst_8 {dimension_numbers = #tpu.dot_dimension_numbers<[1], [0], [0], [1], [0, 0, 1, 1], [], []>} : vector<128x1536xbf16>, vector<1536x384xbf16>, vector<128x384xf32> -> vector<128x384xf32>
    %c0_9 = arith.constant 0 : index
    %c0_10 = arith.constant 0 : index
    %12 = vector.load %arg5[%c0_9, %c0_10] : memref<1x384xf32, #tpu.memory_space<vmem>>, vector<1x384xf32>
    %13 = vector.broadcast %12 : vector<1x384xf32> to vector<128x384xf32>
    %14 = arith.addf %11, %13 : vector<128x384xf32>
    %c0_11 = arith.constant 0 : index
    %c0_12 = arith.constant 0 : index
    %15 = vector.load %arg6[%c0_11, %c0_12] : memref<128x384xf32, #tpu.memory_space<vmem>>, vector<128x384xf32>
    tpu.vector_store %arg6[%c0_11, %c0_12], %14 {strides = array<i32>} : memref<128x384xf32, #tpu.memory_space<vmem>>, vector<128x384xf32>,
    return
  }
  func.func @transform_0(%arg0: i32) -> (i32, i32) {
    %c0_i32 = arith.constant 0 : i32
    %c0_i32_0 = arith.constant 0 : i32
    return %arg0, %c0_i32 : i32, i32
  }
  func.func @transform_1(%arg0: i32) -> (i32, i32) {
    %c0_i32 = arith.constant 0 : i32
    %c0_i32_0 = arith.constant 0 : i32
    %c0_i32_1 = arith.constant 0 : i32
    return %c0_i32, %c0_i32_0 : i32, i32
  }
  func.func @transform_2(%arg0: i32) -> (i32, i32) {
    %c0_i32 = arith.constant 0 : i32
    %c0_i32_0 = arith.constant 0 : i32
    %c0_i32_1 = arith.constant 0 : i32
    return %c0_i32, %c0_i32_0 : i32, i32
  }
  func.func @transform_3(%arg0: i32) -> (i32, i32) {
    %c0_i32 = arith.constant 0 : i32
    %c0_i32_0 = arith.constant 0 : i32
    %c0_i32_1 = arith.constant 0 : i32
    return %c0_i32, %c0_i32_0 : i32, i32
  }
  func.func @transform_4(%arg0: i32) -> (i32, i32) {
    %c0_i32 = arith.constant 0 : i32
    %c0_i32_0 = arith.constant 0 : i32
    %c0_i32_1 = arith.constant 0 : i32
    return %c0_i32, %c0_i32_0 : i32, i32
  }
  func.func @transform_5(%arg0: i32) -> (i32, i32) {
    %c0_i32 = arith.constant 0 : i32
    %c0_i32_0 = arith.constant 0 : i32
    return %arg0, %c0_i32 : i32, i32
  }
}

</mosaic_0001>

<llo_original>
// kernel: feed_forward.1
$region0: #{feed_forward.1}
  #allocation0 [shape = 'u32[]', space=smem, size = 0x4, offset = 0x4, fixed_abs, tag = 'smem constant byte address 0x4 - core index']
  #allocation1 [shape = 'u32[144,128]{1,0:T(1,128)}', space=vmem, size = 0x12000, scoped, tag = 'internal scratch']
  %s0 = inlined_call_operand.vmem [shape: f32[128,384], index: 0, kind: input, shape index: {}]
  %s1 = inlined_call_operand.vmem [shape: bf16[384,1536], index: 1, kind: input, shape index: {}]
  %s2 = inlined_call_operand.vmem [shape: f32[1,1536], index: 2, kind: input, shape index: {}]
  %s3 = inlined_call_operand.vmem [shape: bf16[1536,384], index: 3, kind: input, shape index: {}]
  %s4 = inlined_call_operand.vmem [shape: f32[1,384], index: 4, kind: input, shape index: {}]
  %s5 = inlined_call_operand.vmem [shape: f32[128,384], index: 5, kind: output, shape index: {}]
  %s6 = sld [smem:[#allocation0]]
  $region30: #{feed_forward.1} parent=0
    _
  %s8 = ssub.s32 1, %s6
  %s9 = scalar_select 0, %s8, %s6
  // Predicated region
  $region2: #{feed_forward.1} parent=0 // pred_check
    _
  $region3: #{feed_forward.1} parent=0 // pred_check_branch
    %11 = sbr.rel (0) target = $region5
  $region4: #{feed_forward.1} parent=0 // pred_region
    _
  $region5: #{feed_forward.1} parent=0 // pred_fallthru
    _
  // Predicated region
  $region6: #{feed_forward.1} parent=0 // pred_check
    _
  $region7: #{feed_forward.1} parent=0 // pred_check_branch
    %13 = sbr.rel (0) target = $region9
  $region8: #{feed_forward.1} parent=0 // pred_region
    _
  $region9: #{feed_forward.1} parent=0 // pred_fallthru
    _
  // Predicated region
  $region10: #{feed_forward.1} parent=0 // pred_check
    _
  $region11: #{feed_forward.1} parent=0 // pred_check_branch
    %15 = sbr.rel (0) target = $region13
  $region12: #{feed_forward.1} parent=0 // pred_region
    _
  $region13: #{feed_forward.1} parent=0 // pred_fallthru
    _
  // Predicated region
  $region14: #{feed_forward.1} parent=0 // pred_check
    _
  $region15: #{feed_forward.1} parent=0 // pred_check_branch
    %17 = sbr.rel (0) target = $region17
  $region16: #{feed_forward.1} parent=0 // pred_region
    _
  $region17: #{feed_forward.1} parent=0 // pred_fallthru
    _
  // Predicated region
  $region18: #{feed_forward.1} parent=0 // pred_check
    _
  $region19: #{feed_forward.1} parent=0 // pred_check_branch
    %19 = sbr.rel (0) target = $region21
  $region20: #{feed_forward.1} parent=0 // pred_region
    _
  $region21: #{feed_forward.1} parent=0 // pred_fallthru
    _
  %v21 = vld [vmem:[%s0] sm:$0xff]
  %v22 = vld [vmem:[%s0 + $0x8] sm:$0xff]
  %v23 = vld [vmem:[%s0 + $0x10] sm:$0xff]
  %v24 = vld [vmem:[%s0 + $0x18] sm:$0xff]
  %v25 = vld [vmem:[%s0 + $0x20] sm:$0xff]
  %v26 = vld [vmem:[%s0 + $0x28] sm:$0xff]
  %v27 = vld [vmem:[%s0 + $0x30] sm:$0xff]
  %v28 = vld [vmem:[%s0 + $0x38] sm:$0xff]
  %v29 = vld [vmem:[%s0 + $0x40] sm:$0xff]
  %v30 = vld [vmem:[%s0 + $0x48] sm:$0xff]
  %v31 = vld [vmem:[%s0 + $0x50] sm:$0xff]
  %v32 = vld [vmem:[%s0 + $0x58] sm:$0xff]
  %v33 = vld [vmem:[%s0 + $0x60] sm:$0xff]
  %v34 = vld [vmem:[%s0 + $0x68] sm:$0xff]
  %v35 = vld [vmem:[%s0 + $0x70] sm:$0xff]
  %v36 = vld [vmem:[%s0 + $0x78] sm:$0xff]
  %v37 = vld [vmem:[%s0 + $0x80] sm:$0xff]
  %v38 = vld [vmem:[%s0 + $0x88] sm:$0xff]
  %v39 = vld [vmem:[%s0 + $0x90] sm:$0xff]
  %v40 = vld [vmem:[%s0 + $0x98] sm:$0xff]
  %v41 = vld [vmem:[%s0 + $0xa0] sm:$0xff]
  %v42 = vld [vmem:[%s0 + $0xa8] sm:$0xff]
  %v43 = vld [vmem:[%s0 + $0xb0] sm:$0xff]
  %v44 = vld [vmem:[%s0 + $0xb8] sm:$0xff]
  %v45 = vld [vmem:[%s0 + $0xc0] sm:$0xff]
  %v46 = vld [vmem:[%s0 + $0xc8] sm:$0xff]
  %v47 = vld [vmem:[%s0 + $0xd0] sm:$0xff]
  %v48 = vld [vmem:[%s0 + $0xd8] sm:$0xff]
  %v49 = vld [vmem:[%s0 + $0xe0] sm:$0xff]
  %v50 = vld [vmem:[%s0 + $0xe8] sm:$0xff]
  %v51 = vld [vmem:[%s0 + $0xf0] sm:$0xff]
  %v52 = vld [vmem:[%s0 + $0xf8] sm:$0xff]
  %v53 = vld [vmem:[%s0 + $0x100] sm:$0xff]
  %v54 = vld [vmem:[%s0 + $0x108] sm:$0xff]
  %v55 = vld [vmem:[%s0 + $0x110] sm:$0xff]
  %v56 = vld [vmem:[%s0 + $0x118] sm:$0xff]
  %v57 = vld [vmem:[%s0 + $0x120] sm:$0xff]
  %v58 = vld [vmem:[%s0 + $0x128] sm:$0xff]
  %v59 = vld [vmem:[%s0 + $0x130] sm:$0xff]
  %v60 = vld [vmem:[%s0 + $0x138] sm:$0xff]
  %v61 = vld [vmem:[%s0 + $0x140] sm:$0xff]
  %v62 = vld [vmem:[%s0 + $0x148] sm:$0xff]
  %v63 = vld [vmem:[%s0 + $0x150] sm:$0xff]
  %v64 = vld [vmem:[%s0 + $0x158] sm:$0xff]
  %v65 = vld [vmem:[%s0 + $0x160] sm:$0xff]
  %v66 = vld [vmem:[%s0 + $0x168] sm:$0xff]
  %v67 = vld [vmem:[%s0 + $0x170] sm:$0xff]
  %v68 = vld [vmem:[%s0 + $0x178] sm:$0xff]
  %v69 = vpack.c.bf16 %v24, %v21
  %v70 = vpack.c.bf16 %v25, %v22
  %v71 = vpack.c.bf16 %v26, %v23
  %v72 = vpack.c.bf16 %v30, %v27
  %v73 = vpack.c.bf16 %v31, %v28
  %v74 = vpack.c.bf16 %v32, %v29
  %v75 = vpack.c.bf16 %v36, %v33
  %v76 = vpack.c.bf16 %v37, %v34
  %v77 = vpack.c.bf16 %v38, %v35
  %v78 = vpack.c.bf16 %v42, %v39
  %v79 = vpack.c.bf16 %v43, %v40
  %v80 = vpack.c.bf16 %v44, %v41
  %v81 = vpack.c.bf16 %v48, %v45
  %v82 = vpack.c.bf16 %v49, %v46
  %v83 = vpack.c.bf16 %v50, %v47
  %v84 = vpack.c.bf16 %v54, %v51
  %v85 = vpack.c.bf16 %v55, %v52
  %v86 = vpack.c.bf16 %v56, %v53
  %v87 = vpack.c.bf16 %v60, %v57
  %v88 = vpack.c.bf16 %v61, %v58
  %v89 = vpack.c.bf16 %v62, %v59
  %v90 = vpack.c.bf16 %v66, %v63
  %v91 = vpack.c.bf16 %v67, %v64
  %v92 = vpack.c.bf16 %v68, %v65
  %v93 = vld [vmem:[%s1] sm:$0xff]
  %v94 = vld [vmem:[%s1 + $0x8] sm:$0xff]
  %v95 = vld [vmem:[%s1 + $0x10] sm:$0xff]
  %v96 = vld [vmem:[%s1 + $0x18] sm:$0xff]
  %v97 = vld [vmem:[%s1 + $0x20] sm:$0xff]
  %v98 = vld [vmem:[%s1 + $0x28] sm:$0xff]
  %v99 = vld [vmem:[%s1 + $0x30] sm:$0xff]
  %v100 = vld [vmem:[%s1 + $0x38] sm:$0xff]
  %v101 = vld [vmem:[%s1 + $0x40] sm:$0xff]
  %v102 = vld [vmem:[%s1 + $0x48] sm:$0xff]
  %v103 = vld [vmem:[%s1 + $0x50] sm:$0xff]
  %v104 = vld [vmem:[%s1 + $0x58] sm:$0xff]
  %v105 = vld [vmem:[%s1 + $0x60] sm:$0xff]
  %v106 = vld [vmem:[%s1 + $0x68] sm:$0xff]
  %v107 = vld [vmem:[%s1 + $0x70] sm:$0xff]
  %v108 = vld [vmem:[%s1 + $0x78] sm:$0xff]
  %v109 = vld [vmem:[%s1 + $0x80] sm:$0xff]
  %v110 = vld [vmem:[%s1 + $0x88] sm:$0xff]
  %v111 = vld [vmem:[%s1 + $0x90] sm:$0xff]
  %v112 = vld [vmem:[%s1 + $0x98] sm:$0xff]
  %v113 = vld [vmem:[%s1 + $0xa0] sm:$0xff]
  %v114 = vld [vmem:[%s1 + $0xa8] sm:$0xff]
  %v115 = vld [vmem:[%s1 + $0xb0] sm:$0xff]
  %v116 = vld [vmem:[%s1 + $0xb8] sm:$0xff]
  %v117 = vld [vmem:[%s1 + $0xc0] sm:$0xff]
  %v118 = vld [vmem:[%s1 + $0xc8] sm:$0xff]
  %v119 = vld [vmem:[%s1 + $0xd0] sm:$0xff]
  %v120 = vld [vmem:[%s1 + $0xd8] sm:$0xff]
  %v121 = vld [vmem:[%s1 + $0xe0] sm:$0xff]
  %v122 = vld [vmem:[%s1 + $0xe8] sm:$0xff]
  %v123 = vld [vmem:[%s1 + $0xf0] sm:$0xff]
  %v124 = vld [vmem:[%s1 + $0xf8] sm:$0xff]
  %v125 = vld [vmem:[%s1 + $0x100] sm:$0xff]
  %v126 = vld [vmem:[%s1 + $0x108] sm:$0xff]
  %v127 = vld [vmem:[%s1 + $0x110] sm:$0xff]
  %v128 = vld [vmem:[%s1 + $0x118] sm:$0xff]
  %v129 = vld [vmem:[%s1 + $0x120] sm:$0xff]
  %v130 = vld [vmem:[%s1 + $0x128] sm:$0xff]
  %v131 = vld [vmem:[%s1 + $0x130] sm:$0xff]
  %v132 = vld [vmem:[%s1 + $0x138] sm:$0xff]
  %v133 = vld [vmem:[%s1 + $0x140] sm:$0xff]
  %v134 = vld [vmem:[%s1 + $0x148] sm:$0xff]
  %v135 = vld [vmem:[%s1 + $0x150] sm:$0xff]
  %v136 = vld [vmem:[%s1 + $0x158] sm:$0xff]
  %v137 = vld [vmem:[%s1 + $0x160] sm:$0xff]
  %v138 = vld [vmem:[%s1 + $0x168] sm:$0xff]
  %v139 = vld [vmem:[%s1 + $0x170] sm:$0xff]
  %v140 = vld [vmem:[%s1 + $0x178] sm:$0xff]
  %v141 = vld [vmem:[%s1 + $0x180] sm:$0xff]
  %v142 = vld [vmem:[%s1 + $0x188] sm:$0xff]
  %v143 = vld [vmem:[%s1 + $0x190] sm:$0xff]
  %v144 = vld [vmem:[%s1 + $0x198] sm:$0xff]
  %v145 = vld [vmem:[%s1 + $0x1a0] sm:$0xff]
  %v146 = vld [vmem:[%s1 + $0x1a8] sm:$0xff]
  %v147 = vld [vmem:[%s1 + $0x1b0] sm:$0xff]
  %v148 = vld [vmem:[%s1 + $0x1b8] sm:$0xff]
  %v149 = vld [vmem:[%s1 + $0x1c0] sm:$0xff]
  %v150 = vld [vmem:[%s1 + $0x1c8] sm:$0xff]
  %v151 = vld [vmem:[%s1 + $0x1d0] sm:$0xff]
  %v152 = vld [vmem:[%s1 + $0x1d8] sm:$0xff]
  %v153 = vld [vmem:[%s1 + $0x1e0] sm:$0xff]
  %v154 = vld [vmem:[%s1 + $0x1e8] sm:$0xff]
  %v155 = vld [vmem:[%s1 + $0x1f0] sm:$0xff]
  %v156 = vld [vmem:[%s1 + $0x1f8] sm:$0xff]
  %v157 = vld [vmem:[%s1 + $0x200] sm:$0xff]
  %v158 = vld [vmem:[%s1 + $0x208] sm:$0xff]
  %v159 = vld [vmem:[%s1 + $0x210] sm:$0xff]
  %v160 = vld [vmem:[%s1 + $0x218] sm:$0xff]
  %v161 = vld [vmem:[%s1 + $0x220] sm:$0xff]
  %v162 = vld [vmem:[%s1 + $0x228] sm:$0xff]
  %v163 = vld [vmem:[%s1 + $0x230] sm:$0xff]
  %v164 = vld [vmem:[%s1 + $0x238] sm:$0xff]
  %v165 = vld [vmem:[%s1 + $0x240] sm:$0xff]
  %v166 = vld [vmem:[%s1 + $0x248] sm:$0xff]
  %v167 = vld [vmem:[%s1 + $0x250] sm:$0xff]
  %v168 = vld [vmem:[%s1 + $0x258] sm:$0xff]
  %v169 = vld [vmem:[%s1 + $0x260] sm:$0xff]
  %v170 = vld [vmem:[%s1 + $0x268] sm:$0xff]
  %v171 = vld [vmem:[%s1 + $0x270] sm:$0xff]
  %v172 = vld [vmem:[%s1 + $0x278] sm:$0xff]
  %v173 = vld [vmem:[%s1 + $0x280] sm:$0xff]
  %v174 = vld [vmem:[%s1 + $0x288] sm:$0xff]
  %v175 = vld [vmem:[%s1 + $0x290] sm:$0xff]
  %v176 = vld [vmem:[%s1 + $0x298] sm:$0xff]
  %v177 = vld [vmem:[%s1 + $0x2a0] sm:$0xff]
  %v178 = vld [vmem:[%s1 + $0x2a8] sm:$0xff]
  %v179 = vld [vmem:[%s1 + $0x2b0] sm:$0xff]
  %v180 = vld [vmem:[%s1 + $0x2b8] sm:$0xff]
  %v181 = vld [vmem:[%s1 + $0x2c0] sm:$0xff]
  %v182 = vld [vmem:[%s1 + $0x2c8] sm:$0xff]
  %v183 = vld [vmem:[%s1 + $0x2d0] sm:$0xff]
  %v184 = vld [vmem:[%s1 + $0x2d8] sm:$0xff]
  %v185 = vld [vmem:[%s1 + $0x2e0] sm:$0xff]
  %v186 = vld [vmem:[%s1 + $0x2e8] sm:$0xff]
  %v187 = vld [vmem:[%s1 + $0x2f0] sm:$0xff]
  %v188 = vld [vmem:[%s1 + $0x2f8] sm:$0xff]
  %v189 = vld [vmem:[%s1 + $0x300] sm:$0xff]
  %v190 = vld [vmem:[%s1 + $0x308] sm:$0xff]
  %v191 = vld [vmem:[%s1 + $0x310] sm:$0xff]
  %v192 = vld [vmem:[%s1 + $0x318] sm:$0xff]
  %v193 = vld [vmem:[%s1 + $0x320] sm:$0xff]
  %v194 = vld [vmem:[%s1 + $0x328] sm:$0xff]
  %v195 = vld [vmem:[%s1 + $0x330] sm:$0xff]
  %v196 = vld [vmem:[%s1 + $0x338] sm:$0xff]
  %v197 = vld [vmem:[%s1 + $0x340] sm:$0xff]
  %v198 = vld [vmem:[%s1 + $0x348] sm:$0xff]
  %v199 = vld [vmem:[%s1 + $0x350] sm:$0xff]
  %v200 = vld [vmem:[%s1 + $0x358] sm:$0xff]
  %v201 = vld [vmem:[%s1 + $0x360] sm:$0xff]
  %v202 = vld [vmem:[%s1 + $0x368] sm:$0xff]
  %v203 = vld [vmem:[%s1 + $0x370] sm:$0xff]
  %v204 = vld [vmem:[%s1 + $0x378] sm:$0xff]
  %v205 = vld [vmem:[%s1 + $0x380] sm:$0xff]
  %v206 = vld [vmem:[%s1 + $0x388] sm:$0xff]
  %v207 = vld [vmem:[%s1 + $0x390] sm:$0xff]
  %v208 = vld [vmem:[%s1 + $0x398] sm:$0xff]
  %v209 = vld [vmem:[%s1 + $0x3a0] sm:$0xff]
  %v210 = vld [vmem:[%s1 + $0x3a8] sm:$0xff]
  %v211 = vld [vmem:[%s1 + $0x3b0] sm:$0xff]
  %v212 = vld [vmem:[%s1 + $0x3b8] sm:$0xff]
  %v213 = vld [vmem:[%s1 + $0x3c0] sm:$0xff]
  %v214 = vld [vmem:[%s1 + $0x3c8] sm:$0xff]
  %v215 = vld [vmem:[%s1 + $0x3d0] sm:$0xff]
  %v216 = vld [vmem:[%s1 + $0x3d8] sm:$0xff]
  %v217 = vld [vmem:[%s1 + $0x3e0] sm:$0xff]
  %v218 = vld [vmem:[%s1 + $0x3e8] sm:$0xff]
  %v219 = vld [vmem:[%s1 + $0x3f0] sm:$0xff]
  %v220 = vld [vmem:[%s1 + $0x3f8] sm:$0xff]
  %v221 = vld [vmem:[%s1 + $0x400] sm:$0xff]
  %v222 = vld [vmem:[%s1 + $0x408] sm:$0xff]
  %v223 = vld [vmem:[%s1 + $0x410] sm:$0xff]
  %v224 = vld [vmem:[%s1 + $0x418] sm:$0xff]
  %v225 = vld [vmem:[%s1 + $0x420] sm:$0xff]
  %v226 = vld [vmem:[%s1 + $0x428] sm:$0xff]
  %v227 = vld [vmem:[%s1 + $0x430] sm:$0xff]
  %v228 = vld [vmem:[%s1 + $0x438] sm:$0xff]
  %v229 = vld [vmem:[%s1 + $0x440] sm:$0xff]
  %v230 = vld [vmem:[%s1 + $0x448] sm:$0xff]
  %v231 = vld [vmem:[%s1 + $0x450] sm:$0xff]
  %v232 = vld [vmem:[%s1 + $0x458] sm:$0xff]
  %v233 = vld [vmem:[%s1 + $0x460] sm:$0xff]
  %v234 = vld [vmem:[%s1 + $0x468] sm:$0xff]
  %v235 = vld [vmem:[%s1 + $0x470] sm:$0xff]
  %v236 = vld [vmem:[%s1 + $0x478] sm:$0xff]
  %v237 = vld [vmem:[%s1 + $0x480] sm:$0xff]
  %v238 = vld [vmem:[%s1 + $0x488] sm:$0xff]
  %v239 = vld [vmem:[%s1 + $0x490] sm:$0xff]
  %v240 = vld [vmem:[%s1 + $0x498] sm:$0xff]
  %v241 = vld [vmem:[%s1 + $0x4a0] sm:$0xff]
  %v242 = vld [vmem:[%s1 + $0x4a8] sm:$0xff]
  %v243 = vld [vmem:[%s1 + $0x4b0] sm:$0xff]
  %v244 = vld [vmem:[%s1 + $0x4b8] sm:$0xff]
  %v245 = vld [vmem:[%s1 + $0x4c0] sm:$0xff]
  %v246 = vld [vmem:[%s1 + $0x4c8] sm:$0xff]
  %v247 = vld [vmem:[%s1 + $0x4d0] sm:$0xff]
  %v248 = vld [vmem:[%s1 + $0x4d8] sm:$0xff]
  %v249 = vld [vmem:[%s1 + $0x4e0] sm:$0xff]
  %v250 = vld [vmem:[%s1 + $0x4e8] sm:$0xff]
  %v251 = vld [vmem:[%s1 + $0x4f0] sm:$0xff]
  %v252 = vld [vmem:[%s1 + $0x4f8] sm:$0xff]
  %v253 = vld [vmem:[%s1 + $0x500] sm:$0xff]
  %v254 = vld [vmem:[%s1 + $0x508] sm:$0xff]
  %v255 = vld [vmem:[%s1 + $0x510] sm:$0xff]
  %v256 = vld [vmem:[%s1 + $0x518] sm:$0xff]
  %v257 = vld [vmem:[%s1 + $0x520] sm:$0xff]
  %v258 = vld [vmem:[%s1 + $0x528] sm:$0xff]
  %v259 = vld [vmem:[%s1 + $0x530] sm:$0xff]
  %v260 = vld [vmem:[%s1 + $0x538] sm:$0xff]
  %v261 = vld [vmem:[%s1 + $0x540] sm:$0xff]
  %v262 = vld [vmem:[%s1 + $0x548] sm:$0xff]
  %v263 = vld [vmem:[%s1 + $0x550] sm:$0xff]
  %v264 = vld [vmem:[%s1 + $0x558] sm:$0xff]
  %v265 = vld [vmem:[%s1 + $0x560] sm:$0xff]
  %v266 = vld [vmem:[%s1 + $0x568] sm:$0xff]
  %v267 = vld [vmem:[%s1 + $0x570] sm:$0xff]
  %v268 = vld [vmem:[%s1 + $0x578] sm:$0xff]
  %v269 = vld [vmem:[%s1 + $0x580] sm:$0xff]
  %v270 = vld [vmem:[%s1 + $0x588] sm:$0xff]
  %v271 = vld [vmem:[%s1 + $0x590] sm:$0xff]
  %v272 = vld [vmem:[%s1 + $0x598] sm:$0xff]
  %v273 = vld [vmem:[%s1 + $0x5a0] sm:$0xff]
  %v274 = vld [vmem:[%s1 + $0x5a8] sm:$0xff]
  %v275 = vld [vmem:[%s1 + $0x5b0] sm:$0xff]
  %v276 = vld [vmem:[%s1 + $0x5b8] sm:$0xff]
  %v277 = vld [vmem:[%s1 + $0x5c0] sm:$0xff]
  %v278 = vld [vmem:[%s1 + $0x5c8] sm:$0xff]
  %v279 = vld [vmem:[%s1 + $0x5d0] sm:$0xff]
  %v280 = vld [vmem:[%s1 + $0x5d8] sm:$0xff]
  %v281 = vld [vmem:[%s1 + $0x5e0] sm:$0xff]
  %v282 = vld [vmem:[%s1 + $0x5e8] sm:$0xff]
  %v283 = vld [vmem:[%s1 + $0x5f0] sm:$0xff]
  %v284 = vld [vmem:[%s1 + $0x5f8] sm:$0xff]
  %v285 = vld [vmem:[%s1 + $0x600] sm:$0xff]
  %v286 = vld [vmem:[%s1 + $0x608] sm:$0xff]
  %v287 = vld [vmem:[%s1 + $0x610] sm:$0xff]
  %v288 = vld [vmem:[%s1 + $0x618] sm:$0xff]
  %v289 = vld [vmem:[%s1 + $0x620] sm:$0xff]
  %v290 = vld [vmem:[%s1 + $0x628] sm:$0xff]
  %v291 = vld [vmem:[%s1 + $0x630] sm:$0xff]
  %v292 = vld [vmem:[%s1 + $0x638] sm:$0xff]
  %v293 = vld [vmem:[%s1 + $0x640] sm:$0xff]
  %v294 = vld [vmem:[%s1 + $0x648] sm:$0xff]
  %v295 = vld [vmem:[%s1 + $0x650] sm:$0xff]
  %v296 = vld [vmem:[%s1 + $0x658] sm:$0xff]
  %v297 = vld [vmem:[%s1 + $0x660] sm:$0xff]
  %v298 = vld [vmem:[%s1 + $0x668] sm:$0xff]
  %v299 = vld [vmem:[%s1 + $0x670] sm:$0xff]
  %v300 = vld [vmem:[%s1 + $0x678] sm:$0xff]
  %v301 = vld [vmem:[%s1 + $0x680] sm:$0xff]
  %v302 = vld [vmem:[%s1 + $0x688] sm:$0xff]
  %v303 = vld [vmem:[%s1 + $0x690] sm:$0xff]
  %v304 = vld [vmem:[%s1 + $0x698] sm:$0xff]
  %v305 = vld [vmem:[%s1 + $0x6a0] sm:$0xff]
  %v306 = vld [vmem:[%s1 + $0x6a8] sm:$0xff]
  %v307 = vld [vmem:[%s1 + $0x6b0] sm:$0xff]
  %v308 = vld [vmem:[%s1 + $0x6b8] sm:$0xff]
  %v309 = vld [vmem:[%s1 + $0x6c0] sm:$0xff]
  %v310 = vld [vmem:[%s1 + $0x6c8] sm:$0xff]
  %v311 = vld [vmem:[%s1 + $0x6d0] sm:$0xff]
  %v312 = vld [vmem:[%s1 + $0x6d8] sm:$0xff]
  %v313 = vld [vmem:[%s1 + $0x6e0] sm:$0xff]
  %v314 = vld [vmem:[%s1 + $0x6e8] sm:$0xff]
  %v315 = vld [vmem:[%s1 + $0x6f0] sm:$0xff]
  %v316 = vld [vmem:[%s1 + $0x6f8] sm:$0xff]
  %v317 = vld [vmem:[%s1 + $0x700] sm:$0xff]
  %v318 = vld [vmem:[%s1 + $0x708] sm:$0xff]
  %v319 = vld [vmem:[%s1 + $0x710] sm:$0xff]
  %v320 = vld [vmem:[%s1 + $0x718] sm:$0xff]
  %v321 = vld [vmem:[%s1 + $0x720] sm:$0xff]
  %v322 = vld [vmem:[%s1 + $0x728] sm:$0xff]
  %v323 = vld [vmem:[%s1 + $0x730] sm:$0xff]
  %v324 = vld [vmem:[%s1 + $0x738] sm:$0xff]
  %v325 = vld [vmem:[%s1 + $0x740] sm:$0xff]
  %v326 = vld [vmem:[%s1 + $0x748] sm:$0xff]
  %v327 = vld [vmem:[%s1 + $0x750] sm:$0xff]
  %v328 = vld [vmem:[%s1 + $0x758] sm:$0xff]
  %v329 = vld [vmem:[%s1 + $0x760] sm:$0xff]
  %v330 = vld [vmem:[%s1 + $0x768] sm:$0xff]
  %v331 = vld [vmem:[%s1 + $0x770] sm:$0xff]
  %v332 = vld [vmem:[%s1 + $0x778] sm:$0xff]
  %v333 = vld [vmem:[%s1 + $0x780] sm:$0xff]
  %v334 = vld [vmem:[%s1 + $0x788] sm:$0xff]
  %v335 = vld [vmem:[%s1 + $0x790] sm:$0xff]
  %v336 = vld [vmem:[%s1 + $0x798] sm:$0xff]
  %v337 = vld [vmem:[%s1 + $0x7a0] sm:$0xff]
  %v338 = vld [vmem:[%s1 + $0x7a8] sm:$0xff]
  %v339 = vld [vmem:[%s1 + $0x7b0] sm:$0xff]
  %v340 = vld [vmem:[%s1 + $0x7b8] sm:$0xff]
  %v341 = vld [vmem:[%s1 + $0x7c0] sm:$0xff]
  %v342 = vld [vmem:[%s1 + $0x7c8] sm:$0xff]
  %v343 = vld [vmem:[%s1 + $0x7d0] sm:$0xff]
  %v344 = vld [vmem:[%s1 + $0x7d8] sm:$0xff]
  %v345 = vld [vmem:[%s1 + $0x7e0] sm:$0xff]
  %v346 = vld [vmem:[%s1 + $0x7e8] sm:$0xff]
  %v347 = vld [vmem:[%s1 + $0x7f0] sm:$0xff]
  %v348 = vld [vmem:[%s1 + $0x7f8] sm:$0xff]
  %v349 = vld [vmem:[%s1 + $0x800] sm:$0xff]
  %v350 = vld [vmem:[%s1 + $0x808] sm:$0xff]
  %v351 = vld [vmem:[%s1 + $0x810] sm:$0xff]
  %v352 = vld [vmem:[%s1 + $0x818] sm:$0xff]
  %v353 = vld [vmem:[%s1 + $0x820] sm:$0xff]
  %v354 = vld [vmem:[%s1 + $0x828] sm:$0xff]
  %v355 = vld [vmem:[%s1 + $0x830] sm:$0xff]
  %v356 = vld [vmem:[%s1 + $0x838] sm:$0xff]
  %v357 = vld [vmem:[%s1 + $0x840] sm:$0xff]
  %v358 = vld [vmem:[%s1 + $0x848] sm:$0xff]
  %v359 = vld [vmem:[%s1 + $0x850] sm:$0xff]
  %v360 = vld [vmem:[%s1 + $0x858] sm:$0xff]
  %v361 = vld [vmem:[%s1 + $0x860] sm:$0xff]
  %v362 = vld [vmem:[%s1 + $0x868] sm:$0xff]
  %v363 = vld [vmem:[%s1 + $0x870] sm:$0xff]
  %v364 = vld [vmem:[%s1 + $0x878] sm:$0xff]
  %v365 = vld [vmem:[%s1 + $0x880] sm:$0xff]
  %v366 = vld [vmem:[%s1 + $0x888] sm:$0xff]
  %v367 = vld [vmem:[%s1 + $0x890] sm:$0xff]
  %v368 = vld [vmem:[%s1 + $0x898] sm:$0xff]
  %v369 = vld [vmem:[%s1 + $0x8a0] sm:$0xff]
  %v370 = vld [vmem:[%s1 + $0x8a8] sm:$0xff]
  %v371 = vld [vmem:[%s1 + $0x8b0] sm:$0xff]
  %v372 = vld [vmem:[%s1 + $0x8b8] sm:$0xff]
  %v373 = vld [vmem:[%s1 + $0x8c0] sm:$0xff]
  %v374 = vld [vmem:[%s1 + $0x8c8] sm:$0xff]
  %v375 = vld [vmem:[%s1 + $0x8d0] sm:$0xff]
  %v376 = vld [vmem:[%s1 + $0x8d8] sm:$0xff]
  %v377 = vld [vmem:[%s1 + $0x8e0] sm:$0xff]
  %v378 = vld [vmem:[%s1 + $0x8e8] sm:$0xff]
  %v379 = vld [vmem:[%s1 + $0x8f0] sm:$0xff]
  %v380 = vld [vmem:[%s1 + $0x8f8] sm:$0xff]
  %v381 = vld [vmem:[%s2] sm:$0xff]
  %v382 = vld [vmem:[%s2 + $0x8] sm:$0xf]
  %v385 = vlaneseq
  %v386 = vshrl.u32 %v385, 7
  %v387 = vsub.s32 0, %v386
  %v388 = vrot.slane %v381, %v387
  %v389 = vlaneseq
  %v390 = vshrl.u32 %v389, 7
  %v391 = vsub.s32 1, %v390
  %v392 = vrot.slane %v381, %v391
  %v393 = vlaneseq
  %v394 = vshrl.u32 %v393, 7
  %v395 = vsub.s32 2, %v394
  %v396 = vrot.slane %v381, %v395
  %v397 = vlaneseq
  %v398 = vshrl.u32 %v397, 7
  %v399 = vsub.s32 3, %v398
  %v400 = vrot.slane %v381, %v399
  %v401 = vlaneseq
  %v402 = vshrl.u32 %v401, 7
  %v403 = vsub.s32 4, %v402
  %v404 = vrot.slane %v381, %v403
  %v405 = vlaneseq
  %v406 = vshrl.u32 %v405, 7
  %v407 = vsub.s32 5, %v406
  %v408 = vrot.slane %v381, %v407
  %v409 = vlaneseq
  %v410 = vshrl.u32 %v409, 7
  %v411 = vsub.s32 6, %v410
  %v412 = vrot.slane %v381, %v411
  %v413 = vlaneseq
  %v414 = vshrl.u32 %v413, 7
  %v415 = vsub.s32 7, %v414
  %v416 = vrot.slane %v381, %v415
  %v417 = vlaneseq
  %v418 = vshrl.u32 %v417, 7
  %v419 = vsub.s32 0, %v418
  %v420 = vrot.slane %v382, %v419
  %v421 = vlaneseq
  %v422 = vshrl.u32 %v421, 7
  %v423 = vsub.s32 1, %v422
  %v424 = vrot.slane %v382, %v423
  %v425 = vlaneseq
  %v426 = vshrl.u32 %v425, 7
  %v427 = vsub.s32 2, %v426
  %v428 = vrot.slane %v382, %v427
  %v429 = vlaneseq
  %v430 = vshrl.u32 %v429, 7
  %v431 = vsub.s32 3, %v430
  %v432 = vrot.slane %v382, %v431
  %v733 = vunpack.c.l.b16 %v93
  %v734 = vunpack.c.h.b16 %v93
  %v735 = vunpack.c.l.b16 %v94
  %v736 = vunpack.c.h.b16 %v94
  %v737 = vunpack.c.l.b16 %v95
  %v738 = vunpack.c.h.b16 %v95
  %v739 = vunpack.c.l.b16 %v96
  %v740 = vunpack.c.h.b16 %v96
  %v741 = vunpack.c.l.b16 %v97
  %v742 = vunpack.c.h.b16 %v97
  %v743 = vunpack.c.l.b16 %v98
  %v744 = vunpack.c.h.b16 %v98
  %v745 = vunpack.c.l.b16 %v99
  %v746 = vunpack.c.h.b16 %v99
  %v747 = vunpack.c.l.b16 %v100
  %v748 = vunpack.c.h.b16 %v100
  %v749 = vunpack.c.l.b16 %v101
  %v750 = vunpack.c.h.b16 %v101
  %v751 = vunpack.c.l.b16 %v102
  %v752 = vunpack.c.h.b16 %v102
  %v753 = vunpack.c.l.b16 %v103
  %v754 = vunpack.c.h.b16 %v103
  %v755 = vunpack.c.l.b16 %v104
  %v756 = vunpack.c.h.b16 %v104
  %v757 = vunpack.c.l.b16 %v105
  %v758 = vunpack.c.h.b16 %v105
  %v759 = vunpack.c.l.b16 %v106
  %v760 = vunpack.c.h.b16 %v106
  %v761 = vunpack.c.l.b16 %v107
  %v762 = vunpack.c.h.b16 %v107
  %v763 = vunpack.c.l.b16 %v108
  %v764 = vunpack.c.h.b16 %v108
  %v765 = vunpack.c.l.b16 %v109
  %v766 = vunpack.c.h.b16 %v109
  %v767 = vunpack.c.l.b16 %v110
  %v768 = vunpack.c.h.b16 %v110
  %v769 = vunpack.c.l.b16 %v111
  %v770 = vunpack.c.h.b16 %v111
  %v771 = vunpack.c.l.b16 %v112
  %v772 = vunpack.c.h.b16 %v112
  %v773 = vunpack.c.l.b16 %v113
  %v774 = vunpack.c.h.b16 %v113
  %v775 = vunpack.c.l.b16 %v114
  %v776 = vunpack.c.h.b16 %v114
  %v777 = vunpack.c.l.b16 %v115
  %v778 = vunpack.c.h.b16 %v115
  %v779 = vunpack.c.l.b16 %v116
  %v780 = vunpack.c.h.b16 %v116
  %v781 = vunpack.c.l.b16 %v117
  %v782 = vunpack.c.h.b16 %v117
  %v783 = vunpack.c.l.b16 %v118
  %v784 = vunpack.c.h.b16 %v118
  %v785 = vunpack.c.l.b16 %v119
  %v786 = vunpack.c.h.b16 %v119
  %v787 = vunpack.c.l.b16 %v120
  %v788 = vunpack.c.h.b16 %v120
  %v789 = vunpack.c.l.b16 %v121
  %v790 = vunpack.c.h.b16 %v121
  %v791 = vunpack.c.l.b16 %v122
  %v792 = vunpack.c.h.b16 %v122
  %v793 = vunpack.c.l.b16 %v123
  %v794 = vunpack.c.h.b16 %v123
  %v795 = vunpack.c.l.b16 %v124
  %v796 = vunpack.c.h.b16 %v124
  %v797 = vunpack.c.l.b16 %v125
  %v798 = vunpack.c.h.b16 %v125
  %v799 = vunpack.c.l.b16 %v126
  %v800 = vunpack.c.h.b16 %v126
  %v801 = vunpack.c.l.b16 %v127
  %v802 = vunpack.c.h.b16 %v127
  %v803 = vunpack.c.l.b16 %v128
  %v804 = vunpack.c.h.b16 %v128
  %v805 = vunpack.c.l.b16 %v129
  %v806 = vunpack.c.h.b16 %v129
  %v807 = vunpack.c.l.b16 %v130
  %v808 = vunpack.c.h.b16 %v130
  %v809 = vunpack.c.l.b16 %v131
  %v810 = vunpack.c.h.b16 %v131
  %v811 = vunpack.c.l.b16 %v132
  %v812 = vunpack.c.h.b16 %v132
  %v813 = vunpack.c.l.b16 %v133
  %v814 = vunpack.c.h.b16 %v133
  %v815 = vunpack.c.l.b16 %v134
  %v816 = vunpack.c.h.b16 %v134
  %v817 = vunpack.c.l.b16 %v135
  %v818 = vunpack.c.h.b16 %v135
  %v819 = vunpack.c.l.b16 %v136
  %v820 = vunpack.c.h.b16 %v136
  %v821 = vunpack.c.l.b16 %v137
  %v822 = vunpack.c.h.b16 %v137
  %v823 = vunpack.c.l.b16 %v138
  %v824 = vunpack.c.h.b16 %v138
  %v825 = vunpack.c.l.b16 %v139
  %v826 = vunpack.c.h.b16 %v139
  %v827 = vunpack.c.l.b16 %v140
  %v828 = vunpack.c.h.b16 %v140
  %v829 = vunpack.c.l.b16 %v141
  %v830 = vunpack.c.h.b16 %v141
  %v831 = vunpack.c.l.b16 %v142
  %v832 = vunpack.c.h.b16 %v142
  %v833 = vunpack.c.l.b16 %v143
  %v834 = vunpack.c.h.b16 %v143
  %v835 = vunpack.c.l.b16 %v144
  %v836 = vunpack.c.h.b16 %v144
  %v837 = vunpack.c.l.b16 %v145
  %v838 = vunpack.c.h.b16 %v145
  %v839 = vunpack.c.l.b16 %v146
  %v840 = vunpack.c.h.b16 %v146
  %v841 = vunpack.c.l.b16 %v147
  %v842 = vunpack.c.h.b16 %v147
  %v843 = vunpack.c.l.b16 %v148
  %v844 = vunpack.c.h.b16 %v148
  %v845 = vunpack.c.l.b16 %v149
  %v846 = vunpack.c.h.b16 %v149
  %v847 = vunpack.c.l.b16 %v150
  %v848 = vunpack.c.h.b16 %v150
  %v849 = vunpack.c.l.b16 %v151
  %v850 = vunpack.c.h.b16 %v151
  %v851 = vunpack.c.l.b16 %v152
  %v852 = vunpack.c.h.b16 %v152
  %v853 = vunpack.c.l.b16 %v153
  %v854 = vunpack.c.h.b16 %v153
  %v855 = vunpack.c.l.b16 %v154
  %v856 = vunpack.c.h.b16 %v154
  %v857 = vunpack.c.l.b16 %v155
  %v858 = vunpack.c.h.b16 %v155
  %v859 = vunpack.c.l.b16 %v156
  %v860 = vunpack.c.h.b16 %v156
  %v861 = vunpack.c.l.b16 %v157
  %v862 = vunpack.c.h.b16 %v157
  %v863 = vunpack.c.l.b16 %v158
  %v864 = vunpack.c.h.b16 %v158
  %v865 = vunpack.c.l.b16 %v159
  %v866 = vunpack.c.h.b16 %v159
  %v867 = vunpack.c.l.b16 %v160
  %v868 = vunpack.c.h.b16 %v160
  %v869 = vunpack.c.l.b16 %v161
  %v870 = vunpack.c.h.b16 %v161
  %v871 = vunpack.c.l.b16 %v162
  %v872 = vunpack.c.h.b16 %v162
  %v873 = vunpack.c.l.b16 %v163
  %v874 = vunpack.c.h.b16 %v163
  %v875 = vunpack.c.l.b16 %v164
  %v876 = vunpack.c.h.b16 %v164
  %v877 = vunpack.c.l.b16 %v165
  %v878 = vunpack.c.h.b16 %v165
  %v879 = vunpack.c.l.b16 %v166
  %v880 = vunpack.c.h.b16 %v166
  %v881 = vunpack.c.l.b16 %v167
  %v882 = vunpack.c.h.b16 %v167
  %v883 = vunpack.c.l.b16 %v168
  %v884 = vunpack.c.h.b16 %v168
  %v885 = vunpack.c.l.b16 %v169
  %v886 = vunpack.c.h.b16 %v169
  %v887 = vunpack.c.l.b16 %v170
  %v888 = vunpack.c.h.b16 %v170
  %v889 = vunpack.c.l.b16 %v171
  %v890 = vunpack.c.h.b16 %v171
  %v891 = vunpack.c.l.b16 %v172
  %v892 = vunpack.c.h.b16 %v172
  %v893 = vunpack.c.l.b16 %v173
  %v894 = vunpack.c.h.b16 %v173
  %v895 = vunpack.c.l.b16 %v174
  %v896 = vunpack.c.h.b16 %v174
  %v897 = vunpack.c.l.b16 %v175
  %v898 = vunpack.c.h.b16 %v175
  %v899 = vunpack.c.l.b16 %v176
  %v900 = vunpack.c.h.b16 %v176
  %v901 = vunpack.c.l.b16 %v177
  %v902 = vunpack.c.h.b16 %v177
  %v903 = vunpack.c.l.b16 %v178
  %v904 = vunpack.c.h.b16 %v178
  %v905 = vunpack.c.l.b16 %v179
  %v906 = vunpack.c.h.b16 %v179
  %v907 = vunpack.c.l.b16 %v180
  %v908 = vunpack.c.h.b16 %v180
  %v909 = vunpack.c.l.b16 %v181
  %v910 = vunpack.c.h.b16 %v181
  %v911 = vunpack.c.l.b16 %v182
  %v912 = vunpack.c.h.b16 %v182
  %v913 = vunpack.c.l.b16 %v183
  %v914 = vunpack.c.h.b16 %v183
  %v915 = vunpack.c.l.b16 %v184
  %v916 = vunpack.c.h.b16 %v184
  %v917 = vunpack.c.l.b16 %v185
  %v918 = vunpack.c.h.b16 %v185
  %v919 = vunpack.c.l.b16 %v186
  %v920 = vunpack.c.h.b16 %v186
  %v921 = vunpack.c.l.b16 %v187
  %v922 = vunpack.c.h.b16 %v187
  %v923 = vunpack.c.l.b16 %v188
  %v924 = vunpack.c.h.b16 %v188
  %v925 = vunpack.c.l.b16 %v189
  %v926 = vunpack.c.h.b16 %v189
  %v927 = vunpack.c.l.b16 %v190
  %v928 = vunpack.c.h.b16 %v190
  %v929 = vunpack.c.l.b16 %v191
  %v930 = vunpack.c.h.b16 %v191
  %v931 = vunpack.c.l.b16 %v192
  %v932 = vunpack.c.h.b16 %v192
  %v933 = vunpack.c.l.b16 %v193
  %v934 = vunpack.c.h.b16 %v193
  %v935 = vunpack.c.l.b16 %v194
  %v936 = vunpack.c.h.b16 %v194
  %v937 = vunpack.c.l.b16 %v195
  %v938 = vunpack.c.h.b16 %v195
  %v939 = vunpack.c.l.b16 %v196
  %v940 = vunpack.c.h.b16 %v196
  %v941 = vunpack.c.l.b16 %v197
  %v942 = vunpack.c.h.b16 %v197
  %v943 = vunpack.c.l.b16 %v198
  %v944 = vunpack.c.h.b16 %v198
  %v945 = vunpack.c.l.b16 %v199
  %v946 = vunpack.c.h.b16 %v199
  %v947 = vunpack.c.l.b16 %v200
  %v948 = vunpack.c.h.b16 %v200
  %v949 = vunpack.c.l.b16 %v201
  %v950 = vunpack.c.h.b16 %v201
  %v951 = vunpack.c.l.b16 %v202
  %v952 = vunpack.c.h.b16 %v202
  %v953 = vunpack.c.l.b16 %v203
  %v954 = vunpack.c.h.b16 %v203
  %v955 = vunpack.c.l.b16 %v204
  %v956 = vunpack.c.h.b16 %v204
  %v957 = vunpack.c.l.b16 %v205
  %v958 = vunpack.c.h.b16 %v205
  %v959 = vunpack.c.l.b16 %v206
  %v960 = vunpack.c.h.b16 %v206
  %v961 = vunpack.c.l.b16 %v207
  %v962 = vunpack.c.h.b16 %v207
  %v963 = vunpack.c.l.b16 %v208
  %v964 = vunpack.c.h.b16 %v208
  %v965 = vunpack.c.l.b16 %v209
  %v966 = vunpack.c.h.b16 %v209
  %v967 = vunpack.c.l.b16 %v210
  %v968 = vunpack.c.h.b16 %v210
  %v969 = vunpack.c.l.b16 %v211
  %v970 = vunpack.c.h.b16 %v211
  %v971 = vunpack.c.l.b16 %v212
  %v972 = vunpack.c.h.b16 %v212
  %v973 = vunpack.c.l.b16 %v213
  %v974 = vunpack.c.h.b16 %v213
  %v975 = vunpack.c.l.b16 %v214
  %v976 = vunpack.c.h.b16 %v214
  %v977 = vunpack.c.l.b16 %v215
  %v978 = vunpack.c.h.b16 %v215
  %v979 = vunpack.c.l.b16 %v216
  %v980 = vunpack.c.h.b16 %v216
  %v981 = vunpack.c.l.b16 %v217
  %v982 = vunpack.c.h.b16 %v217
  %v983 = vunpack.c.l.b16 %v218
  %v984 = vunpack.c.h.b16 %v218
  %v985 = vunpack.c.l.b16 %v219
  %v986 = vunpack.c.h.b16 %v219
  %v987 = vunpack.c.l.b16 %v220
  %v988 = vunpack.c.h.b16 %v220
  %v989 = vunpack.c.l.b16 %v221
  %v990 = vunpack.c.h.b16 %v221
  %v991 = vunpack.c.l.b16 %v222
  %v992 = vunpack.c.h.b16 %v222
  %v993 = vunpack.c.l.b16 %v223
  %v994 = vunpack.c.h.b16 %v223
  %v995 = vunpack.c.l.b16 %v224
  %v996 = vunpack.c.h.b16 %v224
  %v997 = vunpack.c.l.b16 %v225
  %v998 = vunpack.c.h.b16 %v225
  %v999 = vunpack.c.l.b16 %v226
  %v1000 = vunpack.c.h.b16 %v226
  %v1001 = vunpack.c.l.b16 %v227
  %v1002 = vunpack.c.h.b16 %v227
  %v1003 = vunpack.c.l.b16 %v228
  %v1004 = vunpack.c.h.b16 %v228
  %v1005 = vunpack.c.l.b16 %v229
  %v1006 = vunpack.c.h.b16 %v229
  %v1007 = vunpack.c.l.b16 %v230
  %v1008 = vunpack.c.h.b16 %v230
  %v1009 = vunpack.c.l.b16 %v231
  %v1010 = vunpack.c.h.b16 %v231
  %v1011 = vunpack.c.l.b16 %v232
  %v1012 = vunpack.c.h.b16 %v232
  %v1013 = vunpack.c.l.b16 %v233
  %v1014 = vunpack.c.h.b16 %v233
  %v1015 = vunpack.c.l.b16 %v234
  %v1016 = vunpack.c.h.b16 %v234
  %v1017 = vunpack.c.l.b16 %v235
  %v1018 = vunpack.c.h.b16 %v235
  %v1019 = vunpack.c.l.b16 %v236
  %v1020 = vunpack.c.h.b16 %v236
  %v1021 = vunpack.c.l.b16 %v237
  %v1022 = vunpack.c.h.b16 %v237
  %v1023 = vunpack.c.l.b16 %v238
  %v1024 = vunpack.c.h.b16 %v238
  %v1025 = vunpack.c.l.b16 %v239
  %v1026 = vunpack.c.h.b16 %v239
  %v1027 = vunpack.c.l.b16 %v240
  %v1028 = vunpack.c.h.b16 %v240
  %v1029 = vunpack.c.l.b16 %v241
  %v1030 = vunpack.c.h.b16 %v241
  %v1031 = vunpack.c.l.b16 %v242
  %v1032 = vunpack.c.h.b16 %v242
  %v1033 = vunpack.c.l.b16 %v243
  %v1034 = vunpack.c.h.b16 %v243
  %v1035 = vunpack.c.l.b16 %v244
  %v1036 = vunpack.c.h.b16 %v244
  %v1037 = vunpack.c.l.b16 %v245
  %v1038 = vunpack.c.h.b16 %v245
  %v1039 = vunpack.c.l.b16 %v246
  %v1040 = vunpack.c.h.b16 %v246
  %v1041 = vunpack.c.l.b16 %v247
  %v1042 = vunpack.c.h.b16 %v247
  %v1043 = vunpack.c.l.b16 %v248
  %v1044 = vunpack.c.h.b16 %v248
  %v1045 = vunpack.c.l.b16 %v249
  %v1046 = vunpack.c.h.b16 %v249
  %v1047 = vunpack.c.l.b16 %v250
  %v1048 = vunpack.c.h.b16 %v250
  %v1049 = vunpack.c.l.b16 %v251
  %v1050 = vunpack.c.h.b16 %v251
  %v1051 = vunpack.c.l.b16 %v252
  %v1052 = vunpack.c.h.b16 %v252
  %v1053 = vunpack.c.l.b16 %v253
  %v1054 = vunpack.c.h.b16 %v253
  %v1055 = vunpack.c.l.b16 %v254
  %v1056 = vunpack.c.h.b16 %v254
  %v1057 = vunpack.c.l.b16 %v255
  %v1058 = vunpack.c.h.b16 %v255
  %v1059 = vunpack.c.l.b16 %v256
  %v1060 = vunpack.c.h.b16 %v256
  %v1061 = vunpack.c.l.b16 %v257
  %v1062 = vunpack.c.h.b16 %v257
  %v1063 = vunpack.c.l.b16 %v258
  %v1064 = vunpack.c.h.b16 %v258
  %v1065 = vunpack.c.l.b16 %v259
  %v1066 = vunpack.c.h.b16 %v259
  %v1067 = vunpack.c.l.b16 %v260
  %v1068 = vunpack.c.h.b16 %v260
  %v1069 = vunpack.c.l.b16 %v261
  %v1070 = vunpack.c.h.b16 %v261
  %v1071 = vunpack.c.l.b16 %v262
  %v1072 = vunpack.c.h.b16 %v262
  %v1073 = vunpack.c.l.b16 %v263
  %v1074 = vunpack.c.h.b16 %v263
  %v1075 = vunpack.c.l.b16 %v264
  %v1076 = vunpack.c.h.b16 %v264
  %v1077 = vunpack.c.l.b16 %v265
  %v1078 = vunpack.c.h.b16 %v265
  %v1079 = vunpack.c.l.b16 %v266
  %v1080 = vunpack.c.h.b16 %v266
  %v1081 = vunpack.c.l.b16 %v267
  %v1082 = vunpack.c.h.b16 %v267
  %v1083 = vunpack.c.l.b16 %v268
  %v1084 = vunpack.c.h.b16 %v268
  %v1085 = vunpack.c.l.b16 %v269
  %v1086 = vunpack.c.h.b16 %v269
  %v1087 = vunpack.c.l.b16 %v270
  %v1088 = vunpack.c.h.b16 %v270
  %v1089 = vunpack.c.l.b16 %v271
  %v1090 = vunpack.c.h.b16 %v271
  %v1091 = vunpack.c.l.b16 %v272
  %v1092 = vunpack.c.h.b16 %v272
  %v1093 = vunpack.c.l.b16 %v273
  %v1094 = vunpack.c.h.b16 %v273
  %v1095 = vunpack.c.l.b16 %v274
  %v1096 = vunpack.c.h.b16 %v274
  %v1097 = vunpack.c.l.b16 %v275
  %v1098 = vunpack.c.h.b16 %v275
  %v1099 = vunpack.c.l.b16 %v276
  %v1100 = vunpack.c.h.b16 %v276
  %v1101 = vunpack.c.l.b16 %v277
  %v1102 = vunpack.c.h.b16 %v277
  %v1103 = vunpack.c.l.b16 %v278
  %v1104 = vunpack.c.h.b16 %v278
  %v1105 = vunpack.c.l.b16 %v279
  %v1106 = vunpack.c.h.b16 %v279
  %v1107 = vunpack.c.l.b16 %v280
  %v1108 = vunpack.c.h.b16 %v280
  %v1109 = vunpack.c.l.b16 %v281
  %v1110 = vunpack.c.h.b16 %v281
  %v1111 = vunpack.c.l.b16 %v282
  %v1112 = vunpack.c.h.b16 %v282
  %v1113 = vunpack.c.l.b16 %v283
  %v1114 = vunpack.c.h.b16 %v283
  %v1115 = vunpack.c.l.b16 %v284
  %v1116 = vunpack.c.h.b16 %v284
  %v1117 = vunpack.c.l.b16 %v285
  %v1118 = vunpack.c.h.b16 %v285
  %v1119 = vunpack.c.l.b16 %v286
  %v1120 = vunpack.c.h.b16 %v286
  %v1121 = vunpack.c.l.b16 %v287
  %v1122 = vunpack.c.h.b16 %v287
  %v1123 = vunpack.c.l.b16 %v288
  %v1124 = vunpack.c.h.b16 %v288
  %v1125 = vunpack.c.l.b16 %v289
  %v1126 = vunpack.c.h.b16 %v289
  %v1127 = vunpack.c.l.b16 %v290
  %v1128 = vunpack.c.h.b16 %v290
  %v1129 = vunpack.c.l.b16 %v291
  %v1130 = vunpack.c.h.b16 %v291
  %v1131 = vunpack.c.l.b16 %v292
  %v1132 = vunpack.c.h.b16 %v292
  %v1133 = vunpack.c.l.b16 %v293
  %v1134 = vunpack.c.h.b16 %v293
  %v1135 = vunpack.c.l.b16 %v294
  %v1136 = vunpack.c.h.b16 %v294
  %v1137 = vunpack.c.l.b16 %v295
  %v1138 = vunpack.c.h.b16 %v295
  %v1139 = vunpack.c.l.b16 %v296
  %v1140 = vunpack.c.h.b16 %v296
  %v1141 = vunpack.c.l.b16 %v297
  %v1142 = vunpack.c.h.b16 %v297
  %v1143 = vunpack.c.l.b16 %v298
  %v1144 = vunpack.c.h.b16 %v298
  %v1145 = vunpack.c.l.b16 %v299
  %v1146 = vunpack.c.h.b16 %v299
  %v1147 = vunpack.c.l.b16 %v300
  %v1148 = vunpack.c.h.b16 %v300
  %v1149 = vunpack.c.l.b16 %v301
  %v1150 = vunpack.c.h.b16 %v301
  %v1151 = vunpack.c.l.b16 %v302
  %v1152 = vunpack.c.h.b16 %v302
  %v1153 = vunpack.c.l.b16 %v303
  %v1154 = vunpack.c.h.b16 %v303
  %v1155 = vunpack.c.l.b16 %v304
  %v1156 = vunpack.c.h.b16 %v304
  %v1157 = vunpack.c.l.b16 %v305
  %v1158 = vunpack.c.h.b16 %v305
  %v1159 = vunpack.c.l.b16 %v306
  %v1160 = vunpack.c.h.b16 %v306
  %v1161 = vunpack.c.l.b16 %v307
  %v1162 = vunpack.c.h.b16 %v307
  %v1163 = vunpack.c.l.b16 %v308
  %v1164 = vunpack.c.h.b16 %v308
  %v1165 = vunpack.c.l.b16 %v309
  %v1166 = vunpack.c.h.b16 %v309
  %v1167 = vunpack.c.l.b16 %v310
  %v1168 = vunpack.c.h.b16 %v310
  %v1169 = vunpack.c.l.b16 %v311
  %v1170 = vunpack.c.h.b16 %v311
  %v1171 = vunpack.c.l.b16 %v312
  %v1172 = vunpack.c.h.b16 %v312
  %v1173 = vunpack.c.l.b16 %v313
  %v1174 = vunpack.c.h.b16 %v313
  %v1175 = vunpack.c.l.b16 %v314
  %v1176 = vunpack.c.h.b16 %v314
  %v1177 = vunpack.c.l.b16 %v315
  %v1178 = vunpack.c.h.b16 %v315
  %v1179 = vunpack.c.l.b16 %v316
  %v1180 = vunpack.c.h.b16 %v316
  %v1181 = vunpack.c.l.b16 %v317
  %v1182 = vunpack.c.h.b16 %v317
  %v1183 = vunpack.c.l.b16 %v318
  %v1184 = vunpack.c.h.b16 %v318
  %v1185 = vunpack.c.l.b16 %v319
  %v1186 = vunpack.c.h.b16 %v319
  %v1187 = vunpack.c.l.b16 %v320
  %v1188 = vunpack.c.h.b16 %v320
  %v1189 = vunpack.c.l.b16 %v321
  %v1190 = vunpack.c.h.b16 %v321
  %v1191 = vunpack.c.l.b16 %v322
  %v1192 = vunpack.c.h.b16 %v322
  %v1193 = vunpack.c.l.b16 %v323
  %v1194 = vunpack.c.h.b16 %v323
  %v1195 = vunpack.c.l.b16 %v324
  %v1196 = vunpack.c.h.b16 %v324
  %v1197 = vunpack.c.l.b16 %v325
  %v1198 = vunpack.c.h.b16 %v325
  %v1199 = vunpack.c.l.b16 %v326
  %v1200 = vunpack.c.h.b16 %v326
  %v1201 = vunpack.c.l.b16 %v327
  %v1202 = vunpack.c.h.b16 %v327
  %v1203 = vunpack.c.l.b16 %v328
  %v1204 = vunpack.c.h.b16 %v328
  %v1205 = vunpack.c.l.b16 %v329
  %v1206 = vunpack.c.h.b16 %v329
  %v1207 = vunpack.c.l.b16 %v330
  %v1208 = vunpack.c.h.b16 %v330
  %v1209 = vunpack.c.l.b16 %v331
  %v1210 = vunpack.c.h.b16 %v331
  %v1211 = vunpack.c.l.b16 %v332
  %v1212 = vunpack.c.h.b16 %v332
  %v1213 = vunpack.c.l.b16 %v333
  %v1214 = vunpack.c.h.b16 %v333
  %v1215 = vunpack.c.l.b16 %v334
  %v1216 = vunpack.c.h.b16 %v334
  %v1217 = vunpack.c.l.b16 %v335
  %v1218 = vunpack.c.h.b16 %v335
  %v1219 = vunpack.c.l.b16 %v336
  %v1220 = vunpack.c.h.b16 %v336
  %v1221 = vunpack.c.l.b16 %v337
  %v1222 = vunpack.c.h.b16 %v337
  %v1223 = vunpack.c.l.b16 %v338
  %v1224 = vunpack.c.h.b16 %v338
  %v1225 = vunpack.c.l.b16 %v339
  %v1226 = vunpack.c.h.b16 %v339
  %v1227 = vunpack.c.l.b16 %v340
  %v1228 = vunpack.c.h.b16 %v340
  %v1229 = vunpack.c.l.b16 %v341
  %v1230 = vunpack.c.h.b16 %v341
  %v1231 = vunpack.c.l.b16 %v342
  %v1232 = vunpack.c.h.b16 %v342
  %v1233 = vunpack.c.l.b16 %v343
  %v1234 = vunpack.c.h.b16 %v343
  %v1235 = vunpack.c.l.b16 %v344
  %v1236 = vunpack.c.h.b16 %v344
  %v1237 = vunpack.c.l.b16 %v345
  %v1238 = vunpack.c.h.b16 %v345
  %v1239 = vunpack.c.l.b16 %v346
  %v1240 = vunpack.c.h.b16 %v346
  %v1241 = vunpack.c.l.b16 %v347
  %v1242 = vunpack.c.h.b16 %v347
  %v1243 = vunpack.c.l.b16 %v348
  %v1244 = vunpack.c.h.b16 %v348
  %v1245 = vunpack.c.l.b16 %v349
  %v1246 = vunpack.c.h.b16 %v349
  %v1247 = vunpack.c.l.b16 %v350
  %v1248 = vunpack.c.h.b16 %v350
  %v1249 = vunpack.c.l.b16 %v351
  %v1250 = vunpack.c.h.b16 %v351
  %v1251 = vunpack.c.l.b16 %v352
  %v1252 = vunpack.c.h.b16 %v352
  %v1253 = vunpack.c.l.b16 %v353
  %v1254 = vunpack.c.h.b16 %v353
  %v1255 = vunpack.c.l.b16 %v354
  %v1256 = vunpack.c.h.b16 %v354
  %v1257 = vunpack.c.l.b16 %v355
  %v1258 = vunpack.c.h.b16 %v355
  %v1259 = vunpack.c.l.b16 %v356
  %v1260 = vunpack.c.h.b16 %v356
  %v1261 = vunpack.c.l.b16 %v357
  %v1262 = vunpack.c.h.b16 %v357
  %v1263 = vunpack.c.l.b16 %v358
  %v1264 = vunpack.c.h.b16 %v358
  %v1265 = vunpack.c.l.b16 %v359
  %v1266 = vunpack.c.h.b16 %v359
  %v1267 = vunpack.c.l.b16 %v360
  %v1268 = vunpack.c.h.b16 %v360
  %v1269 = vunpack.c.l.b16 %v361
  %v1270 = vunpack.c.h.b16 %v361
  %v1271 = vunpack.c.l.b16 %v362
  %v1272 = vunpack.c.h.b16 %v362
  %v1273 = vunpack.c.l.b16 %v363
  %v1274 = vunpack.c.h.b16 %v363
  %v1275 = vunpack.c.l.b16 %v364
  %v1276 = vunpack.c.h.b16 %v364
  %v1277 = vunpack.c.l.b16 %v365
  %v1278 = vunpack.c.h.b16 %v365
  %v1279 = vunpack.c.l.b16 %v366
  %v1280 = vunpack.c.h.b16 %v366
  %v1281 = vunpack.c.l.b16 %v367
  %v1282 = vunpack.c.h.b16 %v367
  %v1283 = vunpack.c.l.b16 %v368
  %v1284 = vunpack.c.h.b16 %v368
  %v1285 = vunpack.c.l.b16 %v369
  %v1286 = vunpack.c.h.b16 %v369
  %v1287 = vunpack.c.l.b16 %v370
  %v1288 = vunpack.c.h.b16 %v370
  %v1289 = vunpack.c.l.b16 %v371
  %v1290 = vunpack.c.h.b16 %v371
  %v1291 = vunpack.c.l.b16 %v372
  %v1292 = vunpack.c.h.b16 %v372
  %v1293 = vunpack.c.l.b16 %v373
  %v1294 = vunpack.c.h.b16 %v373
  %v1295 = vunpack.c.l.b16 %v374
  %v1296 = vunpack.c.h.b16 %v374
  %v1297 = vunpack.c.l.b16 %v375
  %v1298 = vunpack.c.h.b16 %v375
  %v1299 = vunpack.c.l.b16 %v376
  %v1300 = vunpack.c.h.b16 %v376
  %v1301 = vunpack.c.l.b16 %v377
  %v1302 = vunpack.c.h.b16 %v377
  %v1303 = vunpack.c.l.b16 %v378
  %v1304 = vunpack.c.h.b16 %v378
  %v1305 = vunpack.c.l.b16 %v379
  %v1306 = vunpack.c.h.b16 %v379
  %v1307 = vunpack.c.l.b16 %v380
  %v1308 = vunpack.c.h.b16 %v380
  %v1309 = vpack.c.b16 %v745, %v733
  %v1310 = vpack.c.b16 %v746, %v734
  %v1311 = vpack.c.b16 %v747, %v735
  %v1312 = vpack.c.b16 %v748, %v736
  %v1313 = vpack.c.b16 %v749, %v737
  %v1314 = vpack.c.b16 %v750, %v738
  %v1315 = vpack.c.b16 %v751, %v739
  %v1316 = vpack.c.b16 %v752, %v740
  %v1317 = vpack.c.b16 %v753, %v741
  %v1318 = vpack.c.b16 %v754, %v742
  %v1319 = vpack.c.b16 %v755, %v743
  %v1320 = vpack.c.b16 %v756, %v744
  %v1321 = vpack.c.b16 %v769, %v757
  %v1322 = vpack.c.b16 %v770, %v758
  %v1323 = vpack.c.b16 %v771, %v759
  %v1324 = vpack.c.b16 %v772, %v760
  %v1325 = vpack.c.b16 %v773, %v761
  %v1326 = vpack.c.b16 %v774, %v762
  %v1327 = vpack.c.b16 %v775, %v763
  %v1328 = vpack.c.b16 %v776, %v764
  %v1329 = vpack.c.b16 %v777, %v765
  %v1330 = vpack.c.b16 %v778, %v766
  %v1331 = vpack.c.b16 %v779, %v767
  %v1332 = vpack.c.b16 %v780, %v768
  %v1333 = vpack.c.b16 %v793, %v781
  %v1334 = vpack.c.b16 %v794, %v782
  %v1335 = vpack.c.b16 %v795, %v783
  %v1336 = vpack.c.b16 %v796, %v784
  %v1337 = vpack.c.b16 %v797, %v785
  %v1338 = vpack.c.b16 %v798, %v786
  %v1339 = vpack.c.b16 %v799, %v787
  %v1340 = vpack.c.b16 %v800, %v788
  %v1341 = vpack.c.b16 %v801, %v789
  %v1342 = vpack.c.b16 %v802, %v790
  %v1343 = vpack.c.b16 %v803, %v791
  %v1344 = vpack.c.b16 %v804, %v792
  %v1345 = vpack.c.b16 %v817, %v805
  %v1346 = vpack.c.b16 %v818, %v806
  %v1347 = vpack.c.b16 %v819, %v807
  %v1348 = vpack.c.b16 %v820, %v808
  %v1349 = vpack.c.b16 %v821, %v809
  %v1350 = vpack.c.b16 %v822, %v810
  %v1351 = vpack.c.b16 %v823, %v811
  %v1352 = vpack.c.b16 %v824, %v812
  %v1353 = vpack.c.b16 %v825, %v813
  %v1354 = vpack.c.b16 %v826, %v814
  %v1355 = vpack.c.b16 %v827, %v815
  %v1356 = vpack.c.b16 %v828, %v816
  %v1357 = vpack.c.b16 %v841, %v829
  %v1358 = vpack.c.b16 %v842, %v830
  %v1359 = vpack.c.b16 %v843, %v831
  %v1360 = vpack.c.b16 %v844, %v832
  %v1361 = vpack.c.b16 %v845, %v833
  %v1362 = vpack.c.b16 %v846, %v834
  %v1363 = vpack.c.b16 %v847, %v835
  %v1364 = vpack.c.b16 %v848, %v836
  %v1365 = vpack.c.b16 %v849, %v837
  %v1366 = vpack.c.b16 %v850, %v838
  %v1367 = vpack.c.b16 %v851, %v839
  %v1368 = vpack.c.b16 %v852, %v840
  %v1369 = vpack.c.b16 %v865, %v853
  %v1370 = vpack.c.b16 %v866, %v854
  %v1371 = vpack.c.b16 %v867, %v855
  %v1372 = vpack.c.b16 %v868, %v856
  %v1373 = vpack.c.b16 %v869, %v857
  %v1374 = vpack.c.b16 %v870, %v858
  %v1375 = vpack.c.b16 %v871, %v859
  %v1376 = vpack.c.b16 %v872, %v860
  %v1377 = vpack.c.b16 %v873, %v861
  %v1378 = vpack.c.b16 %v874, %v862
  %v1379 = vpack.c.b16 %v875, %v863
  %v1380 = vpack.c.b16 %v876, %v864
  %v1381 = vpack.c.b16 %v889, %v877
  %v1382 = vpack.c.b16 %v890, %v878
  %v1383 = vpack.c.b16 %v891, %v879
  %v1384 = vpack.c.b16 %v892, %v880
  %v1385 = vpack.c.b16 %v893, %v881
  %v1386 = vpack.c.b16 %v894, %v882
  %v1387 = vpack.c.b16 %v895, %v883
  %v1388 = vpack.c.b16 %v896, %v884
  %v1389 = vpack.c.b16 %v897, %v885
  %v1390 = vpack.c.b16 %v898, %v886
  %v1391 = vpack.c.b16 %v899, %v887
  %v1392 = vpack.c.b16 %v900, %v888
  %v1393 = vpack.c.b16 %v913, %v901
  %v1394 = vpack.c.b16 %v914, %v902
  %v1395 = vpack.c.b16 %v915, %v903
  %v1396 = vpack.c.b16 %v916, %v904
  %v1397 = vpack.c.b16 %v917, %v905
  %v1398 = vpack.c.b16 %v918, %v906
  %v1399 = vpack.c.b16 %v919, %v907
  %v1400 = vpack.c.b16 %v920, %v908
  %v1401 = vpack.c.b16 %v921, %v909
  %v1402 = vpack.c.b16 %v922, %v910
  %v1403 = vpack.c.b16 %v923, %v911
  %v1404 = vpack.c.b16 %v924, %v912
  %v1405 = vpack.c.b16 %v937, %v925
  %v1406 = vpack.c.b16 %v938, %v926
  %v1407 = vpack.c.b16 %v939, %v927
  %v1408 = vpack.c.b16 %v940, %v928
  %v1409 = vpack.c.b16 %v941, %v929
  %v1410 = vpack.c.b16 %v942, %v930
  %v1411 = vpack.c.b16 %v943, %v931
  %v1412 = vpack.c.b16 %v944, %v932
  %v1413 = vpack.c.b16 %v945, %v933
  %v1414 = vpack.c.b16 %v946, %v934
  %v1415 = vpack.c.b16 %v947, %v935
  %v1416 = vpack.c.b16 %v948, %v936
  %v1417 = vpack.c.b16 %v961, %v949
  %v1418 = vpack.c.b16 %v962, %v950
  %v1419 = vpack.c.b16 %v963, %v951
  %v1420 = vpack.c.b16 %v964, %v952
  %v1421 = vpack.c.b16 %v965, %v953
  %v1422 = vpack.c.b16 %v966, %v954
  %v1423 = vpack.c.b16 %v967, %v955
  %v1424 = vpack.c.b16 %v968, %v956
  %v1425 = vpack.c.b16 %v969, %v957
  %v1426 = vpack.c.b16 %v970, %v958
  %v1427 = vpack.c.b16 %v971, %v959
  %v1428 = vpack.c.b16 %v972, %v960
  %v1429 = vpack.c.b16 %v985, %v973
  %v1430 = vpack.c.b16 %v986, %v974
  %v1431 = vpack.c.b16 %v987, %v975
  %v1432 = vpack.c.b16 %v988, %v976
  %v1433 = vpack.c.b16 %v989, %v977
  %v1434 = vpack.c.b16 %v990, %v978
  %v1435 = vpack.c.b16 %v991, %v979
  %v1436 = vpack.c.b16 %v992, %v980
  %v1437 = vpack.c.b16 %v993, %v981
  %v1438 = vpack.c.b16 %v994, %v982
  %v1439 = vpack.c.b16 %v995, %v983
  %v1440 = vpack.c.b16 %v996, %v984
  %v1441 = vpack.c.b16 %v1009, %v997
  %v1442 = vpack.c.b16 %v1010, %v998
  %v1443 = vpack.c.b16 %v1011, %v999
  %v1444 = vpack.c.b16 %v1012, %v1000
  %v1445 = vpack.c.b16 %v1013, %v1001
  %v1446 = vpack.c.b16 %v1014, %v1002
  %v1447 = vpack.c.b16 %v1015, %v1003
  %v1448 = vpack.c.b16 %v1016, %v1004
  %v1449 = vpack.c.b16 %v1017, %v1005
  %v1450 = vpack.c.b16 %v1018, %v1006
  %v1451 = vpack.c.b16 %v1019, %v1007
  %v1452 = vpack.c.b16 %v1020, %v1008
  %v1453 = vpack.c.b16 %v1033, %v1021
  %v1454 = vpack.c.b16 %v1034, %v1022
  %v1455 = vpack.c.b16 %v1035, %v1023
  %v1456 = vpack.c.b16 %v1036, %v1024
  %v1457 = vpack.c.b16 %v1037, %v1025
  %v1458 = vpack.c.b16 %v1038, %v1026
  %v1459 = vpack.c.b16 %v1039, %v1027
  %v1460 = vpack.c.b16 %v1040, %v1028
  %v1461 = vpack.c.b16 %v1041, %v1029
  %v1462 = vpack.c.b16 %v1042, %v1030
  %v1463 = vpack.c.b16 %v1043, %v1031
  %v1464 = vpack.c.b16 %v1044, %v1032
  %v1465 = vpack.c.b16 %v1057, %v1045
  %v1466 = vpack.c.b16 %v1058, %v1046
  %v1467 = vpack.c.b16 %v1059, %v1047
  %v1468 = vpack.c.b16 %v1060, %v1048
  %v1469 = vpack.c.b16 %v1061, %v1049
  %v1470 = vpack.c.b16 %v1062, %v1050
  %v1471 = vpack.c.b16 %v1063, %v1051
  %v1472 = vpack.c.b16 %v1064, %v1052
  %v1473 = vpack.c.b16 %v1065, %v1053
  %v1474 = vpack.c.b16 %v1066, %v1054
  %v1475 = vpack.c.b16 %v1067, %v1055
  %v1476 = vpack.c.b16 %v1068, %v1056
  %v1477 = vpack.c.b16 %v1081, %v1069
  %v1478 = vpack.c.b16 %v1082, %v1070
  %v1479 = vpack.c.b16 %v1083, %v1071
  %v1480 = vpack.c.b16 %v1084, %v1072
  %v1481 = vpack.c.b16 %v1085, %v1073
  %v1482 = vpack.c.b16 %v1086, %v1074
  %v1483 = vpack.c.b16 %v1087, %v1075
  %v1484 = vpack.c.b16 %v1088, %v1076
  %v1485 = vpack.c.b16 %v1089, %v1077
  %v1486 = vpack.c.b16 %v1090, %v1078
  %v1487 = vpack.c.b16 %v1091, %v1079
  %v1488 = vpack.c.b16 %v1092, %v1080
  %v1489 = vpack.c.b16 %v1105, %v1093
  %v1490 = vpack.c.b16 %v1106, %v1094
  %v1491 = vpack.c.b16 %v1107, %v1095
  %v1492 = vpack.c.b16 %v1108, %v1096
  %v1493 = vpack.c.b16 %v1109, %v1097
  %v1494 = vpack.c.b16 %v1110, %v1098
  %v1495 = vpack.c.b16 %v1111, %v1099
  %v1496 = vpack.c.b16 %v1112, %v1100
  %v1497 = vpack.c.b16 %v1113, %v1101
  %v1498 = vpack.c.b16 %v1114, %v1102
  %v1499 = vpack.c.b16 %v1115, %v1103
  %v1500 = vpack.c.b16 %v1116, %v1104
  %v1501 = vpack.c.b16 %v1129, %v1117
  %v1502 = vpack.c.b16 %v1130, %v1118
  %v1503 = vpack.c.b16 %v1131, %v1119
  %v1504 = vpack.c.b16 %v1132, %v1120
  %v1505 = vpack.c.b16 %v1133, %v1121
  %v1506 = vpack.c.b16 %v1134, %v1122
  %v1507 = vpack.c.b16 %v1135, %v1123
  %v1508 = vpack.c.b16 %v1136, %v1124
  %v1509 = vpack.c.b16 %v1137, %v1125
  %v1510 = vpack.c.b16 %v1138, %v1126
  %v1511 = vpack.c.b16 %v1139, %v1127
  %v1512 = vpack.c.b16 %v1140, %v1128
  %v1513 = vpack.c.b16 %v1153, %v1141
  %v1514 = vpack.c.b16 %v1154, %v1142
  %v1515 = vpack.c.b16 %v1155, %v1143
  %v1516 = vpack.c.b16 %v1156, %v1144
  %v1517 = vpack.c.b16 %v1157, %v1145
  %v1518 = vpack.c.b16 %v1158, %v1146
  %v1519 = vpack.c.b16 %v1159, %v1147
  %v1520 = vpack.c.b16 %v1160, %v1148
  %v1521 = vpack.c.b16 %v1161, %v1149
  %v1522 = vpack.c.b16 %v1162, %v1150
  %v1523 = vpack.c.b16 %v1163, %v1151
  %v1524 = vpack.c.b16 %v1164, %v1152
  %v1525 = vpack.c.b16 %v1177, %v1165
  %v1526 = vpack.c.b16 %v1178, %v1166
  %v1527 = vpack.c.b16 %v1179, %v1167
  %v1528 = vpack.c.b16 %v1180, %v1168
  %v1529 = vpack.c.b16 %v1181, %v1169
  %v1530 = vpack.c.b16 %v1182, %v1170
  %v1531 = vpack.c.b16 %v1183, %v1171
  %v1532 = vpack.c.b16 %v1184, %v1172
  %v1533 = vpack.c.b16 %v1185, %v1173
  %v1534 = vpack.c.b16 %v1186, %v1174
  %v1535 = vpack.c.b16 %v1187, %v1175
  %v1536 = vpack.c.b16 %v1188, %v1176
  %v1537 = vpack.c.b16 %v1201, %v1189
  %v1538 = vpack.c.b16 %v1202, %v1190
  %v1539 = vpack.c.b16 %v1203, %v1191
  %v1540 = vpack.c.b16 %v1204, %v1192
  %v1541 = vpack.c.b16 %v1205, %v1193
  %v1542 = vpack.c.b16 %v1206, %v1194
  %v1543 = vpack.c.b16 %v1207, %v1195
  %v1544 = vpack.c.b16 %v1208, %v1196
  %v1545 = vpack.c.b16 %v1209, %v1197
  %v1546 = vpack.c.b16 %v1210, %v1198
  %v1547 = vpack.c.b16 %v1211, %v1199
  %v1548 = vpack.c.b16 %v1212, %v1200
  %v1549 = vpack.c.b16 %v1225, %v1213
  %v1550 = vpack.c.b16 %v1226, %v1214
  %v1551 = vpack.c.b16 %v1227, %v1215
  %v1552 = vpack.c.b16 %v1228, %v1216
  %v1553 = vpack.c.b16 %v1229, %v1217
  %v1554 = vpack.c.b16 %v1230, %v1218
  %v1555 = vpack.c.b16 %v1231, %v1219
  %v1556 = vpack.c.b16 %v1232, %v1220
  %v1557 = vpack.c.b16 %v1233, %v1221
  %v1558 = vpack.c.b16 %v1234, %v1222
  %v1559 = vpack.c.b16 %v1235, %v1223
  %v1560 = vpack.c.b16 %v1236, %v1224
  %v1561 = vpack.c.b16 %v1249, %v1237
  %v1562 = vpack.c.b16 %v1250, %v1238
  %v1563 = vpack.c.b16 %v1251, %v1239
  %v1564 = vpack.c.b16 %v1252, %v1240
  %v1565 = vpack.c.b16 %v1253, %v1241
  %v1566 = vpack.c.b16 %v1254, %v1242
  %v1567 = vpack.c.b16 %v1255, %v1243
  %v1568 = vpack.c.b16 %v1256, %v1244
  %v1569 = vpack.c.b16 %v1257, %v1245
  %v1570 = vpack.c.b16 %v1258, %v1246
  %v1571 = vpack.c.b16 %v1259, %v1247
  %v1572 = vpack.c.b16 %v1260, %v1248
  %v1573 = vpack.c.b16 %v1273, %v1261
  %v1574 = vpack.c.b16 %v1274, %v1262
  %v1575 = vpack.c.b16 %v1275, %v1263
  %v1576 = vpack.c.b16 %v1276, %v1264
  %v1577 = vpack.c.b16 %v1277, %v1265
  %v1578 = vpack.c.b16 %v1278, %v1266
  %v1579 = vpack.c.b16 %v1279, %v1267
  %v1580 = vpack.c.b16 %v1280, %v1268
  %v1581 = vpack.c.b16 %v1281, %v1269
  %v1582 = vpack.c.b16 %v1282, %v1270
  %v1583 = vpack.c.b16 %v1283, %v1271
  %v1584 = vpack.c.b16 %v1284, %v1272
  %v1585 = vpack.c.b16 %v1297, %v1285
  %v1586 = vpack.c.b16 %v1298, %v1286
  %v1587 = vpack.c.b16 %v1299, %v1287
  %v1588 = vpack.c.b16 %v1300, %v1288
  %v1589 = vpack.c.b16 %v1301, %v1289
  %v1590 = vpack.c.b16 %v1302, %v1290
  %v1591 = vpack.c.b16 %v1303, %v1291
  %v1592 = vpack.c.b16 %v1304, %v1292
  %v1593 = vpack.c.b16 %v1305, %v1293
  %v1594 = vpack.c.b16 %v1306, %v1294
  %v1595 = vpack.c.b16 %v1307, %v1295
  %v1596 = vpack.c.b16 %v1308, %v1296
  %1885 = vmatprep.subr.bf16.mxu0 %v1394
  %1886 = vmatpush1.bf16.msra.mxu0 %v1393
  %1887 = vmatprep.subr.bf16.mxu0 %v1382
  %1888 = vmatpush1.bf16.msra.mxu0 %v1381
  %1889 = vmatprep.subr.bf16.mxu0 %v1370
  %1890 = vmatpush1.bf16.msra.mxu0 %v1369
  %1891 = vmatprep.subr.bf16.mxu0 %v1358
  %1892 = vmatpush1.bf16.msra.mxu0 %v1357
  %1893 = vmatprep.subr.bf16.mxu0 %v1346
  %1894 = vmatpush1.bf16.msra.mxu0 %v1345
  %1895 = vmatprep.subr.bf16.mxu0 %v1334
  %1896 = vmatpush1.bf16.msra.mxu0 %v1333
  %1897 = vmatprep.subr.bf16.mxu0 %v1322
  %1898 = vmatpush1.bf16.msra.mxu0 %v1321
  %1899 = vmatprep.subr.bf16.mxu0 %v1310
  %1900 = vmatpush1.bf16.msra.mxu0 %v1309
  %1901 = vmatprep.subr.bf16.mxu0 %v1490
  %1902 = vmatpush2.bf16.msra.mxu0 %v1489
  %1903 = vmatprep.subr.bf16.mxu0 %v1478
  %1904 = vmatpush2.bf16.msra.mxu0 %v1477
  %1905 = vmatprep.subr.bf16.mxu0 %v1466
  %1906 = vmatpush2.bf16.msra.mxu0 %v1465
  %1907 = vmatprep.subr.bf16.mxu0 %v1454
  %1908 = vmatpush2.bf16.msra.mxu0 %v1453
  %1909 = vmatprep.subr.bf16.mxu0 %v1442
  %1910 = vmatpush2.bf16.msra.mxu0 %v1441
  %1911 = vmatprep.subr.bf16.mxu0 %v1430
  %1912 = vmatpush2.bf16.msra.mxu0 %v1429
  %1913 = vmatprep.subr.bf16.mxu0 %v1418
  %1914 = vmatpush2.bf16.msra.mxu0 %v1417
  %1915 = vmatprep.subr.bf16.mxu0 %v1406
  %1916 = vmatpush2.bf16.msra.mxu0 %v1405
  %1917 = vmatprep.mubr.bf16.mxu0 %v70
  %1918 = vmatmul.mubr.bf16.gmra.mxu0 %v69
  %v1919 = vpop.f32.mrf.mxu0
  %v1920 = vadd.f32 %v388, %v1919
  %v1921 = vpop.f32.mrf.mxu0
  %v1922 = vadd.f32 %v392, %v1921
  %v1923 = vpop.f32.mrf.mxu0
  %v1924 = vadd.f32 %v388, %v1923
  %v1925 = vpop.f32.mrf.mxu0
  %v1926 = vadd.f32 %v392, %v1925
  %1927 = vmatprep.mubr.bf16.mxu0 %v73
  %1928 = vmatmul.mubr.bf16.gmra.mxu0 %v72
  %v1929 = vpop.f32.mrf.mxu0
  %v1930 = vadd.f32 %v388, %v1929
  %v1931 = vpop.f32.mrf.mxu0
  %v1932 = vadd.f32 %v392, %v1931
  %v1933 = vpop.f32.mrf.mxu0
  %v1934 = vadd.f32 %v388, %v1933
  %v1935 = vpop.f32.mrf.mxu0
  %v1936 = vadd.f32 %v392, %v1935
  %1937 = vmatprep.mubr.bf16.mxu0 %v76
  %1938 = vmatmul.mubr.bf16.gmra.mxu0 %v75
  %v1939 = vpop.f32.mrf.mxu0
  %v1940 = vadd.f32 %v388, %v1939
  %v1941 = vpop.f32.mrf.mxu0
  %v1942 = vadd.f32 %v392, %v1941
  %v1943 = vpop.f32.mrf.mxu0
  %v1944 = vadd.f32 %v388, %v1943
  %v1945 = vpop.f32.mrf.mxu0
  %v1946 = vadd.f32 %v392, %v1945
  %1947 = vmatprep.mubr.bf16.mxu0 %v79
  %1948 = vmatmul.mubr.bf16.gmra.mxu0 %v78
  %v1949 = vpop.f32.mrf.mxu0
  %v1950 = vadd.f32 %v388, %v1949
  %v1951 = vpop.f32.mrf.mxu0
  %v1952 = vadd.f32 %v392, %v1951
  %v1953 = vpop.f32.mrf.mxu0
  %v1954 = vadd.f32 %v388, %v1953
  %v1955 = vpop.f32.mrf.mxu0
  %v1956 = vadd.f32 %v392, %v1955
  %1957 = vmatprep.mubr.bf16.mxu0 %v82
  %1958 = vmatmul.mubr.bf16.gmra.mxu0 %v81
  %v1959 = vpop.f32.mrf.mxu0
  %v1960 = vadd.f32 %v388, %v1959
  %v1961 = vpop.f32.mrf.mxu0
  %v1962 = vadd.f32 %v392, %v1961
  %v1963 = vpop.f32.mrf.mxu0
  %v1964 = vadd.f32 %v388, %v1963
  %v1965 = vpop.f32.mrf.mxu0
  %v1966 = vadd.f32 %v392, %v1965
  %1967 = vmatprep.mubr.bf16.mxu0 %v85
  %1968 = vmatmul.mubr.bf16.gmra.mxu0 %v84
  %v1969 = vpop.f32.mrf.mxu0
  %v1970 = vadd.f32 %v388, %v1969
  %v1971 = vpop.f32.mrf.mxu0
  %v1972 = vadd.f32 %v392, %v1971
  %v1973 = vpop.f32.mrf.mxu0
  %v1974 = vadd.f32 %v388, %v1973
  %v1975 = vpop.f32.mrf.mxu0
  %v1976 = vadd.f32 %v392, %v1975
  %1977 = vmatprep.mubr.bf16.mxu0 %v88
  %1978 = vmatmul.mubr.bf16.gmra.mxu0 %v87
  %v1979 = vpop.f32.mrf.mxu0
  %v1980 = vadd.f32 %v388, %v1979
  %v1981 = vpop.f32.mrf.mxu0
  %v1982 = vadd.f32 %v392, %v1981
  %v1983 = vpop.f32.mrf.mxu0
  %v1984 = vadd.f32 %v388, %v1983
  %v1985 = vpop.f32.mrf.mxu0
  %v1986 = vadd.f32 %v392, %v1985
  %1987 = vmatprep.mubr.bf16.mxu0 %v91
  %1988 = vmatmul.mubr.bf16.gmra.mxu0 %v90
  %v1989 = vpop.f32.mrf.mxu0
  %v1990 = vadd.f32 %v388, %v1989
  %v1991 = vpop.f32.mrf.mxu0
  %v1992 = vadd.f32 %v392, %v1991
  %v1993 = vpop.f32.mrf.mxu0
  %v1994 = vadd.f32 %v388, %v1993
  %v1995 = vpop.f32.mrf.mxu0
  %v1996 = vadd.f32 %v392, %v1995
  %1997 = vdwg.mxu0
  %1998 = vmatprep.subr.bf16.mxu0 %v1586
  %1999 = vmatpush1.bf16.msra.mxu0 %v1585
  %2000 = vmatprep.subr.bf16.mxu0 %v1574
  %2001 = vmatpush1.bf16.msra.mxu0 %v1573
  %2002 = vmatprep.subr.bf16.mxu0 %v1562
  %2003 = vmatpush1.bf16.msra.mxu0 %v1561
  %2004 = vmatprep.subr.bf16.mxu0 %v1550
  %2005 = vmatpush1.bf16.msra.mxu0 %v1549
  %2006 = vmatprep.subr.bf16.mxu0 %v1538
  %2007 = vmatpush1.bf16.msra.mxu0 %v1537
  %2008 = vmatprep.subr.bf16.mxu0 %v1526
  %2009 = vmatpush1.bf16.msra.mxu0 %v1525
  %2010 = vmatprep.subr.bf16.mxu0 %v1514
  %2011 = vmatpush1.bf16.msra.mxu0 %v1513
  %2012 = vmatprep.subr.bf16.mxu0 %v1502
  %2013 = vmatpush1.bf16.msra.mxu0 %v1501
  %2014 = vmatprep.subr.bf16.mxu0 0
  %2015 = vmatpush2.bf16.msra.mxu0 0
  %2016 = vmatprep.subr.bf16.mxu0 0
  %2017 = vmatpush2.bf16.msra.mxu0 0
  %2018 = vmatprep.subr.bf16.mxu0 0
  %2019 = vmatpush2.bf16.msra.mxu0 0
  %2020 = vmatprep.subr.bf16.mxu0 0
  %2021 = vmatpush2.bf16.msra.mxu0 0
  %2022 = vmatprep.subr.bf16.mxu0 0
  %2023 = vmatpush2.bf16.msra.mxu0 0
  %2024 = vmatprep.subr.bf16.mxu0 0
  %2025 = vmatpush2.bf16.msra.mxu0 0
  %2026 = vmatprep.subr.bf16.mxu0 0
  %2027 = vmatpush2.bf16.msra.mxu0 0
  %2028 = vmatprep.subr.bf16.mxu0 0
  %2029 = vmatpush2.bf16.msra.mxu0 0
  %2030 = vmatprep.mubr.bf16.mxu0 0
  %2031 = vmatmul.mubr.bf16.gmra.mxu0 %v71
  %v2032 = vpop.f32.mrf.mxu0
  %v2033 = vadd.f32 %v1920, %v2032
  %v2034 = vpop.f32.mrf.mxu0
  %v2035 = vadd.f32 %v1922, %v2034
  %v2036 = vpop.f32.mrf.mxu0
  %v2037 = vadd.f32 %v1924, %v2036
  %v2038 = vpop.f32.mrf.mxu0
  %v2039 = vadd.f32 %v1926, %v2038
  %2040 = vmatprep.mubr.bf16.mxu0 0
  %2041 = vmatmul.mubr.bf16.gmra.mxu0 %v74
  %v2042 = vpop.f32.mrf.mxu0
  %v2043 = vadd.f32 %v1930, %v2042
  %v2044 = vpop.f32.mrf.mxu0
  %v2045 = vadd.f32 %v1932, %v2044
  %v2046 = vpop.f32.mrf.mxu0
  %v2047 = vadd.f32 %v1934, %v2046
  %v2048 = vpop.f32.mrf.mxu0
  %v2049 = vadd.f32 %v1936, %v2048
  %2050 = vmatprep.mubr.bf16.mxu0 0
  %2051 = vmatmul.mubr.bf16.gmra.mxu0 %v77
  %v2052 = vpop.f32.mrf.mxu0
  %v2053 = vadd.f32 %v1940, %v2052
  %v2054 = vpop.f32.mrf.mxu0
  %v2055 = vadd.f32 %v1942, %v2054
  %v2056 = vpop.f32.mrf.mxu0
  %v2057 = vadd.f32 %v1944, %v2056
  %v2058 = vpop.f32.mrf.mxu0
  %v2059 = vadd.f32 %v1946, %v2058
  %2060 = vmatprep.mubr.bf16.mxu0 0
  %2061 = vmatmul.mubr.bf16.gmra.mxu0 %v80
  %v2062 = vpop.f32.mrf.mxu0
  %v2063 = vadd.f32 %v1950, %v2062
  %v2064 = vpop.f32.mrf.mxu0
  %v2065 = vadd.f32 %v1952, %v2064
  %v2066 = vpop.f32.mrf.mxu0
  %v2067 = vadd.f32 %v1954, %v2066
  %v2068 = vpop.f32.mrf.mxu0
  %v2069 = vadd.f32 %v1956, %v2068
  %2070 = vmatprep.mubr.bf16.mxu0 0
  %2071 = vmatmul.mubr.bf16.gmra.mxu0 %v83
  %v2072 = vpop.f32.mrf.mxu0
  %v2073 = vadd.f32 %v1960, %v2072
  %v2074 = vpop.f32.mrf.mxu0
  %v2075 = vadd.f32 %v1962, %v2074
  %v2076 = vpop.f32.mrf.mxu0
  %v2077 = vadd.f32 %v1964, %v2076
  %v2078 = vpop.f32.mrf.mxu0
  %v2079 = vadd.f32 %v1966, %v2078
  %2080 = vmatprep.mubr.bf16.mxu0 0
  %2081 = vmatmul.mubr.bf16.gmra.mxu0 %v86
  %v2082 = vpop.f32.mrf.mxu0
  %v2083 = vadd.f32 %v1970, %v2082
  %v2084 = vpop.f32.mrf.mxu0
  %v2085 = vadd.f32 %v1972, %v2084
  %v2086 = vpop.f32.mrf.mxu0
  %v2087 = vadd.f32 %v1974, %v2086
  %v2088 = vpop.f32.mrf.mxu0
  %v2089 = vadd.f32 %v1976, %v2088
  %2090 = vmatprep.mubr.bf16.mxu0 0
  %2091 = vmatmul.mubr.bf16.gmra.mxu0 %v89
  %v2092 = vpop.f32.mrf.mxu0
  %v2093 = vadd.f32 %v1980, %v2092
  %v2094 = vpop.f32.mrf.mxu0
  %v2095 = vadd.f32 %v1982, %v2094
  %v2096 = vpop.f32.mrf.mxu0
  %v2097 = vadd.f32 %v1984, %v2096
  %v2098 = vpop.f32.mrf.mxu0
  %v2099 = vadd.f32 %v1986, %v2098
  %2100 = vmatprep.mubr.bf16.mxu0 0
  %2101 = vmatmul.mubr.bf16.gmra.mxu0 %v92
  %v2102 = vpop.f32.mrf.mxu0
  %v2103 = vadd.f32 %v1990, %v2102
  %v2104 = vpop.f32.mrf.mxu0
  %v2105 = vadd.f32 %v1992, %v2104
  %v2106 = vpop.f32.mrf.mxu0
  %v2107 = vadd.f32 %v1994, %v2106
  %v2108 = vpop.f32.mrf.mxu0
  %v2109 = vadd.f32 %v1996, %v2108
  %2110 = vdwg.mxu0
  %2111 = vmatprep.subr.bf16.mxu0 %v1396
  %2112 = vmatpush1.bf16.msra.mxu0 %v1395
  %2113 = vmatprep.subr.bf16.mxu0 %v1384
  %2114 = vmatpush1.bf16.msra.mxu0 %v1383
  %2115 = vmatprep.subr.bf16.mxu0 %v1372
  %2116 = vmatpush1.bf16.msra.mxu0 %v1371
  %2117 = vmatprep.subr.bf16.mxu0 %v1360
  %2118 = vmatpush1.bf16.msra.mxu0 %v1359
  %2119 = vmatprep.subr.bf16.mxu0 %v1348
  %2120 = vmatpush1.bf16.msra.mxu0 %v1347
  %2121 = vmatprep.subr.bf16.mxu0 %v1336
  %2122 = vmatpush1.bf16.msra.mxu0 %v1335
  %2123 = vmatprep.subr.bf16.mxu0 %v1324
  %2124 = vmatpush1.bf16.msra.mxu0 %v1323
  %2125 = vmatprep.subr.bf16.mxu0 %v1312
  %2126 = vmatpush1.bf16.msra.mxu0 %v1311
  %2127 = vmatprep.subr.bf16.mxu0 %v1492
  %2128 = vmatpush2.bf16.msra.mxu0 %v1491
  %2129 = vmatprep.subr.bf16.mxu0 %v1480
  %2130 = vmatpush2.bf16.msra.mxu0 %v1479
  %2131 = vmatprep.subr.bf16.mxu0 %v1468
  %2132 = vmatpush2.bf16.msra.mxu0 %v1467
  %2133 = vmatprep.subr.bf16.mxu0 %v1456
  %2134 = vmatpush2.bf16.msra.mxu0 %v1455
  %2135 = vmatprep.subr.bf16.mxu0 %v1444
  %2136 = vmatpush2.bf16.msra.mxu0 %v1443
  %2137 = vmatprep.subr.bf16.mxu0 %v1432
  %2138 = vmatpush2.bf16.msra.mxu0 %v1431
  %2139 = vmatprep.subr.bf16.mxu0 %v1420
  %2140 = vmatpush2.bf16.msra.mxu0 %v1419
  %2141 = vmatprep.subr.bf16.mxu0 %v1408
  %2142 = vmatpush2.bf16.msra.mxu0 %v1407
  %2143 = vmatprep.mubr.bf16.mxu0 %v70
  %2144 = vmatmul.mubr.bf16.gmra.mxu0 %v69
  %v2145 = vpop.f32.mrf.mxu0
  %v2146 = vadd.f32 %v396, %v2145
  %v2147 = vpop.f32.mrf.mxu0
  %v2148 = vadd.f32 %v400, %v2147
  %v2149 = vpop.f32.mrf.mxu0
  %v2150 = vadd.f32 %v396, %v2149
  %v2151 = vpop.f32.mrf.mxu0
  %v2152 = vadd.f32 %v400, %v2151
  %2153 = vmatprep.mubr.bf16.mxu0 %v73
  %2154 = vmatmul.mubr.bf16.gmra.mxu0 %v72
  %v2155 = vpop.f32.mrf.mxu0
  %v2156 = vadd.f32 %v396, %v2155
  %v2157 = vpop.f32.mrf.mxu0
  %v2158 = vadd.f32 %v400, %v2157
  %v2159 = vpop.f32.mrf.mxu0
  %v2160 = vadd.f32 %v396, %v2159
  %v2161 = vpop.f32.mrf.mxu0
  %v2162 = vadd.f32 %v400, %v2161
  %2163 = vmatprep.mubr.bf16.mxu0 %v76
  %2164 = vmatmul.mubr.bf16.gmra.mxu0 %v75
  %v2165 = vpop.f32.mrf.mxu0
  %v2166 = vadd.f32 %v396, %v2165
  %v2167 = vpop.f32.mrf.mxu0
  %v2168 = vadd.f32 %v400, %v2167
  %v2169 = vpop.f32.mrf.mxu0
  %v2170 = vadd.f32 %v396, %v2169
  %v2171 = vpop.f32.mrf.mxu0
  %v2172 = vadd.f32 %v400, %v2171
  %2173 = vmatprep.mubr.bf16.mxu0 %v79
  %2174 = vmatmul.mubr.bf16.gmra.mxu0 %v78
  %v2175 = vpop.f32.mrf.mxu0
  %v2176 = vadd.f32 %v396, %v2175
  %v2177 = vpop.f32.mrf.mxu0
  %v2178 = vadd.f32 %v400, %v2177
  %v2179 = vpop.f32.mrf.mxu0
  %v2180 = vadd.f32 %v396, %v2179
  %v2181 = vpop.f32.mrf.mxu0
  %v2182 = vadd.f32 %v400, %v2181
  %2183 = vmatprep.mubr.bf16.mxu0 %v82
  %2184 = vmatmul.mubr.bf16.gmra.mxu0 %v81
  %v2185 = vpop.f32.mrf.mxu0
  %v2186 = vadd.f32 %v396, %v2185
  %v2187 = vpop.f32.mrf.mxu0
  %v2188 = vadd.f32 %v400, %v2187
  %v2189 = vpop.f32.mrf.mxu0
  %v2190 = vadd.f32 %v396, %v2189
  %v2191 = vpop.f32.mrf.mxu0
  %v2192 = vadd.f32 %v400, %v2191
  %2193 = vmatprep.mubr.bf16.mxu0 %v85
  %2194 = vmatmul.mubr.bf16.gmra.mxu0 %v84
  %v2195 = vpop.f32.mrf.mxu0
  %v2196 = vadd.f32 %v396, %v2195
  %v2197 = vpop.f32.mrf.mxu0
  %v2198 = vadd.f32 %v400, %v2197
  %v2199 = vpop.f32.mrf.mxu0
  %v2200 = vadd.f32 %v396, %v2199
  %v2201 = vpop.f32.mrf.mxu0
  %v2202 = vadd.f32 %v400, %v2201
  %2203 = vmatprep.mubr.bf16.mxu0 %v88
  %2204 = vmatmul.mubr.bf16.gmra.mxu0 %v87
  %v2205 = vpop.f32.mrf.mxu0
  %v2206 = vadd.f32 %v396, %v2205
  %v2207 = vpop.f32.mrf.mxu0
  %v2208 = vadd.f32 %v400, %v2207
  %v2209 = vpop.f32.mrf.mxu0
  %v2210 = vadd.f32 %v396, %v2209
  %v2211 = vpop.f32.mrf.mxu0
  %v2212 = vadd.f32 %v400, %v2211
  %2213 = vmatprep.mubr.bf16.mxu0 %v91
  %2214 = vmatmul.mubr.bf16.gmra.mxu0 %v90
  %v2215 = vpop.f32.mrf.mxu0
  %v2216 = vadd.f32 %v396, %v2215
  %v2217 = vpop.f32.mrf.mxu0
  %v2218 = vadd.f32 %v400, %v2217
  %v2219 = vpop.f32.mrf.mxu0
  %v2220 = vadd.f32 %v396, %v2219
  %v2221 = vpop.f32.mrf.mxu0
  %v2222 = vadd.f32 %v400, %v2221
  %2223 = vdwg.mxu0
  %2224 = vmatprep.subr.bf16.mxu0 %v1588
  %2225 = vmatpush1.bf16.msra.mxu0 %v1587
  %2226 = vmatprep.subr.bf16.mxu0 %v1576
  %2227 = vmatpush1.bf16.msra.mxu0 %v1575
  %2228 = vmatprep.subr.bf16.mxu0 %v1564
  %2229 = vmatpush1.bf16.msra.mxu0 %v1563
  %2230 = vmatprep.subr.bf16.mxu0 %v1552
  %2231 = vmatpush1.bf16.msra.mxu0 %v1551
  %2232 = vmatprep.subr.bf16.mxu0 %v1540
  %2233 = vmatpush1.bf16.msra.mxu0 %v1539
  %2234 = vmatprep.subr.bf16.mxu0 %v1528
  %2235 = vmatpush1.bf16.msra.mxu0 %v1527
  %2236 = vmatprep.subr.bf16.mxu0 %v1516
  %2237 = vmatpush1.bf16.msra.mxu0 %v1515
  %2238 = vmatprep.subr.bf16.mxu0 %v1504
  %2239 = vmatpush1.bf16.msra.mxu0 %v1503
  %2240 = vmatprep.subr.bf16.mxu0 0
  %2241 = vmatpush2.bf16.msra.mxu0 0
  %2242 = vmatprep.subr.bf16.mxu0 0
  %2243 = vmatpush2.bf16.msra.mxu0 0
  %2244 = vmatprep.subr.bf16.mxu0 0
  %2245 = vmatpush2.bf16.msra.mxu0 0
  %2246 = vmatprep.subr.bf16.mxu0 0
  %2247 = vmatpush2.bf16.msra.mxu0 0
  %2248 = vmatprep.subr.bf16.mxu0 0
  %2249 = vmatpush2.bf16.msra.mxu0 0
  %2250 = vmatprep.subr.bf16.mxu0 0
  %2251 = vmatpush2.bf16.msra.mxu0 0
  %2252 = vmatprep.subr.bf16.mxu0 0
  %2253 = vmatpush2.bf16.msra.mxu0 0
  %2254 = vmatprep.subr.bf16.mxu0 0
  %2255 = vmatpush2.bf16.msra.mxu0 0
  %2256 = vmatprep.mubr.bf16.mxu0 0
  %2257 = vmatmul.mubr.bf16.gmra.mxu0 %v71
  %v2258 = vpop.f32.mrf.mxu0
  %v2259 = vadd.f32 %v2146, %v2258
  %v2260 = vpop.f32.mrf.mxu0
  %v2261 = vadd.f32 %v2148, %v2260
  %v2262 = vpop.f32.mrf.mxu0
  %v2263 = vadd.f32 %v2150, %v2262
  %v2264 = vpop.f32.mrf.mxu0
  %v2265 = vadd.f32 %v2152, %v2264
  %2266 = vmatprep.mubr.bf16.mxu0 0
  %2267 = vmatmul.mubr.bf16.gmra.mxu0 %v74
  %v2268 = vpop.f32.mrf.mxu0
  %v2269 = vadd.f32 %v2156, %v2268
  %v2270 = vpop.f32.mrf.mxu0
  %v2271 = vadd.f32 %v2158, %v2270
  %v2272 = vpop.f32.mrf.mxu0
  %v2273 = vadd.f32 %v2160, %v2272
  %v2274 = vpop.f32.mrf.mxu0
  %v2275 = vadd.f32 %v2162, %v2274
  %2276 = vmatprep.mubr.bf16.mxu0 0
  %2277 = vmatmul.mubr.bf16.gmra.mxu0 %v77
  %v2278 = vpop.f32.mrf.mxu0
  %v2279 = vadd.f32 %v2166, %v2278
  %v2280 = vpop.f32.mrf.mxu0
  %v2281 = vadd.f32 %v2168, %v2280
  %v2282 = vpop.f32.mrf.mxu0
  %v2283 = vadd.f32 %v2170, %v2282
  %v2284 = vpop.f32.mrf.mxu0
  %v2285 = vadd.f32 %v2172, %v2284
  %2286 = vmatprep.mubr.bf16.mxu0 0
  %2287 = vmatmul.mubr.bf16.gmra.mxu0 %v80
  %v2288 = vpop.f32.mrf.mxu0
  %v2289 = vadd.f32 %v2176, %v2288
  %v2290 = vpop.f32.mrf.mxu0
  %v2291 = vadd.f32 %v2178, %v2290
  %v2292 = vpop.f32.mrf.mxu0
  %v2293 = vadd.f32 %v2180, %v2292
  %v2294 = vpop.f32.mrf.mxu0
  %v2295 = vadd.f32 %v2182, %v2294
  %2296 = vmatprep.mubr.bf16.mxu0 0
  %2297 = vmatmul.mubr.bf16.gmra.mxu0 %v83
  %v2298 = vpop.f32.mrf.mxu0
  %v2299 = vadd.f32 %v2186, %v2298
  %v2300 = vpop.f32.mrf.mxu0
  %v2301 = vadd.f32 %v2188, %v2300
  %v2302 = vpop.f32.mrf.mxu0
  %v2303 = vadd.f32 %v2190, %v2302
  %v2304 = vpop.f32.mrf.mxu0
  %v2305 = vadd.f32 %v2192, %v2304
  %2306 = vmatprep.mubr.bf16.mxu0 0
  %2307 = vmatmul.mubr.bf16.gmra.mxu0 %v86
  %v2308 = vpop.f32.mrf.mxu0
  %v2309 = vadd.f32 %v2196, %v2308
  %v2310 = vpop.f32.mrf.mxu0
  %v2311 = vadd.f32 %v2198, %v2310
  %v2312 = vpop.f32.mrf.mxu0
  %v2313 = vadd.f32 %v2200, %v2312
  %v2314 = vpop.f32.mrf.mxu0
  %v2315 = vadd.f32 %v2202, %v2314
  %2316 = vmatprep.mubr.bf16.mxu0 0
  %2317 = vmatmul.mubr.bf16.gmra.mxu0 %v89
  %v2318 = vpop.f32.mrf.mxu0
  %v2319 = vadd.f32 %v2206, %v2318
  %v2320 = vpop.f32.mrf.mxu0
  %v2321 = vadd.f32 %v2208, %v2320
  %v2322 = vpop.f32.mrf.mxu0
  %v2323 = vadd.f32 %v2210, %v2322
  %v2324 = vpop.f32.mrf.mxu0
  %v2325 = vadd.f32 %v2212, %v2324
  %2326 = vmatprep.mubr.bf16.mxu0 0
  %2327 = vmatmul.mubr.bf16.gmra.mxu0 %v92
  %v2328 = vpop.f32.mrf.mxu0
  %v2329 = vadd.f32 %v2216, %v2328
  %v2330 = vpop.f32.mrf.mxu0
  %v2331 = vadd.f32 %v2218, %v2330
  %v2332 = vpop.f32.mrf.mxu0
  %v2333 = vadd.f32 %v2220, %v2332
  %v2334 = vpop.f32.mrf.mxu0
  %v2335 = vadd.f32 %v2222, %v2334
  %2336 = vdwg.mxu0
  %2337 = vmatprep.subr.bf16.mxu0 %v1398
  %2338 = vmatpush1.bf16.msra.mxu0 %v1397
  %2339 = vmatprep.subr.bf16.mxu0 %v1386
  %2340 = vmatpush1.bf16.msra.mxu0 %v1385
  %2341 = vmatprep.subr.bf16.mxu0 %v1374
  %2342 = vmatpush1.bf16.msra.mxu0 %v1373
  %2343 = vmatprep.subr.bf16.mxu0 %v1362
  %2344 = vmatpush1.bf16.msra.mxu0 %v1361
  %2345 = vmatprep.subr.bf16.mxu0 %v1350
  %2346 = vmatpush1.bf16.msra.mxu0 %v1349
  %2347 = vmatprep.subr.bf16.mxu0 %v1338
  %2348 = vmatpush1.bf16.msra.mxu0 %v1337
  %2349 = vmatprep.subr.bf16.mxu0 %v1326
  %2350 = vmatpush1.bf16.msra.mxu0 %v1325
  %2351 = vmatprep.subr.bf16.mxu0 %v1314
  %2352 = vmatpush1.bf16.msra.mxu0 %v1313
  %2353 = vmatprep.subr.bf16.mxu0 %v1494
  %2354 = vmatpush2.bf16.msra.mxu0 %v1493
  %2355 = vmatprep.subr.bf16.mxu0 %v1482
  %2356 = vmatpush2.bf16.msra.mxu0 %v1481
  %2357 = vmatprep.subr.bf16.mxu0 %v1470
  %2358 = vmatpush2.bf16.msra.mxu0 %v1469
  %2359 = vmatprep.subr.bf16.mxu0 %v1458
  %2360 = vmatpush2.bf16.msra.mxu0 %v1457
  %2361 = vmatprep.subr.bf16.mxu0 %v1446
  %2362 = vmatpush2.bf16.msra.mxu0 %v1445
  %2363 = vmatprep.subr.bf16.mxu0 %v1434
  %2364 = vmatpush2.bf16.msra.mxu0 %v1433
  %2365 = vmatprep.subr.bf16.mxu0 %v1422
  %2366 = vmatpush2.bf16.msra.mxu0 %v1421
  %2367 = vmatprep.subr.bf16.mxu0 %v1410
  %2368 = vmatpush2.bf16.msra.mxu0 %v1409
  %2369 = vmatprep.mubr.bf16.mxu0 %v70
  %2370 = vmatmul.mubr.bf16.gmra.mxu0 %v69
  %v2371 = vpop.f32.mrf.mxu0
  %v2372 = vadd.f32 %v404, %v2371
  %v2373 = vpop.f32.mrf.mxu0
  %v2374 = vadd.f32 %v408, %v2373
  %v2375 = vpop.f32.mrf.mxu0
  %v2376 = vadd.f32 %v404, %v2375
  %v2377 = vpop.f32.mrf.mxu0
  %v2378 = vadd.f32 %v408, %v2377
  %2379 = vmatprep.mubr.bf16.mxu0 %v73
  %2380 = vmatmul.mubr.bf16.gmra.mxu0 %v72
  %v2381 = vpop.f32.mrf.mxu0
  %v2382 = vadd.f32 %v404, %v2381
  %v2383 = vpop.f32.mrf.mxu0
  %v2384 = vadd.f32 %v408, %v2383
  %v2385 = vpop.f32.mrf.mxu0
  %v2386 = vadd.f32 %v404, %v2385
  %v2387 = vpop.f32.mrf.mxu0
  %v2388 = vadd.f32 %v408, %v2387
  %2389 = vmatprep.mubr.bf16.mxu0 %v76
  %2390 = vmatmul.mubr.bf16.gmra.mxu0 %v75
  %v2391 = vpop.f32.mrf.mxu0
  %v2392 = vadd.f32 %v404, %v2391
  %v2393 = vpop.f32.mrf.mxu0
  %v2394 = vadd.f32 %v408, %v2393
  %v2395 = vpop.f32.mrf.mxu0
  %v2396 = vadd.f32 %v404, %v2395
  %v2397 = vpop.f32.mrf.mxu0
  %v2398 = vadd.f32 %v408, %v2397
  %2399 = vmatprep.mubr.bf16.mxu0 %v79
  %2400 = vmatmul.mubr.bf16.gmra.mxu0 %v78
  %v2401 = vpop.f32.mrf.mxu0
  %v2402 = vadd.f32 %v404, %v2401
  %v2403 = vpop.f32.mrf.mxu0
  %v2404 = vadd.f32 %v408, %v2403
  %v2405 = vpop.f32.mrf.mxu0
  %v2406 = vadd.f32 %v404, %v2405
  %v2407 = vpop.f32.mrf.mxu0
  %v2408 = vadd.f32 %v408, %v2407
  %2409 = vmatprep.mubr.bf16.mxu0 %v82
  %2410 = vmatmul.mubr.bf16.gmra.mxu0 %v81
  %v2411 = vpop.f32.mrf.mxu0
  %v2412 = vadd.f32 %v404, %v2411
  %v2413 = vpop.f32.mrf.mxu0
  %v2414 = vadd.f32 %v408, %v2413
  %v2415 = vpop.f32.mrf.mxu0
  %v2416 = vadd.f32 %v404, %v2415
  %v2417 = vpop.f32.mrf.mxu0
  %v2418 = vadd.f32 %v408, %v2417
  %2419 = vmatprep.mubr.bf16.mxu0 %v85
  %2420 = vmatmul.mubr.bf16.gmra.mxu0 %v84
  %v2421 = vpop.f32.mrf.mxu0
  %v2422 = vadd.f32 %v404, %v2421
  %v2423 = vpop.f32.mrf.mxu0
  %v2424 = vadd.f32 %v408, %v2423
  %v2425 = vpop.f32.mrf.mxu0
  %v2426 = vadd.f32 %v404, %v2425
  %v2427 = vpop.f32.mrf.mxu0
  %v2428 = vadd.f32 %v408, %v2427
  %2429 = vmatprep.mubr.bf16.mxu0 %v88
  %2430 = vmatmul.mubr.bf16.gmra.mxu0 %v87
  %v2431 = vpop.f32.mrf.mxu0
  %v2432 = vadd.f32 %v404, %v2431
  %v2433 = vpop.f32.mrf.mxu0
  %v2434 = vadd.f32 %v408, %v2433
  %v2435 = vpop.f32.mrf.mxu0
  %v2436 = vadd.f32 %v404, %v2435
  %v2437 = vpop.f32.mrf.mxu0
  %v2438 = vadd.f32 %v408, %v2437
  %2439 = vmatprep.mubr.bf16.mxu0 %v91
  %2440 = vmatmul.mubr.bf16.gmra.mxu0 %v90
  %v2441 = vpop.f32.mrf.mxu0
  %v2442 = vadd.f32 %v404, %v2441
  %v2443 = vpop.f32.mrf.mxu0
  %v2444 = vadd.f32 %v408, %v2443
  %v2445 = vpop.f32.mrf.mxu0
  %v2446 = vadd.f32 %v404, %v2445
  %v2447 = vpop.f32.mrf.mxu0
  %v2448 = vadd.f32 %v408, %v2447
  %2449 = vdwg.mxu0
  %2450 = vmatprep.subr.bf16.mxu0 %v1590
  %2451 = vmatpush1.bf16.msra.mxu0 %v1589
  %2452 = vmatprep.subr.bf16.mxu0 %v1578
  %2453 = vmatpush1.bf16.msra.mxu0 %v1577
  %2454 = vmatprep.subr.bf16.mxu0 %v1566
  %2455 = vmatpush1.bf16.msra.mxu0 %v1565
  %2456 = vmatprep.subr.bf16.mxu0 %v1554
  %2457 = vmatpush1.bf16.msra.mxu0 %v1553
  %2458 = vmatprep.subr.bf16.mxu0 %v1542
  %2459 = vmatpush1.bf16.msra.mxu0 %v1541
  %2460 = vmatprep.subr.bf16.mxu0 %v1530
  %2461 = vmatpush1.bf16.msra.mxu0 %v1529
  %2462 = vmatprep.subr.bf16.mxu0 %v1518
  %2463 = vmatpush1.bf16.msra.mxu0 %v1517
  %2464 = vmatprep.subr.bf16.mxu0 %v1506
  %2465 = vmatpush1.bf16.msra.mxu0 %v1505
  %2466 = vmatprep.subr.bf16.mxu0 0
  %2467 = vmatpush2.bf16.msra.mxu0 0
  %2468 = vmatprep.subr.bf16.mxu0 0
  %2469 = vmatpush2.bf16.msra.mxu0 0
  %2470 = vmatprep.subr.bf16.mxu0 0
  %2471 = vmatpush2.bf16.msra.mxu0 0
  %2472 = vmatprep.subr.bf16.mxu0 0
  %2473 = vmatpush2.bf16.msra.mxu0 0
  %2474 = vmatprep.subr.bf16.mxu0 0
  %2475 = vmatpush2.bf16.msra.mxu0 0
  %2476 = vmatprep.subr.bf16.mxu0 0
  %2477 = vmatpush2.bf16.msra.mxu0 0
  %2478 = vmatprep.subr.bf16.mxu0 0
  %2479 = vmatpush2.bf16.msra.mxu0 0
  %2480 = vmatprep.subr.bf16.mxu0 0
  %2481 = vmatpush2.bf16.msra.mxu0 0
  %2482 = vmatprep.mubr.bf16.mxu0 0
  %2483 = vmatmul.mubr.bf16.gmra.mxu0 %v71
  %v2484 = vpop.f32.mrf.mxu0
  %v2485 = vadd.f32 %v2372, %v2484
  %v2486 = vpop.f32.mrf.mxu0
  %v2487 = vadd.f32 %v2374, %v2486
  %v2488 = vpop.f32.mrf.mxu0
  %v2489 = vadd.f32 %v2376, %v2488
  %v2490 = vpop.f32.mrf.mxu0
  %v2491 = vadd.f32 %v2378, %v2490
  %2492 = vmatprep.mubr.bf16.mxu0 0
  %2493 = vmatmul.mubr.bf16.gmra.mxu0 %v74
  %v2494 = vpop.f32.mrf.mxu0
  %v2495 = vadd.f32 %v2382, %v2494
  %v2496 = vpop.f32.mrf.mxu0
  %v2497 = vadd.f32 %v2384, %v2496
  %v2498 = vpop.f32.mrf.mxu0
  %v2499 = vadd.f32 %v2386, %v2498
  %v2500 = vpop.f32.mrf.mxu0
  %v2501 = vadd.f32 %v2388, %v2500
  %2502 = vmatprep.mubr.bf16.mxu0 0
  %2503 = vmatmul.mubr.bf16.gmra.mxu0 %v77
  %v2504 = vpop.f32.mrf.mxu0
  %v2505 = vadd.f32 %v2392, %v2504
  %v2506 = vpop.f32.mrf.mxu0
  %v2507 = vadd.f32 %v2394, %v2506
  %v2508 = vpop.f32.mrf.mxu0
  %v2509 = vadd.f32 %v2396, %v2508
  %v2510 = vpop.f32.mrf.mxu0
  %v2511 = vadd.f32 %v2398, %v2510
  %2512 = vmatprep.mubr.bf16.mxu0 0
  %2513 = vmatmul.mubr.bf16.gmra.mxu0 %v80
  %v2514 = vpop.f32.mrf.mxu0
  %v2515 = vadd.f32 %v2402, %v2514
  %v2516 = vpop.f32.mrf.mxu0
  %v2517 = vadd.f32 %v2404, %v2516
  %v2518 = vpop.f32.mrf.mxu0
  %v2519 = vadd.f32 %v2406, %v2518
  %v2520 = vpop.f32.mrf.mxu0
  %v2521 = vadd.f32 %v2408, %v2520
  %2522 = vmatprep.mubr.bf16.mxu0 0
  %2523 = vmatmul.mubr.bf16.gmra.mxu0 %v83
  %v2524 = vpop.f32.mrf.mxu0
  %v2525 = vadd.f32 %v2412, %v2524
  %v2526 = vpop.f32.mrf.mxu0
  %v2527 = vadd.f32 %v2414, %v2526
  %v2528 = vpop.f32.mrf.mxu0
  %v2529 = vadd.f32 %v2416, %v2528
  %v2530 = vpop.f32.mrf.mxu0
  %v2531 = vadd.f32 %v2418, %v2530
  %2532 = vmatprep.mubr.bf16.mxu0 0
  %2533 = vmatmul.mubr.bf16.gmra.mxu0 %v86
  %v2534 = vpop.f32.mrf.mxu0
  %v2535 = vadd.f32 %v2422, %v2534
  %v2536 = vpop.f32.mrf.mxu0
  %v2537 = vadd.f32 %v2424, %v2536
  %v2538 = vpop.f32.mrf.mxu0
  %v2539 = vadd.f32 %v2426, %v2538
  %v2540 = vpop.f32.mrf.mxu0
  %v2541 = vadd.f32 %v2428, %v2540
  %2542 = vmatprep.mubr.bf16.mxu0 0
  %2543 = vmatmul.mubr.bf16.gmra.mxu0 %v89
  %v2544 = vpop.f32.mrf.mxu0
  %v2545 = vadd.f32 %v2432, %v2544
  %v2546 = vpop.f32.mrf.mxu0
  %v2547 = vadd.f32 %v2434, %v2546
  %v2548 = vpop.f32.mrf.mxu0
  %v2549 = vadd.f32 %v2436, %v2548
  %v2550 = vpop.f32.mrf.mxu0
  %v2551 = vadd.f32 %v2438, %v2550
  %2552 = vmatprep.mubr.bf16.mxu0 0
  %2553 = vmatmul.mubr.bf16.gmra.mxu0 %v92
  %v2554 = vpop.f32.mrf.mxu0
  %v2555 = vadd.f32 %v2442, %v2554
  %v2556 = vpop.f32.mrf.mxu0
  %v2557 = vadd.f32 %v2444, %v2556
  %v2558 = vpop.f32.mrf.mxu0
  %v2559 = vadd.f32 %v2446, %v2558
  %v2560 = vpop.f32.mrf.mxu0
  %v2561 = vadd.f32 %v2448, %v2560
  %2562 = vdwg.mxu0
  %2563 = vmatprep.subr.bf16.mxu0 %v1400
  %2564 = vmatpush1.bf16.msra.mxu0 %v1399
  %2565 = vmatprep.subr.bf16.mxu0 %v1388
  %2566 = vmatpush1.bf16.msra.mxu0 %v1387
  %2567 = vmatprep.subr.bf16.mxu0 %v1376
  %2568 = vmatpush1.bf16.msra.mxu0 %v1375
  %2569 = vmatprep.subr.bf16.mxu0 %v1364
  %2570 = vmatpush1.bf16.msra.mxu0 %v1363
  %2571 = vmatprep.subr.bf16.mxu0 %v1352
  %2572 = vmatpush1.bf16.msra.mxu0 %v1351
  %2573 = vmatprep.subr.bf16.mxu0 %v1340
  %2574 = vmatpush1.bf16.msra.mxu0 %v1339
  %2575 = vmatprep.subr.bf16.mxu0 %v1328
  %2576 = vmatpush1.bf16.msra.mxu0 %v1327
  %2577 = vmatprep.subr.bf16.mxu0 %v1316
  %2578 = vmatpush1.bf16.msra.mxu0 %v1315
  %2579 = vmatprep.subr.bf16.mxu0 %v1496
  %2580 = vmatpush2.bf16.msra.mxu0 %v1495
  %2581 = vmatprep.subr.bf16.mxu0 %v1484
  %2582 = vmatpush2.bf16.msra.mxu0 %v1483
  %2583 = vmatprep.subr.bf16.mxu0 %v1472
  %2584 = vmatpush2.bf16.msra.mxu0 %v1471
  %2585 = vmatprep.subr.bf16.mxu0 %v1460
  %2586 = vmatpush2.bf16.msra.mxu0 %v1459
  %2587 = vmatprep.subr.bf16.mxu0 %v1448
  %2588 = vmatpush2.bf16.msra.mxu0 %v1447
  %2589 = vmatprep.subr.bf16.mxu0 %v1436
  %2590 = vmatpush2.bf16.msra.mxu0 %v1435
  %2591 = vmatprep.subr.bf16.mxu0 %v1424
  %2592 = vmatpush2.bf16.msra.mxu0 %v1423
  %2593 = vmatprep.subr.bf16.mxu0 %v1412
  %2594 = vmatpush2.bf16.msra.mxu0 %v1411
  %2595 = vmatprep.mubr.bf16.mxu0 %v70
  %2596 = vmatmul.mubr.bf16.gmra.mxu0 %v69
  %v2597 = vpop.f32.mrf.mxu0
  %v2598 = vadd.f32 %v412, %v2597
  %v2599 = vpop.f32.mrf.mxu0
  %v2600 = vadd.f32 %v416, %v2599
  %v2601 = vpop.f32.mrf.mxu0
  %v2602 = vadd.f32 %v412, %v2601
  %v2603 = vpop.f32.mrf.mxu0
  %v2604 = vadd.f32 %v416, %v2603
  %2605 = vmatprep.mubr.bf16.mxu0 %v73
  %2606 = vmatmul.mubr.bf16.gmra.mxu0 %v72
  %v2607 = vpop.f32.mrf.mxu0
  %v2608 = vadd.f32 %v412, %v2607
  %v2609 = vpop.f32.mrf.mxu0
  %v2610 = vadd.f32 %v416, %v2609
  %v2611 = vpop.f32.mrf.mxu0
  %v2612 = vadd.f32 %v412, %v2611
  %v2613 = vpop.f32.mrf.mxu0
  %v2614 = vadd.f32 %v416, %v2613
  %2615 = vmatprep.mubr.bf16.mxu0 %v76
  %2616 = vmatmul.mubr.bf16.gmra.mxu0 %v75
  %v2617 = vpop.f32.mrf.mxu0
  %v2618 = vadd.f32 %v412, %v2617
  %v2619 = vpop.f32.mrf.mxu0
  %v2620 = vadd.f32 %v416, %v2619
  %v2621 = vpop.f32.mrf.mxu0
  %v2622 = vadd.f32 %v412, %v2621
  %v2623 = vpop.f32.mrf.mxu0
  %v2624 = vadd.f32 %v416, %v2623
  %2625 = vmatprep.mubr.bf16.mxu0 %v79
  %2626 = vmatmul.mubr.bf16.gmra.mxu0 %v78
  %v2627 = vpop.f32.mrf.mxu0
  %v2628 = vadd.f32 %v412, %v2627
  %v2629 = vpop.f32.mrf.mxu0
  %v2630 = vadd.f32 %v416, %v2629
  %v2631 = vpop.f32.mrf.mxu0
  %v2632 = vadd.f32 %v412, %v2631
  %v2633 = vpop.f32.mrf.mxu0
  %v2634 = vadd.f32 %v416, %v2633
  %2635 = vmatprep.mubr.bf16.mxu0 %v82
  %2636 = vmatmul.mubr.bf16.gmra.mxu0 %v81
  %v2637 = vpop.f32.mrf.mxu0
  %v2638 = vadd.f32 %v412, %v2637
  %v2639 = vpop.f32.mrf.mxu0
  %v2640 = vadd.f32 %v416, %v2639
  %v2641 = vpop.f32.mrf.mxu0
  %v2642 = vadd.f32 %v412, %v2641
  %v2643 = vpop.f32.mrf.mxu0
  %v2644 = vadd.f32 %v416, %v2643
  %2645 = vmatprep.mubr.bf16.mxu0 %v85
  %2646 = vmatmul.mubr.bf16.gmra.mxu0 %v84
  %v2647 = vpop.f32.mrf.mxu0
  %v2648 = vadd.f32 %v412, %v2647
  %v2649 = vpop.f32.mrf.mxu0
  %v2650 = vadd.f32 %v416, %v2649
  %v2651 = vpop.f32.mrf.mxu0
  %v2652 = vadd.f32 %v412, %v2651
  %v2653 = vpop.f32.mrf.mxu0
  %v2654 = vadd.f32 %v416, %v2653
  %2655 = vmatprep.mubr.bf16.mxu0 %v88
  %2656 = vmatmul.mubr.bf16.gmra.mxu0 %v87
  %v2657 = vpop.f32.mrf.mxu0
  %v2658 = vadd.f32 %v412, %v2657
  %v2659 = vpop.f32.mrf.mxu0
  %v2660 = vadd.f32 %v416, %v2659
  %v2661 = vpop.f32.mrf.mxu0
  %v2662 = vadd.f32 %v412, %v2661
  %v2663 = vpop.f32.mrf.mxu0
  %v2664 = vadd.f32 %v416, %v2663
  %2665 = vmatprep.mubr.bf16.mxu0 %v91
  %2666 = vmatmul.mubr.bf16.gmra.mxu0 %v90
  %v2667 = vpop.f32.mrf.mxu0
  %v2668 = vadd.f32 %v412, %v2667
  %v2669 = vpop.f32.mrf.mxu0
  %v2670 = vadd.f32 %v416, %v2669
  %v2671 = vpop.f32.mrf.mxu0
  %v2672 = vadd.f32 %v412, %v2671
  %v2673 = vpop.f32.mrf.mxu0
  %v2674 = vadd.f32 %v416, %v2673
  %2675 = vdwg.mxu0
  %2676 = vmatprep.subr.bf16.mxu0 %v1592
  %2677 = vmatpush1.bf16.msra.mxu0 %v1591
  %2678 = vmatprep.subr.bf16.mxu0 %v1580
  %2679 = vmatpush1.bf16.msra.mxu0 %v1579
  %2680 = vmatprep.subr.bf16.mxu0 %v1568
  %2681 = vmatpush1.bf16.msra.mxu0 %v1567
  %2682 = vmatprep.subr.bf16.mxu0 %v1556
  %2683 = vmatpush1.bf16.msra.mxu0 %v1555
  %2684 = vmatprep.subr.bf16.mxu0 %v1544
  %2685 = vmatpush1.bf16.msra.mxu0 %v1543
  %2686 = vmatprep.subr.bf16.mxu0 %v1532
  %2687 = vmatpush1.bf16.msra.mxu0 %v1531
  %2688 = vmatprep.subr.bf16.mxu0 %v1520
  %2689 = vmatpush1.bf16.msra.mxu0 %v1519
  %2690 = vmatprep.subr.bf16.mxu0 %v1508
  %2691 = vmatpush1.bf16.msra.mxu0 %v1507
  %2692 = vmatprep.subr.bf16.mxu0 0
  %2693 = vmatpush2.bf16.msra.mxu0 0
  %2694 = vmatprep.subr.bf16.mxu0 0
  %2695 = vmatpush2.bf16.msra.mxu0 0
  %2696 = vmatprep.subr.bf16.mxu0 0
  %2697 = vmatpush2.bf16.msra.mxu0 0
  %2698 = vmatprep.subr.bf16.mxu0 0
  %2699 = vmatpush2.bf16.msra.mxu0 0
  %2700 = vmatprep.subr.bf16.mxu0 0
  %2701 = vmatpush2.bf16.msra.mxu0 0
  %2702 = vmatprep.subr.bf16.mxu0 0
  %2703 = vmatpush2.bf16.msra.mxu0 0
  %2704 = vmatprep.subr.bf16.mxu0 0
  %2705 = vmatpush2.bf16.msra.mxu0 0
  %2706 = vmatprep.subr.bf16.mxu0 0
  %2707 = vmatpush2.bf16.msra.mxu0 0
  %2708 = vmatprep.mubr.bf16.mxu0 0
  %2709 = vmatmul.mubr.bf16.gmra.mxu0 %v71
  %v2710 = vpop.f32.mrf.mxu0
  %v2711 = vadd.f32 %v2598, %v2710
  %v2712 = vpop.f32.mrf.mxu0
  %v2713 = vadd.f32 %v2600, %v2712
  %v2714 = vpop.f32.mrf.mxu0
  %v2715 = vadd.f32 %v2602, %v2714
  %v2716 = vpop.f32.mrf.mxu0
  %v2717 = vadd.f32 %v2604, %v2716
  %2718 = vmatprep.mubr.bf16.mxu0 0
  %2719 = vmatmul.mubr.bf16.gmra.mxu0 %v74
  %v2720 = vpop.f32.mrf.mxu0
  %v2721 = vadd.f32 %v2608, %v2720
  %v2722 = vpop.f32.mrf.mxu0
  %v2723 = vadd.f32 %v2610, %v2722
  %v2724 = vpop.f32.mrf.mxu0
  %v2725 = vadd.f32 %v2612, %v2724
  %v2726 = vpop.f32.mrf.mxu0
  %v2727 = vadd.f32 %v2614, %v2726
  %2728 = vmatprep.mubr.bf16.mxu0 0
  %2729 = vmatmul.mubr.bf16.gmra.mxu0 %v77
  %v2730 = vpop.f32.mrf.mxu0
  %v2731 = vadd.f32 %v2618, %v2730
  %v2732 = vpop.f32.mrf.mxu0
  %v2733 = vadd.f32 %v2620, %v2732
  %v2734 = vpop.f32.mrf.mxu0
  %v2735 = vadd.f32 %v2622, %v2734
  %v2736 = vpop.f32.mrf.mxu0
  %v2737 = vadd.f32 %v2624, %v2736
  %2738 = vmatprep.mubr.bf16.mxu0 0
  %2739 = vmatmul.mubr.bf16.gmra.mxu0 %v80
  %v2740 = vpop.f32.mrf.mxu0
  %v2741 = vadd.f32 %v2628, %v2740
  %v2742 = vpop.f32.mrf.mxu0
  %v2743 = vadd.f32 %v2630, %v2742
  %v2744 = vpop.f32.mrf.mxu0
  %v2745 = vadd.f32 %v2632, %v2744
  %v2746 = vpop.f32.mrf.mxu0
  %v2747 = vadd.f32 %v2634, %v2746
  %2748 = vmatprep.mubr.bf16.mxu0 0
  %2749 = vmatmul.mubr.bf16.gmra.mxu0 %v83
  %v2750 = vpop.f32.mrf.mxu0
  %v2751 = vadd.f32 %v2638, %v2750
  %v2752 = vpop.f32.mrf.mxu0
  %v2753 = vadd.f32 %v2640, %v2752
  %v2754 = vpop.f32.mrf.mxu0
  %v2755 = vadd.f32 %v2642, %v2754
  %v2756 = vpop.f32.mrf.mxu0
  %v2757 = vadd.f32 %v2644, %v2756
  %2758 = vmatprep.mubr.bf16.mxu0 0
  %2759 = vmatmul.mubr.bf16.gmra.mxu0 %v86
  %v2760 = vpop.f32.mrf.mxu0
  %v2761 = vadd.f32 %v2648, %v2760
  %v2762 = vpop.f32.mrf.mxu0
  %v2763 = vadd.f32 %v2650, %v2762
  %v2764 = vpop.f32.mrf.mxu0
  %v2765 = vadd.f32 %v2652, %v2764
  %v2766 = vpop.f32.mrf.mxu0
  %v2767 = vadd.f32 %v2654, %v2766
  %2768 = vmatprep.mubr.bf16.mxu0 0
  %2769 = vmatmul.mubr.bf16.gmra.mxu0 %v89
  %v2770 = vpop.f32.mrf.mxu0
  %v2771 = vadd.f32 %v2658, %v2770
  %v2772 = vpop.f32.mrf.mxu0
  %v2773 = vadd.f32 %v2660, %v2772
  %v2774 = vpop.f32.mrf.mxu0
  %v2775 = vadd.f32 %v2662, %v2774
  %v2776 = vpop.f32.mrf.mxu0
  %v2777 = vadd.f32 %v2664, %v2776
  %2778 = vmatprep.mubr.bf16.mxu0 0
  %2779 = vmatmul.mubr.bf16.gmra.mxu0 %v92
  %v2780 = vpop.f32.mrf.mxu0
  %v2781 = vadd.f32 %v2668, %v2780
  %v2782 = vpop.f32.mrf.mxu0
  %v2783 = vadd.f32 %v2670, %v2782
  %v2784 = vpop.f32.mrf.mxu0
  %v2785 = vadd.f32 %v2672, %v2784
  %v2786 = vpop.f32.mrf.mxu0
  %v2787 = vadd.f32 %v2674, %v2786
  %2788 = vdwg.mxu0
  %2789 = vmatprep.subr.bf16.mxu0 %v1402
  %2790 = vmatpush1.bf16.msra.mxu0 %v1401
  %2791 = vmatprep.subr.bf16.mxu0 %v1390
  %2792 = vmatpush1.bf16.msra.mxu0 %v1389
  %2793 = vmatprep.subr.bf16.mxu0 %v1378
  %2794 = vmatpush1.bf16.msra.mxu0 %v1377
  %2795 = vmatprep.subr.bf16.mxu0 %v1366
  %2796 = vmatpush1.bf16.msra.mxu0 %v1365
  %2797 = vmatprep.subr.bf16.mxu0 %v1354
  %2798 = vmatpush1.bf16.msra.mxu0 %v1353
  %2799 = vmatprep.subr.bf16.mxu0 %v1342
  %2800 = vmatpush1.bf16.msra.mxu0 %v1341
  %2801 = vmatprep.subr.bf16.mxu0 %v1330
  %2802 = vmatpush1.bf16.msra.mxu0 %v1329
  %2803 = vmatprep.subr.bf16.mxu0 %v1318
  %2804 = vmatpush1.bf16.msra.mxu0 %v1317
  %2805 = vmatprep.subr.bf16.mxu0 %v1498
  %2806 = vmatpush2.bf16.msra.mxu0 %v1497
  %2807 = vmatprep.subr.bf16.mxu0 %v1486
  %2808 = vmatpush2.bf16.msra.mxu0 %v1485
  %2809 = vmatprep.subr.bf16.mxu0 %v1474
  %2810 = vmatpush2.bf16.msra.mxu0 %v1473
  %2811 = vmatprep.subr.bf16.mxu0 %v1462
  %2812 = vmatpush2.bf16.msra.mxu0 %v1461
  %2813 = vmatprep.subr.bf16.mxu0 %v1450
  %2814 = vmatpush2.bf16.msra.mxu0 %v1449
  %2815 = vmatprep.subr.bf16.mxu0 %v1438
  %2816 = vmatpush2.bf16.msra.mxu0 %v1437
  %2817 = vmatprep.subr.bf16.mxu0 %v1426
  %2818 = vmatpush2.bf16.msra.mxu0 %v1425
  %2819 = vmatprep.subr.bf16.mxu0 %v1414
  %2820 = vmatpush2.bf16.msra.mxu0 %v1413
  %2821 = vmatprep.mubr.bf16.mxu0 %v70
  %2822 = vmatmul.mubr.bf16.gmra.mxu0 %v69
  %v2823 = vpop.f32.mrf.mxu0
  %v2824 = vadd.f32 %v420, %v2823
  %v2825 = vpop.f32.mrf.mxu0
  %v2826 = vadd.f32 %v424, %v2825
  %v2827 = vpop.f32.mrf.mxu0
  %v2828 = vadd.f32 %v420, %v2827
  %v2829 = vpop.f32.mrf.mxu0
  %v2830 = vadd.f32 %v424, %v2829
  %2831 = vmatprep.mubr.bf16.mxu0 %v73
  %2832 = vmatmul.mubr.bf16.gmra.mxu0 %v72
  %v2833 = vpop.f32.mrf.mxu0
  %v2834 = vadd.f32 %v420, %v2833
  %v2835 = vpop.f32.mrf.mxu0
  %v2836 = vadd.f32 %v424, %v2835
  %v2837 = vpop.f32.mrf.mxu0
  %v2838 = vadd.f32 %v420, %v2837
  %v2839 = vpop.f32.mrf.mxu0
  %v2840 = vadd.f32 %v424, %v2839
  %2841 = vmatprep.mubr.bf16.mxu0 %v76
  %2842 = vmatmul.mubr.bf16.gmra.mxu0 %v75
  %v2843 = vpop.f32.mrf.mxu0
  %v2844 = vadd.f32 %v420, %v2843
  %v2845 = vpop.f32.mrf.mxu0
  %v2846 = vadd.f32 %v424, %v2845
  %v2847 = vpop.f32.mrf.mxu0
  %v2848 = vadd.f32 %v420, %v2847
  %v2849 = vpop.f32.mrf.mxu0
  %v2850 = vadd.f32 %v424, %v2849
  %2851 = vmatprep.mubr.bf16.mxu0 %v79
  %2852 = vmatmul.mubr.bf16.gmra.mxu0 %v78
  %v2853 = vpop.f32.mrf.mxu0
  %v2854 = vadd.f32 %v420, %v2853
  %v2855 = vpop.f32.mrf.mxu0
  %v2856 = vadd.f32 %v424, %v2855
  %v2857 = vpop.f32.mrf.mxu0
  %v2858 = vadd.f32 %v420, %v2857
  %v2859 = vpop.f32.mrf.mxu0
  %v2860 = vadd.f32 %v424, %v2859
  %2861 = vmatprep.mubr.bf16.mxu0 %v82
  %2862 = vmatmul.mubr.bf16.gmra.mxu0 %v81
  %v2863 = vpop.f32.mrf.mxu0
  %v2864 = vadd.f32 %v420, %v2863
  %v2865 = vpop.f32.mrf.mxu0
  %v2866 = vadd.f32 %v424, %v2865
  %v2867 = vpop.f32.mrf.mxu0
  %v2868 = vadd.f32 %v420, %v2867
  %v2869 = vpop.f32.mrf.mxu0
  %v2870 = vadd.f32 %v424, %v2869
  %2871 = vmatprep.mubr.bf16.mxu0 %v85
  %2872 = vmatmul.mubr.bf16.gmra.mxu0 %v84
  %v2873 = vpop.f32.mrf.mxu0
  %v2874 = vadd.f32 %v420, %v2873
  %v2875 = vpop.f32.mrf.mxu0
  %v2876 = vadd.f32 %v424, %v2875
  %v2877 = vpop.f32.mrf.mxu0
  %v2878 = vadd.f32 %v420, %v2877
  %v2879 = vpop.f32.mrf.mxu0
  %v2880 = vadd.f32 %v424, %v2879
  %2881 = vmatprep.mubr.bf16.mxu0 %v88
  %2882 = vmatmul.mubr.bf16.gmra.mxu0 %v87
  %v2883 = vpop.f32.mrf.mxu0
  %v2884 = vadd.f32 %v420, %v2883
  %v2885 = vpop.f32.mrf.mxu0
  %v2886 = vadd.f32 %v424, %v2885
  %v2887 = vpop.f32.mrf.mxu0
  %v2888 = vadd.f32 %v420, %v2887
  %v2889 = vpop.f32.mrf.mxu0
  %v2890 = vadd.f32 %v424, %v2889
  %2891 = vmatprep.mubr.bf16.mxu0 %v91
  %2892 = vmatmul.mubr.bf16.gmra.mxu0 %v90
  %v2893 = vpop.f32.mrf.mxu0
  %v2894 = vadd.f32 %v420, %v2893
  %v2895 = vpop.f32.mrf.mxu0
  %v2896 = vadd.f32 %v424, %v2895
  %v2897 = vpop.f32.mrf.mxu0
  %v2898 = vadd.f32 %v420, %v2897
  %v2899 = vpop.f32.mrf.mxu0
  %v2900 = vadd.f32 %v424, %v2899
  %2901 = vdwg.mxu0
  %2902 = vmatprep.subr.bf16.mxu0 %v1594
  %2903 = vmatpush1.bf16.msra.mxu0 %v1593
  %2904 = vmatprep.subr.bf16.mxu0 %v1582
  %2905 = vmatpush1.bf16.msra.mxu0 %v1581
  %2906 = vmatprep.subr.bf16.mxu0 %v1570
  %2907 = vmatpush1.bf16.msra.mxu0 %v1569
  %2908 = vmatprep.subr.bf16.mxu0 %v1558
  %2909 = vmatpush1.bf16.msra.mxu0 %v1557
  %2910 = vmatprep.subr.bf16.mxu0 %v1546
  %2911 = vmatpush1.bf16.msra.mxu0 %v1545
  %2912 = vmatprep.subr.bf16.mxu0 %v1534
  %2913 = vmatpush1.bf16.msra.mxu0 %v1533
  %2914 = vmatprep.subr.bf16.mxu0 %v1522
  %2915 = vmatpush1.bf16.msra.mxu0 %v1521
  %2916 = vmatprep.subr.bf16.mxu0 %v1510
  %2917 = vmatpush1.bf16.msra.mxu0 %v1509
  %2918 = vmatprep.subr.bf16.mxu0 0
  %2919 = vmatpush2.bf16.msra.mxu0 0
  %2920 = vmatprep.subr.bf16.mxu0 0
  %2921 = vmatpush2.bf16.msra.mxu0 0
  %2922 = vmatprep.subr.bf16.mxu0 0
  %2923 = vmatpush2.bf16.msra.mxu0 0
  %2924 = vmatprep.subr.bf16.mxu0 0
  %2925 = vmatpush2.bf16.msra.mxu0 0
  %2926 = vmatprep.subr.bf16.mxu0 0
  %2927 = vmatpush2.bf16.msra.mxu0 0
  %2928 = vmatprep.subr.bf16.mxu0 0
  %2929 = vmatpush2.bf16.msra.mxu0 0
  %2930 = vmatprep.subr.bf16.mxu0 0
  %2931 = vmatpush2.bf16.msra.mxu0 0
  %2932 = vmatprep.subr.bf16.mxu0 0
  %2933 = vmatpush2.bf16.msra.mxu0 0
  %2934 = vmatprep.mubr.bf16.mxu0 0
  %2935 = vmatmul.mubr.bf16.gmra.mxu0 %v71
  %v2936 = vpop.f32.mrf.mxu0
  %v2937 = vadd.f32 %v2824, %v2936
  %v2938 = vpop.f32.mrf.mxu0
  %v2939 = vadd.f32 %v2826, %v2938
  %v2940 = vpop.f32.mrf.mxu0
  %v2941 = vadd.f32 %v2828, %v2940
  %v2942 = vpop.f32.mrf.mxu0
  %v2943 = vadd.f32 %v2830, %v2942
  %2944 = vmatprep.mubr.bf16.mxu0 0
  %2945 = vmatmul.mubr.bf16.gmra.mxu0 %v74
  %v2946 = vpop.f32.mrf.mxu0
  %v2947 = vadd.f32 %v2834, %v2946
  %v2948 = vpop.f32.mrf.mxu0
  %v2949 = vadd.f32 %v2836, %v2948
  %v2950 = vpop.f32.mrf.mxu0
  %v2951 = vadd.f32 %v2838, %v2950
  %v2952 = vpop.f32.mrf.mxu0
  %v2953 = vadd.f32 %v2840, %v2952
  %2954 = vmatprep.mubr.bf16.mxu0 0
  %2955 = vmatmul.mubr.bf16.gmra.mxu0 %v77
  %v2956 = vpop.f32.mrf.mxu0
  %v2957 = vadd.f32 %v2844, %v2956
  %v2958 = vpop.f32.mrf.mxu0
  %v2959 = vadd.f32 %v2846, %v2958
  %v2960 = vpop.f32.mrf.mxu0
  %v2961 = vadd.f32 %v2848, %v2960
  %v2962 = vpop.f32.mrf.mxu0
  %v2963 = vadd.f32 %v2850, %v2962
  %2964 = vmatprep.mubr.bf16.mxu0 0
  %2965 = vmatmul.mubr.bf16.gmra.mxu0 %v80
  %v2966 = vpop.f32.mrf.mxu0
  %v2967 = vadd.f32 %v2854, %v2966
  %v2968 = vpop.f32.mrf.mxu0
  %v2969 = vadd.f32 %v2856, %v2968
  %v2970 = vpop.f32.mrf.mxu0
  %v2971 = vadd.f32 %v2858, %v2970
  %v2972 = vpop.f32.mrf.mxu0
  %v2973 = vadd.f32 %v2860, %v2972
  %2974 = vmatprep.mubr.bf16.mxu0 0
  %2975 = vmatmul.mubr.bf16.gmra.mxu0 %v83
  %v2976 = vpop.f32.mrf.mxu0
  %v2977 = vadd.f32 %v2864, %v2976
  %v2978 = vpop.f32.mrf.mxu0
  %v2979 = vadd.f32 %v2866, %v2978
  %v2980 = vpop.f32.mrf.mxu0
  %v2981 = vadd.f32 %v2868, %v2980
  %v2982 = vpop.f32.mrf.mxu0
  %v2983 = vadd.f32 %v2870, %v2982
  %2984 = vmatprep.mubr.bf16.mxu0 0
  %2985 = vmatmul.mubr.bf16.gmra.mxu0 %v86
  %v2986 = vpop.f32.mrf.mxu0
  %v2987 = vadd.f32 %v2874, %v2986
  %v2988 = vpop.f32.mrf.mxu0
  %v2989 = vadd.f32 %v2876, %v2988
  %v2990 = vpop.f32.mrf.mxu0
  %v2991 = vadd.f32 %v2878, %v2990
  %v2992 = vpop.f32.mrf.mxu0
  %v2993 = vadd.f32 %v2880, %v2992
  %2994 = vmatprep.mubr.bf16.mxu0 0
  %2995 = vmatmul.mubr.bf16.gmra.mxu0 %v89
  %v2996 = vpop.f32.mrf.mxu0
  %v2997 = vadd.f32 %v2884, %v2996
  %v2998 = vpop.f32.mrf.mxu0
  %v2999 = vadd.f32 %v2886, %v2998
  %v3000 = vpop.f32.mrf.mxu0
  %v3001 = vadd.f32 %v2888, %v3000
  %v3002 = vpop.f32.mrf.mxu0
  %v3003 = vadd.f32 %v2890, %v3002
  %3004 = vmatprep.mubr.bf16.mxu0 0
  %3005 = vmatmul.mubr.bf16.gmra.mxu0 %v92
  %v3006 = vpop.f32.mrf.mxu0
  %v3007 = vadd.f32 %v2894, %v3006
  %v3008 = vpop.f32.mrf.mxu0
  %v3009 = vadd.f32 %v2896, %v3008
  %v3010 = vpop.f32.mrf.mxu0
  %v3011 = vadd.f32 %v2898, %v3010
  %v3012 = vpop.f32.mrf.mxu0
  %v3013 = vadd.f32 %v2900, %v3012
  %3014 = vdwg.mxu0
  %3015 = vmatprep.subr.bf16.mxu0 %v1404
  %3016 = vmatpush1.bf16.msra.mxu0 %v1403
  %3017 = vmatprep.subr.bf16.mxu0 %v1392
  %3018 = vmatpush1.bf16.msra.mxu0 %v1391
  %3019 = vmatprep.subr.bf16.mxu0 %v1380
  %3020 = vmatpush1.bf16.msra.mxu0 %v1379
  %3021 = vmatprep.subr.bf16.mxu0 %v1368
  %3022 = vmatpush1.bf16.msra.mxu0 %v1367
  %3023 = vmatprep.subr.bf16.mxu0 %v1356
  %3024 = vmatpush1.bf16.msra.mxu0 %v1355
  %3025 = vmatprep.subr.bf16.mxu0 %v1344
  %3026 = vmatpush1.bf16.msra.mxu0 %v1343
  %3027 = vmatprep.subr.bf16.mxu0 %v1332
  %3028 = vmatpush1.bf16.msra.mxu0 %v1331
  %3029 = vmatprep.subr.bf16.mxu0 %v1320
  %3030 = vmatpush1.bf16.msra.mxu0 %v1319
  %3031 = vmatprep.subr.bf16.mxu0 %v1500
  %3032 = vmatpush2.bf16.msra.mxu0 %v1499
  %3033 = vmatprep.subr.bf16.mxu0 %v1488
  %3034 = vmatpush2.bf16.msra.mxu0 %v1487
  %3035 = vmatprep.subr.bf16.mxu0 %v1476
  %3036 = vmatpush2.bf16.msra.mxu0 %v1475
  %3037 = vmatprep.subr.bf16.mxu0 %v1464
  %3038 = vmatpush2.bf16.msra.mxu0 %v1463
  %3039 = vmatprep.subr.bf16.mxu0 %v1452
  %3040 = vmatpush2.bf16.msra.mxu0 %v1451
  %3041 = vmatprep.subr.bf16.mxu0 %v1440
  %3042 = vmatpush2.bf16.msra.mxu0 %v1439
  %3043 = vmatprep.subr.bf16.mxu0 %v1428
  %3044 = vmatpush2.bf16.msra.mxu0 %v1427
  %3045 = vmatprep.subr.bf16.mxu0 %v1416
  %3046 = vmatpush2.bf16.msra.mxu0 %v1415
  %3047 = vmatprep.mubr.bf16.mxu0 %v70
  %3048 = vmatmul.mubr.bf16.gmra.mxu0 %v69
  %v3049 = vpop.f32.mrf.mxu0
  %v3050 = vadd.f32 %v428, %v3049
  %v3051 = vpop.f32.mrf.mxu0
  %v3052 = vadd.f32 %v432, %v3051
  %v3053 = vpop.f32.mrf.mxu0
  %v3054 = vadd.f32 %v428, %v3053
  %v3055 = vpop.f32.mrf.mxu0
  %v3056 = vadd.f32 %v432, %v3055
  %3057 = vmatprep.mubr.bf16.mxu0 %v73
  %3058 = vmatmul.mubr.bf16.gmra.mxu0 %v72
  %v3059 = vpop.f32.mrf.mxu0
  %v3060 = vadd.f32 %v428, %v3059
  %v3061 = vpop.f32.mrf.mxu0
  %v3062 = vadd.f32 %v432, %v3061
  %v3063 = vpop.f32.mrf.mxu0
  %v3064 = vadd.f32 %v428, %v3063
  %v3065 = vpop.f32.mrf.mxu0
  %v3066 = vadd.f32 %v432, %v3065
  %3067 = vmatprep.mubr.bf16.mxu0 %v76
  %3068 = vmatmul.mubr.bf16.gmra.mxu0 %v75
  %v3069 = vpop.f32.mrf.mxu0
  %v3070 = vadd.f32 %v428, %v3069
  %v3071 = vpop.f32.mrf.mxu0
  %v3072 = vadd.f32 %v432, %v3071
  %v3073 = vpop.f32.mrf.mxu0
  %v3074 = vadd.f32 %v428, %v3073
  %v3075 = vpop.f32.mrf.mxu0
  %v3076 = vadd.f32 %v432, %v3075
  %3077 = vmatprep.mubr.bf16.mxu0 %v79
  %3078 = vmatmul.mubr.bf16.gmra.mxu0 %v78
  %v3079 = vpop.f32.mrf.mxu0
  %v3080 = vadd.f32 %v428, %v3079
  %v3081 = vpop.f32.mrf.mxu0
  %v3082 = vadd.f32 %v432, %v3081
  %v3083 = vpop.f32.mrf.mxu0
  %v3084 = vadd.f32 %v428, %v3083
  %v3085 = vpop.f32.mrf.mxu0
  %v3086 = vadd.f32 %v432, %v3085
  %3087 = vmatprep.mubr.bf16.mxu0 %v82
  %3088 = vmatmul.mubr.bf16.gmra.mxu0 %v81
  %v3089 = vpop.f32.mrf.mxu0
  %v3090 = vadd.f32 %v428, %v3089
  %v3091 = vpop.f32.mrf.mxu0
  %v3092 = vadd.f32 %v432, %v3091
  %v3093 = vpop.f32.mrf.mxu0
  %v3094 = vadd.f32 %v428, %v3093
  %v3095 = vpop.f32.mrf.mxu0
  %v3096 = vadd.f32 %v432, %v3095
  %3097 = vmatprep.mubr.bf16.mxu0 %v85
  %3098 = vmatmul.mubr.bf16.gmra.mxu0 %v84
  %v3099 = vpop.f32.mrf.mxu0
  %v3100 = vadd.f32 %v428, %v3099
  %v3101 = vpop.f32.mrf.mxu0
  %v3102 = vadd.f32 %v432, %v3101
  %v3103 = vpop.f32.mrf.mxu0
  %v3104 = vadd.f32 %v428, %v3103
  %v3105 = vpop.f32.mrf.mxu0
  %v3106 = vadd.f32 %v432, %v3105
  %3107 = vmatprep.mubr.bf16.mxu0 %v88
  %3108 = vmatmul.mubr.bf16.gmra.mxu0 %v87
  %v3109 = vpop.f32.mrf.mxu0
  %v3110 = vadd.f32 %v428, %v3109
  %v3111 = vpop.f32.mrf.mxu0
  %v3112 = vadd.f32 %v432, %v3111
  %v3113 = vpop.f32.mrf.mxu0
  %v3114 = vadd.f32 %v428, %v3113
  %v3115 = vpop.f32.mrf.mxu0
  %v3116 = vadd.f32 %v432, %v3115
  %3117 = vmatprep.mubr.bf16.mxu0 %v91
  %3118 = vmatmul.mubr.bf16.gmra.mxu0 %v90
  %v3119 = vpop.f32.mrf.mxu0
  %v3120 = vadd.f32 %v428, %v3119
  %v3121 = vpop.f32.mrf.mxu0
  %v3122 = vadd.f32 %v432, %v3121
  %v3123 = vpop.f32.mrf.mxu0
  %v3124 = vadd.f32 %v428, %v3123
  %v3125 = vpop.f32.mrf.mxu0
  %v3126 = vadd.f32 %v432, %v3125
  %3127 = vdwg.mxu0
  %3128 = vmatprep.subr.bf16.mxu0 %v1596
  %3129 = vmatpush1.bf16.msra.mxu0 %v1595
  %3130 = vmatprep.subr.bf16.mxu0 %v1584
  %3131 = vmatpush1.bf16.msra.mxu0 %v1583
  %3132 = vmatprep.subr.bf16.mxu0 %v1572
  %3133 = vmatpush1.bf16.msra.mxu0 %v1571
  %3134 = vmatprep.subr.bf16.mxu0 %v1560
  %3135 = vmatpush1.bf16.msra.mxu0 %v1559
  %3136 = vmatprep.subr.bf16.mxu0 %v1548
  %3137 = vmatpush1.bf16.msra.mxu0 %v1547
  %3138 = vmatprep.subr.bf16.mxu0 %v1536
  %3139 = vmatpush1.bf16.msra.mxu0 %v1535
  %3140 = vmatprep.subr.bf16.mxu0 %v1524
  %3141 = vmatpush1.bf16.msra.mxu0 %v1523
  %3142 = vmatprep.subr.bf16.mxu0 %v1512
  %3143 = vmatpush1.bf16.msra.mxu0 %v1511
  %3144 = vmatprep.subr.bf16.mxu0 0
  %3145 = vmatpush2.bf16.msra.mxu0 0
  %3146 = vmatprep.subr.bf16.mxu0 0
  %3147 = vmatpush2.bf16.msra.mxu0 0
  %3148 = vmatprep.subr.bf16.mxu0 0
  %3149 = vmatpush2.bf16.msra.mxu0 0
  %3150 = vmatprep.subr.bf16.mxu0 0
  %3151 = vmatpush2.bf16.msra.mxu0 0
  %3152 = vmatprep.subr.bf16.mxu0 0
  %3153 = vmatpush2.bf16.msra.mxu0 0
  %3154 = vmatprep.subr.bf16.mxu0 0
  %3155 = vmatpush2.bf16.msra.mxu0 0
  %3156 = vmatprep.subr.bf16.mxu0 0
  %3157 = vmatpush2.bf16.msra.mxu0 0
  %3158 = vmatprep.subr.bf16.mxu0 0
  %3159 = vmatpush2.bf16.msra.mxu0 0
  %3160 = vmatprep.mubr.bf16.mxu0 0
  %3161 = vmatmul.mubr.bf16.gmra.mxu0 %v71
  %v3162 = vpop.f32.mrf.mxu0
  %v3163 = vadd.f32 %v3050, %v3162
  %v3164 = vpop.f32.mrf.mxu0
  %v3165 = vadd.f32 %v3052, %v3164
  %v3166 = vpop.f32.mrf.mxu0
  %v3167 = vadd.f32 %v3054, %v3166
  %v3168 = vpop.f32.mrf.mxu0
  %v3169 = vadd.f32 %v3056, %v3168
  %3170 = vmatprep.mubr.bf16.mxu0 0
  %3171 = vmatmul.mubr.bf16.gmra.mxu0 %v74
  %v3172 = vpop.f32.mrf.mxu0
  %v3173 = vadd.f32 %v3060, %v3172
  %v3174 = vpop.f32.mrf.mxu0
  %v3175 = vadd.f32 %v3062, %v3174
  %v3176 = vpop.f32.mrf.mxu0
  %v3177 = vadd.f32 %v3064, %v3176
  %v3178 = vpop.f32.mrf.mxu0
  %v3179 = vadd.f32 %v3066, %v3178
  %3180 = vmatprep.mubr.bf16.mxu0 0
  %3181 = vmatmul.mubr.bf16.gmra.mxu0 %v77
  %v3182 = vpop.f32.mrf.mxu0
  %v3183 = vadd.f32 %v3070, %v3182
  %v3184 = vpop.f32.mrf.mxu0
  %v3185 = vadd.f32 %v3072, %v3184
  %v3186 = vpop.f32.mrf.mxu0
  %v3187 = vadd.f32 %v3074, %v3186
  %v3188 = vpop.f32.mrf.mxu0
  %v3189 = vadd.f32 %v3076, %v3188
  %3190 = vmatprep.mubr.bf16.mxu0 0
  %3191 = vmatmul.mubr.bf16.gmra.mxu0 %v80
  %v3192 = vpop.f32.mrf.mxu0
  %v3193 = vadd.f32 %v3080, %v3192
  %v3194 = vpop.f32.mrf.mxu0
  %v3195 = vadd.f32 %v3082, %v3194
  %v3196 = vpop.f32.mrf.mxu0
  %v3197 = vadd.f32 %v3084, %v3196
  %v3198 = vpop.f32.mrf.mxu0
  %v3199 = vadd.f32 %v3086, %v3198
  %3200 = vmatprep.mubr.bf16.mxu0 0
  %3201 = vmatmul.mubr.bf16.gmra.mxu0 %v83
  %v3202 = vpop.f32.mrf.mxu0
  %v3203 = vadd.f32 %v3090, %v3202
  %v3204 = vpop.f32.mrf.mxu0
  %v3205 = vadd.f32 %v3092, %v3204
  %v3206 = vpop.f32.mrf.mxu0
  %v3207 = vadd.f32 %v3094, %v3206
  %v3208 = vpop.f32.mrf.mxu0
  %v3209 = vadd.f32 %v3096, %v3208
  %3210 = vmatprep.mubr.bf16.mxu0 0
  %3211 = vmatmul.mubr.bf16.gmra.mxu0 %v86
  %v3212 = vpop.f32.mrf.mxu0
  %v3213 = vadd.f32 %v3100, %v3212
  %v3214 = vpop.f32.mrf.mxu0
  %v3215 = vadd.f32 %v3102, %v3214
  %v3216 = vpop.f32.mrf.mxu0
  %v3217 = vadd.f32 %v3104, %v3216
  %v3218 = vpop.f32.mrf.mxu0
  %v3219 = vadd.f32 %v3106, %v3218
  %3220 = vmatprep.mubr.bf16.mxu0 0
  %3221 = vmatmul.mubr.bf16.gmra.mxu0 %v89
  %v3222 = vpop.f32.mrf.mxu0
  %v3223 = vadd.f32 %v3110, %v3222
  %v3224 = vpop.f32.mrf.mxu0
  %v3225 = vadd.f32 %v3112, %v3224
  %v3226 = vpop.f32.mrf.mxu0
  %v3227 = vadd.f32 %v3114, %v3226
  %v3228 = vpop.f32.mrf.mxu0
  %v3229 = vadd.f32 %v3116, %v3228
  %3230 = vmatprep.mubr.bf16.mxu0 0
  %3231 = vmatmul.mubr.bf16.gmra.mxu0 %v92
  %v3232 = vpop.f32.mrf.mxu0
  %v3233 = vadd.f32 %v3120, %v3232
  %v3234 = vpop.f32.mrf.mxu0
  %v3235 = vadd.f32 %v3122, %v3234
  %v3236 = vpop.f32.mrf.mxu0
  %v3237 = vadd.f32 %v3124, %v3236
  %v3238 = vpop.f32.mrf.mxu0
  %v3239 = vadd.f32 %v3126, %v3238
  %3240 = vdwg.mxu0
  %v3241 = vmax.f32 %v2033, 0.0
  %v3242 = vmax.f32 %v2035, 0.0
  %v3243 = vmax.f32 %v2259, 0.0
  %v3244 = vmax.f32 %v2261, 0.0
  %v3245 = vmax.f32 %v2485, 0.0
  %v3246 = vmax.f32 %v2487, 0.0
  %v3247 = vmax.f32 %v2711, 0.0
  %v3248 = vmax.f32 %v2713, 0.0
  %v3249 = vmax.f32 %v2937, 0.0
  %v3250 = vmax.f32 %v2939, 0.0
  %v3251 = vmax.f32 %v3163, 0.0
  %v3252 = vmax.f32 %v3165, 0.0
  %v3253 = vmax.f32 %v2037, 0.0
  %v3254 = vmax.f32 %v2039, 0.0
  %v3255 = vmax.f32 %v2263, 0.0
  %v3256 = vmax.f32 %v2265, 0.0
  %v3257 = vmax.f32 %v2489, 0.0
  %v3258 = vmax.f32 %v2491, 0.0
  %v3259 = vmax.f32 %v2715, 0.0
  %v3260 = vmax.f32 %v2717, 0.0
  %v3261 = vmax.f32 %v2941, 0.0
  %v3262 = vmax.f32 %v2943, 0.0
  %v3263 = vmax.f32 %v3167, 0.0
  %v3264 = vmax.f32 %v3169, 0.0
  %v3265 = vmax.f32 %v2043, 0.0
  %v3266 = vmax.f32 %v2045, 0.0
  %v3267 = vmax.f32 %v2269, 0.0
  %v3268 = vmax.f32 %v2271, 0.0
  %v3269 = vmax.f32 %v2495, 0.0
  %v3270 = vmax.f32 %v2497, 0.0
  %v3271 = vmax.f32 %v2721, 0.0
  %v3272 = vmax.f32 %v2723, 0.0
  %v3273 = vmax.f32 %v2947, 0.0
  %v3274 = vmax.f32 %v2949, 0.0
  %v3275 = vmax.f32 %v3173, 0.0
  %v3276 = vmax.f32 %v3175, 0.0
  %v3277 = vmax.f32 %v2047, 0.0
  %v3278 = vmax.f32 %v2049, 0.0
  %v3279 = vmax.f32 %v2273, 0.0
  %v3280 = vmax.f32 %v2275, 0.0
  %v3281 = vmax.f32 %v2499, 0.0
  %v3282 = vmax.f32 %v2501, 0.0
  %v3283 = vmax.f32 %v2725, 0.0
  %v3284 = vmax.f32 %v2727, 0.0
  %v3285 = vmax.f32 %v2951, 0.0
  %v3286 = vmax.f32 %v2953, 0.0
  %v3287 = vmax.f32 %v3177, 0.0
  %v3288 = vmax.f32 %v3179, 0.0
  %v3289 = vmax.f32 %v2053, 0.0
  %v3290 = vmax.f32 %v2055, 0.0
  %v3291 = vmax.f32 %v2279, 0.0
  %v3292 = vmax.f32 %v2281, 0.0
  %v3293 = vmax.f32 %v2505, 0.0
  %v3294 = vmax.f32 %v2507, 0.0
  %v3295 = vmax.f32 %v2731, 0.0
  %v3296 = vmax.f32 %v2733, 0.0
  %v3297 = vmax.f32 %v2957, 0.0
  %v3298 = vmax.f32 %v2959, 0.0
  %v3299 = vmax.f32 %v3183, 0.0
  %v3300 = vmax.f32 %v3185, 0.0
  %v3301 = vmax.f32 %v2057, 0.0
  %v3302 = vmax.f32 %v2059, 0.0
  %v3303 = vmax.f32 %v2283, 0.0
  %v3304 = vmax.f32 %v2285, 0.0
  %v3305 = vmax.f32 %v2509, 0.0
  %v3306 = vmax.f32 %v2511, 0.0
  %v3307 = vmax.f32 %v2735, 0.0
  %v3308 = vmax.f32 %v2737, 0.0
  %v3309 = vmax.f32 %v2961, 0.0
  %v3310 = vmax.f32 %v2963, 0.0
  %v3311 = vmax.f32 %v3187, 0.0
  %v3312 = vmax.f32 %v3189, 0.0
  %v3313 = vmax.f32 %v2063, 0.0
  %v3314 = vmax.f32 %v2065, 0.0
  %v3315 = vmax.f32 %v2289, 0.0
  %v3316 = vmax.f32 %v2291, 0.0
  %v3317 = vmax.f32 %v2515, 0.0
  %v3318 = vmax.f32 %v2517, 0.0
  %v3319 = vmax.f32 %v2741, 0.0
  %v3320 = vmax.f32 %v2743, 0.0
  %v3321 = vmax.f32 %v2967, 0.0
  %v3322 = vmax.f32 %v2969, 0.0
  %v3323 = vmax.f32 %v3193, 0.0
  %v3324 = vmax.f32 %v3195, 0.0
  %v3325 = vmax.f32 %v2067, 0.0
  %v3326 = vmax.f32 %v2069, 0.0
  %v3327 = vmax.f32 %v2293, 0.0
  %v3328 = vmax.f32 %v2295, 0.0
  %v3329 = vmax.f32 %v2519, 0.0
  %v3330 = vmax.f32 %v2521, 0.0
  %v3331 = vmax.f32 %v2745, 0.0
  %v3332 = vmax.f32 %v2747, 0.0
  %v3333 = vmax.f32 %v2971, 0.0
  %v3334 = vmax.f32 %v2973, 0.0
  %v3335 = vmax.f32 %v3197, 0.0
  %v3336 = vmax.f32 %v3199, 0.0
  %v3337 = vmax.f32 %v2073, 0.0
  %v3338 = vmax.f32 %v2075, 0.0
  %v3339 = vmax.f32 %v2299, 0.0
  %v3340 = vmax.f32 %v2301, 0.0
  %v3341 = vmax.f32 %v2525, 0.0
  %v3342 = vmax.f32 %v2527, 0.0
  %v3343 = vmax.f32 %v2751, 0.0
  %v3344 = vmax.f32 %v2753, 0.0
  %v3345 = vmax.f32 %v2977, 0.0
  %v3346 = vmax.f32 %v2979, 0.0
  %v3347 = vmax.f32 %v3203, 0.0
  %v3348 = vmax.f32 %v3205, 0.0
  %v3349 = vmax.f32 %v2077, 0.0
  %v3350 = vmax.f32 %v2079, 0.0
  %v3351 = vmax.f32 %v2303, 0.0
  %v3352 = vmax.f32 %v2305, 0.0
  %v3353 = vmax.f32 %v2529, 0.0
  %v3354 = vmax.f32 %v2531, 0.0
  %v3355 = vmax.f32 %v2755, 0.0
  %v3356 = vmax.f32 %v2757, 0.0
  %v3357 = vmax.f32 %v2981, 0.0
  %v3358 = vmax.f32 %v2983, 0.0
  %v3359 = vmax.f32 %v3207, 0.0
  %v3360 = vmax.f32 %v3209, 0.0
  %v3361 = vmax.f32 %v2083, 0.0
  %v3362 = vmax.f32 %v2085, 0.0
  %v3363 = vmax.f32 %v2309, 0.0
  %v3364 = vmax.f32 %v2311, 0.0
  %v3365 = vmax.f32 %v2535, 0.0
  %v3366 = vmax.f32 %v2537, 0.0
  %v3367 = vmax.f32 %v2761, 0.0
  %v3368 = vmax.f32 %v2763, 0.0
  %v3369 = vmax.f32 %v2987, 0.0
  %v3370 = vmax.f32 %v2989, 0.0
  %v3371 = vmax.f32 %v3213, 0.0
  %v3372 = vmax.f32 %v3215, 0.0
  %v3373 = vmax.f32 %v2087, 0.0
  %v3374 = vmax.f32 %v2089, 0.0
  %v3375 = vmax.f32 %v2313, 0.0
  %v3376 = vmax.f32 %v2315, 0.0
  %v3377 = vmax.f32 %v2539, 0.0
  %v3378 = vmax.f32 %v2541, 0.0
  %v3379 = vmax.f32 %v2765, 0.0
  %v3380 = vmax.f32 %v2767, 0.0
  %v3381 = vmax.f32 %v2991, 0.0
  %v3382 = vmax.f32 %v2993, 0.0
  %v3383 = vmax.f32 %v3217, 0.0
  %v3384 = vmax.f32 %v3219, 0.0
  %v3385 = vmax.f32 %v2093, 0.0
  %v3386 = vmax.f32 %v2095, 0.0
  %v3387 = vmax.f32 %v2319, 0.0
  %v3388 = vmax.f32 %v2321, 0.0
  %v3389 = vmax.f32 %v2545, 0.0
  %v3390 = vmax.f32 %v2547, 0.0
  %v3391 = vmax.f32 %v2771, 0.0
  %v3392 = vmax.f32 %v2773, 0.0
  %v3393 = vmax.f32 %v2997, 0.0
  %v3394 = vmax.f32 %v2999, 0.0
  %v3395 = vmax.f32 %v3223, 0.0
  %v3396 = vmax.f32 %v3225, 0.0
  %v3397 = vmax.f32 %v2097, 0.0
  %v3398 = vmax.f32 %v2099, 0.0
  %v3399 = vmax.f32 %v2323, 0.0
  %v3400 = vmax.f32 %v2325, 0.0
  %v3401 = vmax.f32 %v2549, 0.0
  %v3402 = vmax.f32 %v2551, 0.0
  %v3403 = vmax.f32 %v2775, 0.0
  %v3404 = vmax.f32 %v2777, 0.0
  %v3405 = vmax.f32 %v3001, 0.0
  %v3406 = vmax.f32 %v3003, 0.0
  %v3407 = vmax.f32 %v3227, 0.0
  %v3408 = vmax.f32 %v3229, 0.0
  %v3409 = vmax.f32 %v2103, 0.0
  %v3410 = vmax.f32 %v2105, 0.0
  %v3411 = vmax.f32 %v2329, 0.0
  %v3412 = vmax.f32 %v2331, 0.0
  %v3413 = vmax.f32 %v2555, 0.0
  %v3414 = vmax.f32 %v2557, 0.0
  %v3415 = vmax.f32 %v2781, 0.0
  %v3416 = vmax.f32 %v2783, 0.0
  %v3417 = vmax.f32 %v3007, 0.0
  %v3418 = vmax.f32 %v3009, 0.0
  %v3419 = vmax.f32 %v3233, 0.0
  %v3420 = vmax.f32 %v3235, 0.0
  %v3421 = vmax.f32 %v2107, 0.0
  %v3422 = vmax.f32 %v2109, 0.0
  %v3423 = vmax.f32 %v2333, 0.0
  %v3424 = vmax.f32 %v2335, 0.0
  %v3425 = vmax.f32 %v2559, 0.0
  %v3426 = vmax.f32 %v2561, 0.0
  %v3427 = vmax.f32 %v2785, 0.0
  %v3428 = vmax.f32 %v2787, 0.0
  %v3429 = vmax.f32 %v3011, 0.0
  %v3430 = vmax.f32 %v3013, 0.0
  %v3431 = vmax.f32 %v3237, 0.0
  %v3432 = vmax.f32 %v3239, 0.0
  %v3433 = vpack.c.bf16 %v3253, %v3241
  %v3434 = vpack.c.bf16 %v3254, %v3242
  %v3435 = vpack.c.bf16 %v3255, %v3243
  %v3436 = vpack.c.bf16 %v3256, %v3244
  %v3437 = vpack.c.bf16 %v3257, %v3245
  %v3438 = vpack.c.bf16 %v3258, %v3246
  %v3439 = vpack.c.bf16 %v3259, %v3247
  %v3440 = vpack.c.bf16 %v3260, %v3248
  %v3441 = vpack.c.bf16 %v3261, %v3249
  %v3442 = vpack.c.bf16 %v3262, %v3250
  %v3443 = vpack.c.bf16 %v3263, %v3251
  %v3444 = vpack.c.bf16 %v3264, %v3252
  %v3445 = vpack.c.bf16 %v3277, %v3265
  %v3446 = vpack.c.bf16 %v3278, %v3266
  %v3447 = vpack.c.bf16 %v3279, %v3267
  %v3448 = vpack.c.bf16 %v3280, %v3268
  %v3449 = vpack.c.bf16 %v3281, %v3269
  %v3450 = vpack.c.bf16 %v3282, %v3270
  %v3451 = vpack.c.bf16 %v3283, %v3271
  %v3452 = vpack.c.bf16 %v3284, %v3272
  %v3453 = vpack.c.bf16 %v3285, %v3273
  %v3454 = vpack.c.bf16 %v3286, %v3274
  %v3455 = vpack.c.bf16 %v3287, %v3275
  %v3456 = vpack.c.bf16 %v3288, %v3276
  %v3457 = vpack.c.bf16 %v3301, %v3289
  %v3458 = vpack.c.bf16 %v3302, %v3290
  %v3459 = vpack.c.bf16 %v3303, %v3291
  %v3460 = vpack.c.bf16 %v3304, %v3292
  %v3461 = vpack.c.bf16 %v3305, %v3293
  %v3462 = vpack.c.bf16 %v3306, %v3294
  %v3463 = vpack.c.bf16 %v3307, %v3295
  %v3464 = vpack.c.bf16 %v3308, %v3296
  %v3465 = vpack.c.bf16 %v3309, %v3297
  %v3466 = vpack.c.bf16 %v3310, %v3298
  %v3467 = vpack.c.bf16 %v3311, %v3299
  %v3468 = vpack.c.bf16 %v3312, %v3300
  %v3469 = vpack.c.bf16 %v3325, %v3313
  %v3470 = vpack.c.bf16 %v3326, %v3314
  %v3471 = vpack.c.bf16 %v3327, %v3315
  %v3472 = vpack.c.bf16 %v3328, %v3316
  %v3473 = vpack.c.bf16 %v3329, %v3317
  %v3474 = vpack.c.bf16 %v3330, %v3318
  %v3475 = vpack.c.bf16 %v3331, %v3319
  %v3476 = vpack.c.bf16 %v3332, %v3320
  %v3477 = vpack.c.bf16 %v3333, %v3321
  %v3478 = vpack.c.bf16 %v3334, %v3322
  %v3479 = vpack.c.bf16 %v3335, %v3323
  %v3480 = vpack.c.bf16 %v3336, %v3324
  %v3481 = vpack.c.bf16 %v3349, %v3337
  %v3482 = vpack.c.bf16 %v3350, %v3338
  %v3483 = vpack.c.bf16 %v3351, %v3339
  %v3484 = vpack.c.bf16 %v3352, %v3340
  %v3485 = vpack.c.bf16 %v3353, %v3341
  %v3486 = vpack.c.bf16 %v3354, %v3342
  %v3487 = vpack.c.bf16 %v3355, %v3343
  %v3488 = vpack.c.bf16 %v3356, %v3344
  %v3489 = vpack.c.bf16 %v3357, %v3345
  %v3490 = vpack.c.bf16 %v3358, %v3346
  %v3491 = vpack.c.bf16 %v3359, %v3347
  %v3492 = vpack.c.bf16 %v3360, %v3348
  %v3493 = vpack.c.bf16 %v3373, %v3361
  %v3494 = vpack.c.bf16 %v3374, %v3362
  %v3495 = vpack.c.bf16 %v3375, %v3363
  %v3496 = vpack.c.bf16 %v3376, %v3364
  %v3497 = vpack.c.bf16 %v3377, %v3365
  %v3498 = vpack.c.bf16 %v3378, %v3366
  %v3499 = vpack.c.bf16 %v3379, %v3367
  %v3500 = vpack.c.bf16 %v3380, %v3368
  %v3501 = vpack.c.bf16 %v3381, %v3369
  %v3502 = vpack.c.bf16 %v3382, %v3370
  %v3503 = vpack.c.bf16 %v3383, %v3371
  %v3504 = vpack.c.bf16 %v3384, %v3372
  %v3505 = vpack.c.bf16 %v3397, %v3385
  %v3506 = vpack.c.bf16 %v3398, %v3386
  %v3507 = vpack.c.bf16 %v3399, %v3387
  %v3508 = vpack.c.bf16 %v3400, %v3388
  %v3509 = vpack.c.bf16 %v3401, %v3389
  %v3510 = vpack.c.bf16 %v3402, %v3390
  %v3511 = vpack.c.bf16 %v3403, %v3391
  %v3512 = vpack.c.bf16 %v3404, %v3392
  %v3513 = vpack.c.bf16 %v3405, %v3393
  %v3514 = vpack.c.bf16 %v3406, %v3394
  %v3515 = vpack.c.bf16 %v3407, %v3395
  %v3516 = vpack.c.bf16 %v3408, %v3396
  %v3517 = vpack.c.bf16 %v3421, %v3409
  %v3518 = vpack.c.bf16 %v3422, %v3410
  %v3519 = vpack.c.bf16 %v3423, %v3411
  %v3520 = vpack.c.bf16 %v3424, %v3412
  %v3521 = vpack.c.bf16 %v3425, %v3413
  %v3522 = vpack.c.bf16 %v3426, %v3414
  %v3523 = vpack.c.bf16 %v3427, %v3415
  %v3524 = vpack.c.bf16 %v3428, %v3416
  %v3525 = vpack.c.bf16 %v3429, %v3417
  %v3526 = vpack.c.bf16 %v3430, %v3418
  %v3527 = vpack.c.bf16 %v3431, %v3419
  %v3528 = vpack.c.bf16 %v3432, %v3420
  %v3529 = vld [vmem:[%s3] sm:$0xff]
  %v3530 = vld [vmem:[%s3 + $0x8] sm:$0xf]
  %v3531 = vld [vmem:[%s3 + $0xc] sm:$0xff]
  %v3532 = vld [vmem:[%s3 + $0x14] sm:$0xf]
  %v3533 = vld [vmem:[%s3 + $0x18] sm:$0xff]
  %v3534 = vld [vmem:[%s3 + $0x20] sm:$0xf]
  %v3535 = vld [vmem:[%s3 + $0x24] sm:$0xff]
  %v3536 = vld [vmem:[%s3 + $0x2c] sm:$0xf]
  %v3537 = vld [vmem:[%s3 + $0x30] sm:$0xff]
  %v3538 = vld [vmem:[%s3 + $0x38] sm:$0xf]
  %v3539 = vld [vmem:[%s3 + $0x3c] sm:$0xff]
  %v3540 = vld [vmem:[%s3 + $0x44] sm:$0xf]
  %v3541 = vld [vmem:[%s3 + $0x48] sm:$0xff]
  %v3542 = vld [vmem:[%s3 + $0x50] sm:$0xf]
  %v3543 = vld [vmem:[%s3 + $0x54] sm:$0xff]
  %v3544 = vld [vmem:[%s3 + $0x5c] sm:$0xf]
  %v3545 = vld [vmem:[%s3 + $0x60] sm:$0xff]
  %v3546 = vld [vmem:[%s3 + $0x68] sm:$0xf]
  %v3547 = vld [vmem:[%s3 + $0x6c] sm:$0xff]
  %v3548 = vld [vmem:[%s3 + $0x74] sm:$0xf]
  %v3549 = vld [vmem:[%s3 + $0x78] sm:$0xff]
  %v3550 = vld [vmem:[%s3 + $0x80] sm:$0xf]
  %v3551 = vld [vmem:[%s3 + $0x84] sm:$0xff]
  %v3552 = vld [vmem:[%s3 + $0x8c] sm:$0xf]
  %v3553 = vld [vmem:[%s3 + $0x90] sm:$0xff]
  %v3554 = vld [vmem:[%s3 + $0x98] sm:$0xf]
  %v3555 = vld [vmem:[%s3 + $0x9c] sm:$0xff]
  %v3556 = vld [vmem:[%s3 + $0xa4] sm:$0xf]
  %v3557 = vld [vmem:[%s3 + $0xa8] sm:$0xff]
  %v3558 = vld [vmem:[%s3 + $0xb0] sm:$0xf]
  %v3559 = vld [vmem:[%s3 + $0xb4] sm:$0xff]
  %v3560 = vld [vmem:[%s3 + $0xbc] sm:$0xf]
  %v3561 = vld [vmem:[%s3 + $0xc0] sm:$0xff]
  %v3562 = vld [vmem:[%s3 + $0xc8] sm:$0xf]
  %v3563 = vld [vmem:[%s3 + $0xcc] sm:$0xff]
  %v3564 = vld [vmem:[%s3 + $0xd4] sm:$0xf]
  %v3565 = vld [vmem:[%s3 + $0xd8] sm:$0xff]
  %v3566 = vld [vmem:[%s3 + $0xe0] sm:$0xf]
  %v3567 = vld [vmem:[%s3 + $0xe4] sm:$0xff]
  %v3568 = vld [vmem:[%s3 + $0xec] sm:$0xf]
  %v3569 = vld [vmem:[%s3 + $0xf0] sm:$0xff]
  %v3570 = vld [vmem:[%s3 + $0xf8] sm:$0xf]
  %v3571 = vld [vmem:[%s3 + $0xfc] sm:$0xff]
  %v3572 = vld [vmem:[%s3 + $0x104] sm:$0xf]
  %v3573 = vld [vmem:[%s3 + $0x108] sm:$0xff]
  %v3574 = vld [vmem:[%s3 + $0x110] sm:$0xf]
  %v3575 = vld [vmem:[%s3 + $0x114] sm:$0xff]
  %v3576 = vld [vmem:[%s3 + $0x11c] sm:$0xf]
  %v3577 = vld [vmem:[%s3 + $0x120] sm:$0xff]
  %v3578 = vld [vmem:[%s3 + $0x128] sm:$0xf]
  %v3579 = vld [vmem:[%s3 + $0x12c] sm:$0xff]
  %v3580 = vld [vmem:[%s3 + $0x134] sm:$0xf]
  %v3581 = vld [vmem:[%s3 + $0x138] sm:$0xff]
  %v3582 = vld [vmem:[%s3 + $0x140] sm:$0xf]
  %v3583 = vld [vmem:[%s3 + $0x144] sm:$0xff]
  %v3584 = vld [vmem:[%s3 + $0x14c] sm:$0xf]
  %v3585 = vld [vmem:[%s3 + $0x150] sm:$0xff]
  %v3586 = vld [vmem:[%s3 + $0x158] sm:$0xf]
  %v3587 = vld [vmem:[%s3 + $0x15c] sm:$0xff]
  %v3588 = vld [vmem:[%s3 + $0x164] sm:$0xf]
  %v3589 = vld [vmem:[%s3 + $0x168] sm:$0xff]
  %v3590 = vld [vmem:[%s3 + $0x170] sm:$0xf]
  %v3591 = vld [vmem:[%s3 + $0x174] sm:$0xff]
  %v3592 = vld [vmem:[%s3 + $0x17c] sm:$0xf]
  %v3593 = vld [vmem:[%s3 + $0x180] sm:$0xff]
  %v3594 = vld [vmem:[%s3 + $0x188] sm:$0xf]
  %v3595 = vld [vmem:[%s3 + $0x18c] sm:$0xff]
  %v3596 = vld [vmem:[%s3 + $0x194] sm:$0xf]
  %v3597 = vld [vmem:[%s3 + $0x198] sm:$0xff]
  %v3598 = vld [vmem:[%s3 + $0x1a0] sm:$0xf]
  %v3599 = vld [vmem:[%s3 + $0x1a4] sm:$0xff]
  %v3600 = vld [vmem:[%s3 + $0x1ac] sm:$0xf]
  %v3601 = vld [vmem:[%s3 + $0x1b0] sm:$0xff]
  %v3602 = vld [vmem:[%s3 + $0x1b8] sm:$0xf]
  %v3603 = vld [vmem:[%s3 + $0x1bc] sm:$0xff]
  %v3604 = vld [vmem:[%s3 + $0x1c4] sm:$0xf]
  %v3605 = vld [vmem:[%s3 + $0x1c8] sm:$0xff]
  %v3606 = vld [vmem:[%s3 + $0x1d0] sm:$0xf]
  %v3607 = vld [vmem:[%s3 + $0x1d4] sm:$0xff]
  %v3608 = vld [vmem:[%s3 + $0x1dc] sm:$0xf]
  %v3609 = vld [vmem:[%s3 + $0x1e0] sm:$0xff]
  %v3610 = vld [vmem:[%s3 + $0x1e8] sm:$0xf]
  %v3611 = vld [vmem:[%s3 + $0x1ec] sm:$0xff]
  %v3612 = vld [vmem:[%s3 + $0x1f4] sm:$0xf]
  %v3613 = vld [vmem:[%s3 + $0x1f8] sm:$0xff]
  %v3614 = vld [vmem:[%s3 + $0x200] sm:$0xf]
  %v3615 = vld [vmem:[%s3 + $0x204] sm:$0xff]
  %v3616 = vld [vmem:[%s3 + $0x20c] sm:$0xf]
  %v3617 = vld [vmem:[%s3 + $0x210] sm:$0xff]
  %v3618 = vld [vmem:[%s3 + $0x218] sm:$0xf]
  %v3619 = vld [vmem:[%s3 + $0x21c] sm:$0xff]
  %v3620 = vld [vmem:[%s3 + $0x224] sm:$0xf]
  %v3621 = vld [vmem:[%s3 + $0x228] sm:$0xff]
  %v3622 = vld [vmem:[%s3 + $0x230] sm:$0xf]
  %v3623 = vld [vmem:[%s3 + $0x234] sm:$0xff]
  %v3624 = vld [vmem:[%s3 + $0x23c] sm:$0xf]
  %v3625 = vld [vmem:[%s3 + $0x240] sm:$0xff]
  %v3626 = vld [vmem:[%s3 + $0x248] sm:$0xf]
  %v3627 = vld [vmem:[%s3 + $0x24c] sm:$0xff]
  %v3628 = vld [vmem:[%s3 + $0x254] sm:$0xf]
  %v3629 = vld [vmem:[%s3 + $0x258] sm:$0xff]
  %v3630 = vld [vmem:[%s3 + $0x260] sm:$0xf]
  %v3631 = vld [vmem:[%s3 + $0x264] sm:$0xff]
  %v3632 = vld [vmem:[%s3 + $0x26c] sm:$0xf]
  %v3633 = vld [vmem:[%s3 + $0x270] sm:$0xff]
  %v3634 = vld [vmem:[%s3 + $0x278] sm:$0xf]
  %v3635 = vld [vmem:[%s3 + $0x27c] sm:$0xff]
  %v3636 = vld [vmem:[%s3 + $0x284] sm:$0xf]
  %v3637 = vld [vmem:[%s3 + $0x288] sm:$0xff]
  %v3638 = vld [vmem:[%s3 + $0x290] sm:$0xf]
  %v3639 = vld [vmem:[%s3 + $0x294] sm:$0xff]
  %v3640 = vld [vmem:[%s3 + $0x29c] sm:$0xf]
  %v3641 = vld [vmem:[%s3 + $0x2a0] sm:$0xff]
  %v3642 = vld [vmem:[%s3 + $0x2a8] sm:$0xf]
  %v3643 = vld [vmem:[%s3 + $0x2ac] sm:$0xff]
  %v3644 = vld [vmem:[%s3 + $0x2b4] sm:$0xf]
  %v3645 = vld [vmem:[%s3 + $0x2b8] sm:$0xff]
  %v3646 = vld [vmem:[%s3 + $0x2c0] sm:$0xf]
  %v3647 = vld [vmem:[%s3 + $0x2c4] sm:$0xff]
  %v3648 = vld [vmem:[%s3 + $0x2cc] sm:$0xf]
  %v3649 = vld [vmem:[%s3 + $0x2d0] sm:$0xff]
  %v3650 = vld [vmem:[%s3 + $0x2d8] sm:$0xf]
  %v3651 = vld [vmem:[%s3 + $0x2dc] sm:$0xff]
  %v3652 = vld [vmem:[%s3 + $0x2e4] sm:$0xf]
  %v3653 = vld [vmem:[%s3 + $0x2e8] sm:$0xff]
  %v3654 = vld [vmem:[%s3 + $0x2f0] sm:$0xf]
  %v3655 = vld [vmem:[%s3 + $0x2f4] sm:$0xff]
  %v3656 = vld [vmem:[%s3 + $0x2fc] sm:$0xf]
  %v3657 = vld [vmem:[%s3 + $0x300] sm:$0xff]
  %v3658 = vld [vmem:[%s3 + $0x308] sm:$0xf]
  %v3659 = vld [vmem:[%s3 + $0x30c] sm:$0xff]
  %v3660 = vld [vmem:[%s3 + $0x314] sm:$0xf]
  %v3661 = vld [vmem:[%s3 + $0x318] sm:$0xff]
  %v3662 = vld [vmem:[%s3 + $0x320] sm:$0xf]
  %v3663 = vld [vmem:[%s3 + $0x324] sm:$0xff]
  %v3664 = vld [vmem:[%s3 + $0x32c] sm:$0xf]
  %v3665 = vld [vmem:[%s3 + $0x330] sm:$0xff]
  %v3666 = vld [vmem:[%s3 + $0x338] sm:$0xf]
  %v3667 = vld [vmem:[%s3 + $0x33c] sm:$0xff]
  %v3668 = vld [vmem:[%s3 + $0x344] sm:$0xf]
  %v3669 = vld [vmem:[%s3 + $0x348] sm:$0xff]
  %v3670 = vld [vmem:[%s3 + $0x350] sm:$0xf]
  %v3671 = vld [vmem:[%s3 + $0x354] sm:$0xff]
  %v3672 = vld [vmem:[%s3 + $0x35c] sm:$0xf]
  %v3673 = vld [vmem:[%s3 + $0x360] sm:$0xff]
  %v3674 = vld [vmem:[%s3 + $0x368] sm:$0xf]
  %v3675 = vld [vmem:[%s3 + $0x36c] sm:$0xff]
  %v3676 = vld [vmem:[%s3 + $0x374] sm:$0xf]
  %v3677 = vld [vmem:[%s3 + $0x378] sm:$0xff]
  %v3678 = vld [vmem:[%s3 + $0x380] sm:$0xf]
  %v3679 = vld [vmem:[%s3 + $0x384] sm:$0xff]
  %v3680 = vld [vmem:[%s3 + $0x38c] sm:$0xf]
  %v3681 = vld [vmem:[%s3 + $0x390] sm:$0xff]
  %v3682 = vld [vmem:[%s3 + $0x398] sm:$0xf]
  %v3683 = vld [vmem:[%s3 + $0x39c] sm:$0xff]
  %v3684 = vld [vmem:[%s3 + $0x3a4] sm:$0xf]
  %v3685 = vld [vmem:[%s3 + $0x3a8] sm:$0xff]
  %v3686 = vld [vmem:[%s3 + $0x3b0] sm:$0xf]
  %v3687 = vld [vmem:[%s3 + $0x3b4] sm:$0xff]
  %v3688 = vld [vmem:[%s3 + $0x3bc] sm:$0xf]
  %v3689 = vld [vmem:[%s3 + $0x3c0] sm:$0xff]
  %v3690 = vld [vmem:[%s3 + $0x3c8] sm:$0xf]
  %v3691 = vld [vmem:[%s3 + $0x3cc] sm:$0xff]
  %v3692 = vld [vmem:[%s3 + $0x3d4] sm:$0xf]
  %v3693 = vld [vmem:[%s3 + $0x3d8] sm:$0xff]
  %v3694 = vld [vmem:[%s3 + $0x3e0] sm:$0xf]
  %v3695 = vld [vmem:[%s3 + $0x3e4] sm:$0xff]
  %v3696 = vld [vmem:[%s3 + $0x3ec] sm:$0xf]
  %v3697 = vld [vmem:[%s3 + $0x3f0] sm:$0xff]
  %v3698 = vld [vmem:[%s3 + $0x3f8] sm:$0xf]
  %v3699 = vld [vmem:[%s3 + $0x3fc] sm:$0xff]
  %v3700 = vld [vmem:[%s3 + $0x404] sm:$0xf]
  %v3701 = vld [vmem:[%s3 + $0x408] sm:$0xff]
  %v3702 = vld [vmem:[%s3 + $0x410] sm:$0xf]
  %v3703 = vld [vmem:[%s3 + $0x414] sm:$0xff]
  %v3704 = vld [vmem:[%s3 + $0x41c] sm:$0xf]
  %v3705 = vld [vmem:[%s3 + $0x420] sm:$0xff]
  %v3706 = vld [vmem:[%s3 + $0x428] sm:$0xf]
  %v3707 = vld [vmem:[%s3 + $0x42c] sm:$0xff]
  %v3708 = vld [vmem:[%s3 + $0x434] sm:$0xf]
  %v3709 = vld [vmem:[%s3 + $0x438] sm:$0xff]
  %v3710 = vld [vmem:[%s3 + $0x440] sm:$0xf]
  %v3711 = vld [vmem:[%s3 + $0x444] sm:$0xff]
  %v3712 = vld [vmem:[%s3 + $0x44c] sm:$0xf]
  %v3713 = vld [vmem:[%s3 + $0x450] sm:$0xff]
  %v3714 = vld [vmem:[%s3 + $0x458] sm:$0xf]
  %v3715 = vld [vmem:[%s3 + $0x45c] sm:$0xff]
  %v3716 = vld [vmem:[%s3 + $0x464] sm:$0xf]
  %v3717 = vld [vmem:[%s3 + $0x468] sm:$0xff]
  %v3718 = vld [vmem:[%s3 + $0x470] sm:$0xf]
  %v3719 = vld [vmem:[%s3 + $0x474] sm:$0xff]
  %v3720 = vld [vmem:[%s3 + $0x47c] sm:$0xf]
  %v3721 = vld [vmem:[%s3 + $0x480] sm:$0xff]
  %v3722 = vld [vmem:[%s3 + $0x488] sm:$0xf]
  %v3723 = vld [vmem:[%s3 + $0x48c] sm:$0xff]
  %v3724 = vld [vmem:[%s3 + $0x494] sm:$0xf]
  %v3725 = vld [vmem:[%s3 + $0x498] sm:$0xff]
  %v3726 = vld [vmem:[%s3 + $0x4a0] sm:$0xf]
  %v3727 = vld [vmem:[%s3 + $0x4a4] sm:$0xff]
  %v3728 = vld [vmem:[%s3 + $0x4ac] sm:$0xf]
  %v3729 = vld [vmem:[%s3 + $0x4b0] sm:$0xff]
  %v3730 = vld [vmem:[%s3 + $0x4b8] sm:$0xf]
  %v3731 = vld [vmem:[%s3 + $0x4bc] sm:$0xff]
  %v3732 = vld [vmem:[%s3 + $0x4c4] sm:$0xf]
  %v3733 = vld [vmem:[%s3 + $0x4c8] sm:$0xff]
  %v3734 = vld [vmem:[%s3 + $0x4d0] sm:$0xf]
  %v3735 = vld [vmem:[%s3 + $0x4d4] sm:$0xff]
  %v3736 = vld [vmem:[%s3 + $0x4dc] sm:$0xf]
  %v3737 = vld [vmem:[%s3 + $0x4e0] sm:$0xff]
  %v3738 = vld [vmem:[%s3 + $0x4e8] sm:$0xf]
  %v3739 = vld [vmem:[%s3 + $0x4ec] sm:$0xff]
  %v3740 = vld [vmem:[%s3 + $0x4f4] sm:$0xf]
  %v3741 = vld [vmem:[%s3 + $0x4f8] sm:$0xff]
  %v3742 = vld [vmem:[%s3 + $0x500] sm:$0xf]
  %v3743 = vld [vmem:[%s3 + $0x504] sm:$0xff]
  %v3744 = vld [vmem:[%s3 + $0x50c] sm:$0xf]
  %v3745 = vld [vmem:[%s3 + $0x510] sm:$0xff]
  %v3746 = vld [vmem:[%s3 + $0x518] sm:$0xf]
  %v3747 = vld [vmem:[%s3 + $0x51c] sm:$0xff]
  %v3748 = vld [vmem:[%s3 + $0x524] sm:$0xf]
  %v3749 = vld [vmem:[%s3 + $0x528] sm:$0xff]
  %v3750 = vld [vmem:[%s3 + $0x530] sm:$0xf]
  %v3751 = vld [vmem:[%s3 + $0x534] sm:$0xff]
  %v3752 = vld [vmem:[%s3 + $0x53c] sm:$0xf]
  %v3753 = vld [vmem:[%s3 + $0x540] sm:$0xff]
  %v3754 = vld [vmem:[%s3 + $0x548] sm:$0xf]
  %v3755 = vld [vmem:[%s3 + $0x54c] sm:$0xff]
  %v3756 = vld [vmem:[%s3 + $0x554] sm:$0xf]
  %v3757 = vld [vmem:[%s3 + $0x558] sm:$0xff]
  %v3758 = vld [vmem:[%s3 + $0x560] sm:$0xf]
  %v3759 = vld [vmem:[%s3 + $0x564] sm:$0xff]
  %v3760 = vld [vmem:[%s3 + $0x56c] sm:$0xf]
  %v3761 = vld [vmem:[%s3 + $0x570] sm:$0xff]
  %v3762 = vld [vmem:[%s3 + $0x578] sm:$0xf]
  %v3763 = vld [vmem:[%s3 + $0x57c] sm:$0xff]
  %v3764 = vld [vmem:[%s3 + $0x584] sm:$0xf]
  %v3765 = vld [vmem:[%s3 + $0x588] sm:$0xff]
  %v3766 = vld [vmem:[%s3 + $0x590] sm:$0xf]
  %v3767 = vld [vmem:[%s3 + $0x594] sm:$0xff]
  %v3768 = vld [vmem:[%s3 + $0x59c] sm:$0xf]
  %v3769 = vld [vmem:[%s3 + $0x5a0] sm:$0xff]
  %v3770 = vld [vmem:[%s3 + $0x5a8] sm:$0xf]
  %v3771 = vld [vmem:[%s3 + $0x5ac] sm:$0xff]
  %v3772 = vld [vmem:[%s3 + $0x5b4] sm:$0xf]
  %v3773 = vld [vmem:[%s3 + $0x5b8] sm:$0xff]
  %v3774 = vld [vmem:[%s3 + $0x5c0] sm:$0xf]
  %v3775 = vld [vmem:[%s3 + $0x5c4] sm:$0xff]
  %v3776 = vld [vmem:[%s3 + $0x5cc] sm:$0xf]
  %v3777 = vld [vmem:[%s3 + $0x5d0] sm:$0xff]
  %v3778 = vld [vmem:[%s3 + $0x5d8] sm:$0xf]
  %v3779 = vld [vmem:[%s3 + $0x5dc] sm:$0xff]
  %v3780 = vld [vmem:[%s3 + $0x5e4] sm:$0xf]
  %v3781 = vld [vmem:[%s3 + $0x5e8] sm:$0xff]
  %v3782 = vld [vmem:[%s3 + $0x5f0] sm:$0xf]
  %v3783 = vld [vmem:[%s3 + $0x5f4] sm:$0xff]
  %v3784 = vld [vmem:[%s3 + $0x5fc] sm:$0xf]
  %v3785 = vld [vmem:[%s3 + $0x600] sm:$0xff]
  %v3786 = vld [vmem:[%s3 + $0x608] sm:$0xf]
  %v3787 = vld [vmem:[%s3 + $0x60c] sm:$0xff]
  %v3788 = vld [vmem:[%s3 + $0x614] sm:$0xf]
  %v3789 = vld [vmem:[%s3 + $0x618] sm:$0xff]
  %v3790 = vld [vmem:[%s3 + $0x620] sm:$0xf]
  %v3791 = vld [vmem:[%s3 + $0x624] sm:$0xff]
  %v3792 = vld [vmem:[%s3 + $0x62c] sm:$0xf]
  %v3793 = vld [vmem:[%s3 + $0x630] sm:$0xff]
  %v3794 = vld [vmem:[%s3 + $0x638] sm:$0xf]
  %v3795 = vld [vmem:[%s3 + $0x63c] sm:$0xff]
  %v3796 = vld [vmem:[%s3 + $0x644] sm:$0xf]
  %v3797 = vld [vmem:[%s3 + $0x648] sm:$0xff]
  %v3798 = vld [vmem:[%s3 + $0x650] sm:$0xf]
  %v3799 = vld [vmem:[%s3 + $0x654] sm:$0xff]
  %v3800 = vld [vmem:[%s3 + $0x65c] sm:$0xf]
  %v3801 = vld [vmem:[%s3 + $0x660] sm:$0xff]
  %v3802 = vld [vmem:[%s3 + $0x668] sm:$0xf]
  %v3803 = vld [vmem:[%s3 + $0x66c] sm:$0xff]
  %v3804 = vld [vmem:[%s3 + $0x674] sm:$0xf]
  %v3805 = vld [vmem:[%s3 + $0x678] sm:$0xff]
  %v3806 = vld [vmem:[%s3 + $0x680] sm:$0xf]
  %v3807 = vld [vmem:[%s3 + $0x684] sm:$0xff]
  %v3808 = vld [vmem:[%s3 + $0x68c] sm:$0xf]
  %v3809 = vld [vmem:[%s3 + $0x690] sm:$0xff]
  %v3810 = vld [vmem:[%s3 + $0x698] sm:$0xf]
  %v3811 = vld [vmem:[%s3 + $0x69c] sm:$0xff]
  %v3812 = vld [vmem:[%s3 + $0x6a4] sm:$0xf]
  %v3813 = vld [vmem:[%s3 + $0x6a8] sm:$0xff]
  %v3814 = vld [vmem:[%s3 + $0x6b0] sm:$0xf]
  %v3815 = vld [vmem:[%s3 + $0x6b4] sm:$0xff]
  %v3816 = vld [vmem:[%s3 + $0x6bc] sm:$0xf]
  %v3817 = vld [vmem:[%s3 + $0x6c0] sm:$0xff]
  %v3818 = vld [vmem:[%s3 + $0x6c8] sm:$0xf]
  %v3819 = vld [vmem:[%s3 + $0x6cc] sm:$0xff]
  %v3820 = vld [vmem:[%s3 + $0x6d4] sm:$0xf]
  %v3821 = vld [vmem:[%s3 + $0x6d8] sm:$0xff]
  %v3822 = vld [vmem:[%s3 + $0x6e0] sm:$0xf]
  %v3823 = vld [vmem:[%s3 + $0x6e4] sm:$0xff]
  %v3824 = vld [vmem:[%s3 + $0x6ec] sm:$0xf]
  %v3825 = vld [vmem:[%s3 + $0x6f0] sm:$0xff]
  %v3826 = vld [vmem:[%s3 + $0x6f8] sm:$0xf]
  %v3827 = vld [vmem:[%s3 + $0x6fc] sm:$0xff]
  %v3828 = vld [vmem:[%s3 + $0x704] sm:$0xf]
  %v3829 = vld [vmem:[%s3 + $0x708] sm:$0xff]
  %v3830 = vld [vmem:[%s3 + $0x710] sm:$0xf]
  %v3831 = vld [vmem:[%s3 + $0x714] sm:$0xff]
  %v3832 = vld [vmem:[%s3 + $0x71c] sm:$0xf]
  %v3833 = vld [vmem:[%s3 + $0x720] sm:$0xff]
  %v3834 = vld [vmem:[%s3 + $0x728] sm:$0xf]
  %v3835 = vld [vmem:[%s3 + $0x72c] sm:$0xff]
  %v3836 = vld [vmem:[%s3 + $0x734] sm:$0xf]
  %v3837 = vld [vmem:[%s3 + $0x738] sm:$0xff]
  %v3838 = vld [vmem:[%s3 + $0x740] sm:$0xf]
  %v3839 = vld [vmem:[%s3 + $0x744] sm:$0xff]
  %v3840 = vld [vmem:[%s3 + $0x74c] sm:$0xf]
  %v3841 = vld [vmem:[%s3 + $0x750] sm:$0xff]
  %v3842 = vld [vmem:[%s3 + $0x758] sm:$0xf]
  %v3843 = vld [vmem:[%s3 + $0x75c] sm:$0xff]
  %v3844 = vld [vmem:[%s3 + $0x764] sm:$0xf]
  %v3845 = vld [vmem:[%s3 + $0x768] sm:$0xff]
  %v3846 = vld [vmem:[%s3 + $0x770] sm:$0xf]
  %v3847 = vld [vmem:[%s3 + $0x774] sm:$0xff]
  %v3848 = vld [vmem:[%s3 + $0x77c] sm:$0xf]
  %v3849 = vld [vmem:[%s3 + $0x780] sm:$0xff]
  %v3850 = vld [vmem:[%s3 + $0x788] sm:$0xf]
  %v3851 = vld [vmem:[%s3 + $0x78c] sm:$0xff]
  %v3852 = vld [vmem:[%s3 + $0x794] sm:$0xf]
  %v3853 = vld [vmem:[%s3 + $0x798] sm:$0xff]
  %v3854 = vld [vmem:[%s3 + $0x7a0] sm:$0xf]
  %v3855 = vld [vmem:[%s3 + $0x7a4] sm:$0xff]
  %v3856 = vld [vmem:[%s3 + $0x7ac] sm:$0xf]
  %v3857 = vld [vmem:[%s3 + $0x7b0] sm:$0xff]
  %v3858 = vld [vmem:[%s3 + $0x7b8] sm:$0xf]
  %v3859 = vld [vmem:[%s3 + $0x7bc] sm:$0xff]
  %v3860 = vld [vmem:[%s3 + $0x7c4] sm:$0xf]
  %v3861 = vld [vmem:[%s3 + $0x7c8] sm:$0xff]
  %v3862 = vld [vmem:[%s3 + $0x7d0] sm:$0xf]
  %v3863 = vld [vmem:[%s3 + $0x7d4] sm:$0xff]
  %v3864 = vld [vmem:[%s3 + $0x7dc] sm:$0xf]
  %v3865 = vld [vmem:[%s3 + $0x7e0] sm:$0xff]
  %v3866 = vld [vmem:[%s3 + $0x7e8] sm:$0xf]
  %v3867 = vld [vmem:[%s3 + $0x7ec] sm:$0xff]
  %v3868 = vld [vmem:[%s3 + $0x7f4] sm:$0xf]
  %v3869 = vld [vmem:[%s3 + $0x7f8] sm:$0xff]
  %v3870 = vld [vmem:[%s3 + $0x800] sm:$0xf]
  %v3871 = vld [vmem:[%s3 + $0x804] sm:$0xff]
  %v3872 = vld [vmem:[%s3 + $0x80c] sm:$0xf]
  %v3873 = vld [vmem:[%s3 + $0x810] sm:$0xff]
  %v3874 = vld [vmem:[%s3 + $0x818] sm:$0xf]
  %v3875 = vld [vmem:[%s3 + $0x81c] sm:$0xff]
  %v3876 = vld [vmem:[%s3 + $0x824] sm:$0xf]
  %v3877 = vld [vmem:[%s3 + $0x828] sm:$0xff]
  %v3878 = vld [vmem:[%s3 + $0x830] sm:$0xf]
  %v3879 = vld [vmem:[%s3 + $0x834] sm:$0xff]
  %v3880 = vld [vmem:[%s3 + $0x83c] sm:$0xf]
  %v3881 = vld [vmem:[%s3 + $0x840] sm:$0xff]
  %v3882 = vld [vmem:[%s3 + $0x848] sm:$0xf]
  %v3883 = vld [vmem:[%s3 + $0x84c] sm:$0xff]
  %v3884 = vld [vmem:[%s3 + $0x854] sm:$0xf]
  %v3885 = vld [vmem:[%s3 + $0x858] sm:$0xff]
  %v3886 = vld [vmem:[%s3 + $0x860] sm:$0xf]
  %v3887 = vld [vmem:[%s3 + $0x864] sm:$0xff]
  %v3888 = vld [vmem:[%s3 + $0x86c] sm:$0xf]
  %v3889 = vld [vmem:[%s3 + $0x870] sm:$0xff]
  %v3890 = vld [vmem:[%s3 + $0x878] sm:$0xf]
  %v3891 = vld [vmem:[%s3 + $0x87c] sm:$0xff]
  %v3892 = vld [vmem:[%s3 + $0x884] sm:$0xf]
  %v3893 = vld [vmem:[%s3 + $0x888] sm:$0xff]
  %v3894 = vld [vmem:[%s3 + $0x890] sm:$0xf]
  %v3895 = vld [vmem:[%s3 + $0x894] sm:$0xff]
  %v3896 = vld [vmem:[%s3 + $0x89c] sm:$0xf]
  %v3897 = vld [vmem:[%s3 + $0x8a0] sm:$0xff]
  %v3898 = vld [vmem:[%s3 + $0x8a8] sm:$0xf]
  %v3899 = vld [vmem:[%s3 + $0x8ac] sm:$0xff]
  %v3900 = vld [vmem:[%s3 + $0x8b4] sm:$0xf]
  %v3901 = vld [vmem:[%s3 + $0x8b8] sm:$0xff]
  %v3902 = vld [vmem:[%s3 + $0x8c0] sm:$0xf]
  %v3903 = vld [vmem:[%s3 + $0x8c4] sm:$0xff]
  %v3904 = vld [vmem:[%s3 + $0x8cc] sm:$0xf]
  %v3905 = vld [vmem:[%s3 + $0x8d0] sm:$0xff]
  %v3906 = vld [vmem:[%s3 + $0x8d8] sm:$0xf]
  %v3907 = vld [vmem:[%s3 + $0x8dc] sm:$0xff]
  %v3908 = vld [vmem:[%s3 + $0x8e4] sm:$0xf]
  %v3909 = vld [vmem:[%s3 + $0x8e8] sm:$0xff]
  %v3910 = vld [vmem:[%s3 + $0x8f0] sm:$0xf]
  %v3911 = vld [vmem:[%s3 + $0x8f4] sm:$0xff]
  %v3912 = vld [vmem:[%s3 + $0x8fc] sm:$0xf]
  %v3913 = vld [vmem:[%s4] sm:$0x7]
  %v3915 = vlaneseq
  %v3916 = vshrl.u32 %v3915, 7
  %v3917 = vsub.s32 0, %v3916
  %v3918 = vrot.slane %v3913, %v3917
  %v3919 = vlaneseq
  %v3920 = vshrl.u32 %v3919, 7
  %v3921 = vsub.s32 1, %v3920
  %v3922 = vrot.slane %v3913, %v3921
  %v3923 = vlaneseq
  %v3924 = vshrl.u32 %v3923, 7
  %v3925 = vsub.s32 2, %v3924
  %v3926 = vrot.slane %v3913, %v3925
  %v4314 = vunpack.c.l.b16 %v3529
  %v4315 = vunpack.c.h.b16 %v3529
  %v4316 = vunpack.c.l.b16 %v3530
  %v4317 = vunpack.c.l.b16 %v3531
  %v4318 = vunpack.c.h.b16 %v3531
  %v4319 = vunpack.c.l.b16 %v3532
  %v4320 = vunpack.c.l.b16 %v3533
  %v4321 = vunpack.c.h.b16 %v3533
  %v4322 = vunpack.c.l.b16 %v3534
  %v4323 = vunpack.c.l.b16 %v3535
  %v4324 = vunpack.c.h.b16 %v3535
  %v4325 = vunpack.c.l.b16 %v3536
  %v4326 = vunpack.c.l.b16 %v3537
  %v4327 = vunpack.c.h.b16 %v3537
  %v4328 = vunpack.c.l.b16 %v3538
  %v4329 = vunpack.c.l.b16 %v3539
  %v4330 = vunpack.c.h.b16 %v3539
  %v4331 = vunpack.c.l.b16 %v3540
  %v4332 = vunpack.c.l.b16 %v3541
  %v4333 = vunpack.c.h.b16 %v3541
  %v4334 = vunpack.c.l.b16 %v3542
  %v4335 = vunpack.c.l.b16 %v3543
  %v4336 = vunpack.c.h.b16 %v3543
  %v4337 = vunpack.c.l.b16 %v3544
  %v4338 = vunpack.c.l.b16 %v3545
  %v4339 = vunpack.c.h.b16 %v3545
  %v4340 = vunpack.c.l.b16 %v3546
  %v4341 = vunpack.c.l.b16 %v3547
  %v4342 = vunpack.c.h.b16 %v3547
  %v4343 = vunpack.c.l.b16 %v3548
  %v4344 = vunpack.c.l.b16 %v3549
  %v4345 = vunpack.c.h.b16 %v3549
  %v4346 = vunpack.c.l.b16 %v3550
  %v4347 = vunpack.c.l.b16 %v3551
  %v4348 = vunpack.c.h.b16 %v3551
  %v4349 = vunpack.c.l.b16 %v3552
  %v4350 = vunpack.c.l.b16 %v3553
  %v4351 = vunpack.c.h.b16 %v3553
  %v4352 = vunpack.c.l.b16 %v3554
  %v4353 = vunpack.c.l.b16 %v3555
  %v4354 = vunpack.c.h.b16 %v3555
  %v4355 = vunpack.c.l.b16 %v3556
  %v4356 = vunpack.c.l.b16 %v3557
  %v4357 = vunpack.c.h.b16 %v3557
  %v4358 = vunpack.c.l.b16 %v3558
  %v4359 = vunpack.c.l.b16 %v3559
  %v4360 = vunpack.c.h.b16 %v3559
  %v4361 = vunpack.c.l.b16 %v3560
  %v4362 = vunpack.c.l.b16 %v3561
  %v4363 = vunpack.c.h.b16 %v3561
  %v4364 = vunpack.c.l.b16 %v3562
  %v4365 = vunpack.c.l.b16 %v3563
  %v4366 = vunpack.c.h.b16 %v3563
  %v4367 = vunpack.c.l.b16 %v3564
  %v4368 = vunpack.c.l.b16 %v3565
  %v4369 = vunpack.c.h.b16 %v3565
  %v4370 = vunpack.c.l.b16 %v3566
  %v4371 = vunpack.c.l.b16 %v3567
  %v4372 = vunpack.c.h.b16 %v3567
  %v4373 = vunpack.c.l.b16 %v3568
  %v4374 = vunpack.c.l.b16 %v3569
  %v4375 = vunpack.c.h.b16 %v3569
  %v4376 = vunpack.c.l.b16 %v3570
  %v4377 = vunpack.c.l.b16 %v3571
  %v4378 = vunpack.c.h.b16 %v3571
  %v4379 = vunpack.c.l.b16 %v3572
  %v4380 = vunpack.c.l.b16 %v3573
  %v4381 = vunpack.c.h.b16 %v3573
  %v4382 = vunpack.c.l.b16 %v3574
  %v4383 = vunpack.c.l.b16 %v3575
  %v4384 = vunpack.c.h.b16 %v3575
  %v4385 = vunpack.c.l.b16 %v3576
  %v4386 = vunpack.c.l.b16 %v3577
  %v4387 = vunpack.c.h.b16 %v3577
  %v4388 = vunpack.c.l.b16 %v3578
  %v4389 = vunpack.c.l.b16 %v3579
  %v4390 = vunpack.c.h.b16 %v3579
  %v4391 = vunpack.c.l.b16 %v3580
  %v4392 = vunpack.c.l.b16 %v3581
  %v4393 = vunpack.c.h.b16 %v3581
  %v4394 = vunpack.c.l.b16 %v3582
  %v4395 = vunpack.c.l.b16 %v3583
  %v4396 = vunpack.c.h.b16 %v3583
  %v4397 = vunpack.c.l.b16 %v3584
  %v4398 = vunpack.c.l.b16 %v3585
  %v4399 = vunpack.c.h.b16 %v3585
  %v4400 = vunpack.c.l.b16 %v3586
  %v4401 = vunpack.c.l.b16 %v3587
  %v4402 = vunpack.c.h.b16 %v3587
  %v4403 = vunpack.c.l.b16 %v3588
  %v4404 = vunpack.c.l.b16 %v3589
  %v4405 = vunpack.c.h.b16 %v3589
  %v4406 = vunpack.c.l.b16 %v3590
  %v4407 = vunpack.c.l.b16 %v3591
  %v4408 = vunpack.c.h.b16 %v3591
  %v4409 = vunpack.c.l.b16 %v3592
  %v4410 = vunpack.c.l.b16 %v3593
  %v4411 = vunpack.c.h.b16 %v3593
  %v4412 = vunpack.c.l.b16 %v3594
  %v4413 = vunpack.c.l.b16 %v3595
  %v4414 = vunpack.c.h.b16 %v3595
  %v4415 = vunpack.c.l.b16 %v3596
  %v4416 = vunpack.c.l.b16 %v3597
  %v4417 = vunpack.c.h.b16 %v3597
  %v4418 = vunpack.c.l.b16 %v3598
  %v4419 = vunpack.c.l.b16 %v3599
  %v4420 = vunpack.c.h.b16 %v3599
  %v4421 = vunpack.c.l.b16 %v3600
  %v4422 = vunpack.c.l.b16 %v3601
  %v4423 = vunpack.c.h.b16 %v3601
  %v4424 = vunpack.c.l.b16 %v3602
  %v4425 = vunpack.c.l.b16 %v3603
  %v4426 = vunpack.c.h.b16 %v3603
  %v4427 = vunpack.c.l.b16 %v3604
  %v4428 = vunpack.c.l.b16 %v3605
  %v4429 = vunpack.c.h.b16 %v3605
  %v4430 = vunpack.c.l.b16 %v3606
  %v4431 = vunpack.c.l.b16 %v3607
  %v4432 = vunpack.c.h.b16 %v3607
  %v4433 = vunpack.c.l.b16 %v3608
  %v4434 = vunpack.c.l.b16 %v3609
  %v4435 = vunpack.c.h.b16 %v3609
  %v4436 = vunpack.c.l.b16 %v3610
  %v4437 = vunpack.c.l.b16 %v3611
  %v4438 = vunpack.c.h.b16 %v3611
  %v4439 = vunpack.c.l.b16 %v3612
  %v4440 = vunpack.c.l.b16 %v3613
  %v4441 = vunpack.c.h.b16 %v3613
  %v4442 = vunpack.c.l.b16 %v3614
  %v4443 = vunpack.c.l.b16 %v3615
  %v4444 = vunpack.c.h.b16 %v3615
  %v4445 = vunpack.c.l.b16 %v3616
  %v4446 = vunpack.c.l.b16 %v3617
  %v4447 = vunpack.c.h.b16 %v3617
  %v4448 = vunpack.c.l.b16 %v3618
  %v4449 = vunpack.c.l.b16 %v3619
  %v4450 = vunpack.c.h.b16 %v3619
  %v4451 = vunpack.c.l.b16 %v3620
  %v4452 = vunpack.c.l.b16 %v3621
  %v4453 = vunpack.c.h.b16 %v3621
  %v4454 = vunpack.c.l.b16 %v3622
  %v4455 = vunpack.c.l.b16 %v3623
  %v4456 = vunpack.c.h.b16 %v3623
  %v4457 = vunpack.c.l.b16 %v3624
  %v4458 = vunpack.c.l.b16 %v3625
  %v4459 = vunpack.c.h.b16 %v3625
  %v4460 = vunpack.c.l.b16 %v3626
  %v4461 = vunpack.c.l.b16 %v3627
  %v4462 = vunpack.c.h.b16 %v3627
  %v4463 = vunpack.c.l.b16 %v3628
  %v4464 = vunpack.c.l.b16 %v3629
  %v4465 = vunpack.c.h.b16 %v3629
  %v4466 = vunpack.c.l.b16 %v3630
  %v4467 = vunpack.c.l.b16 %v3631
  %v4468 = vunpack.c.h.b16 %v3631
  %v4469 = vunpack.c.l.b16 %v3632
  %v4470 = vunpack.c.l.b16 %v3633
  %v4471 = vunpack.c.h.b16 %v3633
  %v4472 = vunpack.c.l.b16 %v3634
  %v4473 = vunpack.c.l.b16 %v3635
  %v4474 = vunpack.c.h.b16 %v3635
  %v4475 = vunpack.c.l.b16 %v3636
  %v4476 = vunpack.c.l.b16 %v3637
  %v4477 = vunpack.c.h.b16 %v3637
  %v4478 = vunpack.c.l.b16 %v3638
  %v4479 = vunpack.c.l.b16 %v3639
  %v4480 = vunpack.c.h.b16 %v3639
  %v4481 = vunpack.c.l.b16 %v3640
  %v4482 = vunpack.c.l.b16 %v3641
  %v4483 = vunpack.c.h.b16 %v3641
  %v4484 = vunpack.c.l.b16 %v3642
  %v4485 = vunpack.c.l.b16 %v3643
  %v4486 = vunpack.c.h.b16 %v3643
  %v4487 = vunpack.c.l.b16 %v3644
  %v4488 = vunpack.c.l.b16 %v3645
  %v4489 = vunpack.c.h.b16 %v3645
  %v4490 = vunpack.c.l.b16 %v3646
  %v4491 = vunpack.c.l.b16 %v3647
  %v4492 = vunpack.c.h.b16 %v3647
  %v4493 = vunpack.c.l.b16 %v3648
  %v4494 = vunpack.c.l.b16 %v3649
  %v4495 = vunpack.c.h.b16 %v3649
  %v4496 = vunpack.c.l.b16 %v3650
  %v4497 = vunpack.c.l.b16 %v3651
  %v4498 = vunpack.c.h.b16 %v3651
  %v4499 = vunpack.c.l.b16 %v3652
  %v4500 = vunpack.c.l.b16 %v3653
  %v4501 = vunpack.c.h.b16 %v3653
  %v4502 = vunpack.c.l.b16 %v3654
  %v4503 = vunpack.c.l.b16 %v3655
  %v4504 = vunpack.c.h.b16 %v3655
  %v4505 = vunpack.c.l.b16 %v3656
  %v4506 = vunpack.c.l.b16 %v3657
  %v4507 = vunpack.c.h.b16 %v3657
  %v4508 = vunpack.c.l.b16 %v3658
  %v4509 = vunpack.c.l.b16 %v3659
  %v4510 = vunpack.c.h.b16 %v3659
  %v4511 = vunpack.c.l.b16 %v3660
  %v4512 = vunpack.c.l.b16 %v3661
  %v4513 = vunpack.c.h.b16 %v3661
  %v4514 = vunpack.c.l.b16 %v3662
  %v4515 = vunpack.c.l.b16 %v3663
  %v4516 = vunpack.c.h.b16 %v3663
  %v4517 = vunpack.c.l.b16 %v3664
  %v4518 = vunpack.c.l.b16 %v3665
  %v4519 = vunpack.c.h.b16 %v3665
  %v4520 = vunpack.c.l.b16 %v3666
  %v4521 = vunpack.c.l.b16 %v3667
  %v4522 = vunpack.c.h.b16 %v3667
  %v4523 = vunpack.c.l.b16 %v3668
  %v4524 = vunpack.c.l.b16 %v3669
  %v4525 = vunpack.c.h.b16 %v3669
  %v4526 = vunpack.c.l.b16 %v3670
  %v4527 = vunpack.c.l.b16 %v3671
  %v4528 = vunpack.c.h.b16 %v3671
  %v4529 = vunpack.c.l.b16 %v3672
  %v4530 = vunpack.c.l.b16 %v3673
  %v4531 = vunpack.c.h.b16 %v3673
  %v4532 = vunpack.c.l.b16 %v3674
  %v4533 = vunpack.c.l.b16 %v3675
  %v4534 = vunpack.c.h.b16 %v3675
  %v4535 = vunpack.c.l.b16 %v3676
  %v4536 = vunpack.c.l.b16 %v3677
  %v4537 = vunpack.c.h.b16 %v3677
  %v4538 = vunpack.c.l.b16 %v3678
  %v4539 = vunpack.c.l.b16 %v3679
  %v4540 = vunpack.c.h.b16 %v3679
  %v4541 = vunpack.c.l.b16 %v3680
  %v4542 = vunpack.c.l.b16 %v3681
  %v4543 = vunpack.c.h.b16 %v3681
  %v4544 = vunpack.c.l.b16 %v3682
  %v4545 = vunpack.c.l.b16 %v3683
  %v4546 = vunpack.c.h.b16 %v3683
  %v4547 = vunpack.c.l.b16 %v3684
  %v4548 = vunpack.c.l.b16 %v3685
  %v4549 = vunpack.c.h.b16 %v3685
  %v4550 = vunpack.c.l.b16 %v3686
  %v4551 = vunpack.c.l.b16 %v3687
  %v4552 = vunpack.c.h.b16 %v3687
  %v4553 = vunpack.c.l.b16 %v3688
  %v4554 = vunpack.c.l.b16 %v3689
  %v4555 = vunpack.c.h.b16 %v3689
  %v4556 = vunpack.c.l.b16 %v3690
  %v4557 = vunpack.c.l.b16 %v3691
  %v4558 = vunpack.c.h.b16 %v3691
  %v4559 = vunpack.c.l.b16 %v3692
  %v4560 = vunpack.c.l.b16 %v3693
  %v4561 = vunpack.c.h.b16 %v3693
  %v4562 = vunpack.c.l.b16 %v3694
  %v4563 = vunpack.c.l.b16 %v3695
  %v4564 = vunpack.c.h.b16 %v3695
  %v4565 = vunpack.c.l.b16 %v3696
  %v4566 = vunpack.c.l.b16 %v3697
  %v4567 = vunpack.c.h.b16 %v3697
  %v4568 = vunpack.c.l.b16 %v3698
  %v4569 = vunpack.c.l.b16 %v3699
  %v4570 = vunpack.c.h.b16 %v3699
  %v4571 = vunpack.c.l.b16 %v3700
  %v4572 = vunpack.c.l.b16 %v3701
  %v4573 = vunpack.c.h.b16 %v3701
  %v4574 = vunpack.c.l.b16 %v3702
  %v4575 = vunpack.c.l.b16 %v3703
  %v4576 = vunpack.c.h.b16 %v3703
  %v4577 = vunpack.c.l.b16 %v3704
  %v4578 = vunpack.c.l.b16 %v3705
  %v4579 = vunpack.c.h.b16 %v3705
  %v4580 = vunpack.c.l.b16 %v3706
  %v4581 = vunpack.c.l.b16 %v3707
  %v4582 = vunpack.c.h.b16 %v3707
  %v4583 = vunpack.c.l.b16 %v3708
  %v4584 = vunpack.c.l.b16 %v3709
  %v4585 = vunpack.c.h.b16 %v3709
  %v4586 = vunpack.c.l.b16 %v3710
  %v4587 = vunpack.c.l.b16 %v3711
  %v4588 = vunpack.c.h.b16 %v3711
  %v4589 = vunpack.c.l.b16 %v3712
  %v4590 = vunpack.c.l.b16 %v3713
  %v4591 = vunpack.c.h.b16 %v3713
  %v4592 = vunpack.c.l.b16 %v3714
  %v4593 = vunpack.c.l.b16 %v3715
  %v4594 = vunpack.c.h.b16 %v3715
  %v4595 = vunpack.c.l.b16 %v3716
  %v4596 = vunpack.c.l.b16 %v3717
  %v4597 = vunpack.c.h.b16 %v3717
  %v4598 = vunpack.c.l.b16 %v3718
  %v4599 = vunpack.c.l.b16 %v3719
  %v4600 = vunpack.c.h.b16 %v3719
  %v4601 = vunpack.c.l.b16 %v3720
  %v4602 = vunpack.c.l.b16 %v3721
  %v4603 = vunpack.c.h.b16 %v3721
  %v4604 = vunpack.c.l.b16 %v3722
  %v4605 = vunpack.c.l.b16 %v3723
  %v4606 = vunpack.c.h.b16 %v3723
  %v4607 = vunpack.c.l.b16 %v3724
  %v4608 = vunpack.c.l.b16 %v3725
  %v4609 = vunpack.c.h.b16 %v3725
  %v4610 = vunpack.c.l.b16 %v3726
  %v4611 = vunpack.c.l.b16 %v3727
  %v4612 = vunpack.c.h.b16 %v3727
  %v4613 = vunpack.c.l.b16 %v3728
  %v4614 = vunpack.c.l.b16 %v3729
  %v4615 = vunpack.c.h.b16 %v3729
  %v4616 = vunpack.c.l.b16 %v3730
  %v4617 = vunpack.c.l.b16 %v3731
  %v4618 = vunpack.c.h.b16 %v3731
  %v4619 = vunpack.c.l.b16 %v3732
  %v4620 = vunpack.c.l.b16 %v3733
  %v4621 = vunpack.c.h.b16 %v3733
  %v4622 = vunpack.c.l.b16 %v3734
  %v4623 = vunpack.c.l.b16 %v3735
  %v4624 = vunpack.c.h.b16 %v3735
  %v4625 = vunpack.c.l.b16 %v3736
  %v4626 = vunpack.c.l.b16 %v3737
  %v4627 = vunpack.c.h.b16 %v3737
  %v4628 = vunpack.c.l.b16 %v3738
  %v4629 = vunpack.c.l.b16 %v3739
  %v4630 = vunpack.c.h.b16 %v3739
  %v4631 = vunpack.c.l.b16 %v3740
  %v4632 = vunpack.c.l.b16 %v3741
  %v4633 = vunpack.c.h.b16 %v3741
  %v4634 = vunpack.c.l.b16 %v3742
  %v4635 = vunpack.c.l.b16 %v3743
  %v4636 = vunpack.c.h.b16 %v3743
  %v4637 = vunpack.c.l.b16 %v3744
  %v4638 = vunpack.c.l.b16 %v3745
  %v4639 = vunpack.c.h.b16 %v3745
  %v4640 = vunpack.c.l.b16 %v3746
  %v4641 = vunpack.c.l.b16 %v3747
  %v4642 = vunpack.c.h.b16 %v3747
  %v4643 = vunpack.c.l.b16 %v3748
  %v4644 = vunpack.c.l.b16 %v3749
  %v4645 = vunpack.c.h.b16 %v3749
  %v4646 = vunpack.c.l.b16 %v3750
  %v4647 = vunpack.c.l.b16 %v3751
  %v4648 = vunpack.c.h.b16 %v3751
  %v4649 = vunpack.c.l.b16 %v3752
  %v4650 = vunpack.c.l.b16 %v3753
  %v4651 = vunpack.c.h.b16 %v3753
  %v4652 = vunpack.c.l.b16 %v3754
  %v4653 = vunpack.c.l.b16 %v3755
  %v4654 = vunpack.c.h.b16 %v3755
  %v4655 = vunpack.c.l.b16 %v3756
  %v4656 = vunpack.c.l.b16 %v3757
  %v4657 = vunpack.c.h.b16 %v3757
  %v4658 = vunpack.c.l.b16 %v3758
  %v4659 = vunpack.c.l.b16 %v3759
  %v4660 = vunpack.c.h.b16 %v3759
  %v4661 = vunpack.c.l.b16 %v3760
  %v4662 = vunpack.c.l.b16 %v3761
  %v4663 = vunpack.c.h.b16 %v3761
  %v4664 = vunpack.c.l.b16 %v3762
  %v4665 = vunpack.c.l.b16 %v3763
  %v4666 = vunpack.c.h.b16 %v3763
  %v4667 = vunpack.c.l.b16 %v3764
  %v4668 = vunpack.c.l.b16 %v3765
  %v4669 = vunpack.c.h.b16 %v3765
  %v4670 = vunpack.c.l.b16 %v3766
  %v4671 = vunpack.c.l.b16 %v3767
  %v4672 = vunpack.c.h.b16 %v3767
  %v4673 = vunpack.c.l.b16 %v3768
  %v4674 = vunpack.c.l.b16 %v3769
  %v4675 = vunpack.c.h.b16 %v3769
  %v4676 = vunpack.c.l.b16 %v3770
  %v4677 = vunpack.c.l.b16 %v3771
  %v4678 = vunpack.c.h.b16 %v3771
  %v4679 = vunpack.c.l.b16 %v3772
  %v4680 = vunpack.c.l.b16 %v3773
  %v4681 = vunpack.c.h.b16 %v3773
  %v4682 = vunpack.c.l.b16 %v3774
  %v4683 = vunpack.c.l.b16 %v3775
  %v4684 = vunpack.c.h.b16 %v3775
  %v4685 = vunpack.c.l.b16 %v3776
  %v4686 = vunpack.c.l.b16 %v3777
  %v4687 = vunpack.c.h.b16 %v3777
  %v4688 = vunpack.c.l.b16 %v3778
  %v4689 = vunpack.c.l.b16 %v3779
  %v4690 = vunpack.c.h.b16 %v3779
  %v4691 = vunpack.c.l.b16 %v3780
  %v4692 = vunpack.c.l.b16 %v3781
  %v4693 = vunpack.c.h.b16 %v3781
  %v4694 = vunpack.c.l.b16 %v3782
  %v4695 = vunpack.c.l.b16 %v3783
  %v4696 = vunpack.c.h.b16 %v3783
  %v4697 = vunpack.c.l.b16 %v3784
  %v4698 = vunpack.c.l.b16 %v3785
  %v4699 = vunpack.c.h.b16 %v3785
  %v4700 = vunpack.c.l.b16 %v3786
  %v4701 = vunpack.c.l.b16 %v3787
  %v4702 = vunpack.c.h.b16 %v3787
  %v4703 = vunpack.c.l.b16 %v3788
  %v4704 = vunpack.c.l.b16 %v3789
  %v4705 = vunpack.c.h.b16 %v3789
  %v4706 = vunpack.c.l.b16 %v3790
  %v4707 = vunpack.c.l.b16 %v3791
  %v4708 = vunpack.c.h.b16 %v3791
  %v4709 = vunpack.c.l.b16 %v3792
  %v4710 = vunpack.c.l.b16 %v3793
  %v4711 = vunpack.c.h.b16 %v3793
  %v4712 = vunpack.c.l.b16 %v3794
  %v4713 = vunpack.c.l.b16 %v3795
  %v4714 = vunpack.c.h.b16 %v3795
  %v4715 = vunpack.c.l.b16 %v3796
  %v4716 = vunpack.c.l.b16 %v3797
  %v4717 = vunpack.c.h.b16 %v3797
  %v4718 = vunpack.c.l.b16 %v3798
  %v4719 = vunpack.c.l.b16 %v3799
  %v4720 = vunpack.c.h.b16 %v3799
  %v4721 = vunpack.c.l.b16 %v3800
  %v4722 = vunpack.c.l.b16 %v3801
  %v4723 = vunpack.c.h.b16 %v3801
  %v4724 = vunpack.c.l.b16 %v3802
  %v4725 = vunpack.c.l.b16 %v3803
  %v4726 = vunpack.c.h.b16 %v3803
  %v4727 = vunpack.c.l.b16 %v3804
  %v4728 = vunpack.c.l.b16 %v3805
  %v4729 = vunpack.c.h.b16 %v3805
  %v4730 = vunpack.c.l.b16 %v3806
  %v4731 = vunpack.c.l.b16 %v3807
  %v4732 = vunpack.c.h.b16 %v3807
  %v4733 = vunpack.c.l.b16 %v3808
  %v4734 = vunpack.c.l.b16 %v3809
  %v4735 = vunpack.c.h.b16 %v3809
  %v4736 = vunpack.c.l.b16 %v3810
  %v4737 = vunpack.c.l.b16 %v3811
  %v4738 = vunpack.c.h.b16 %v3811
  %v4739 = vunpack.c.l.b16 %v3812
  %v4740 = vunpack.c.l.b16 %v3813
  %v4741 = vunpack.c.h.b16 %v3813
  %v4742 = vunpack.c.l.b16 %v3814
  %v4743 = vunpack.c.l.b16 %v3815
  %v4744 = vunpack.c.h.b16 %v3815
  %v4745 = vunpack.c.l.b16 %v3816
  %v4746 = vunpack.c.l.b16 %v3817
  %v4747 = vunpack.c.h.b16 %v3817
  %v4748 = vunpack.c.l.b16 %v3818
  %v4749 = vunpack.c.l.b16 %v3819
  %v4750 = vunpack.c.h.b16 %v3819
  %v4751 = vunpack.c.l.b16 %v3820
  %v4752 = vunpack.c.l.b16 %v3821
  %v4753 = vunpack.c.h.b16 %v3821
  %v4754 = vunpack.c.l.b16 %v3822
  %v4755 = vunpack.c.l.b16 %v3823
  %v4756 = vunpack.c.h.b16 %v3823
  %v4757 = vunpack.c.l.b16 %v3824
  %v4758 = vunpack.c.l.b16 %v3825
  %v4759 = vunpack.c.h.b16 %v3825
  %v4760 = vunpack.c.l.b16 %v3826
  %v4761 = vunpack.c.l.b16 %v3827
  %v4762 = vunpack.c.h.b16 %v3827
  %v4763 = vunpack.c.l.b16 %v3828
  %v4764 = vunpack.c.l.b16 %v3829
  %v4765 = vunpack.c.h.b16 %v3829
  %v4766 = vunpack.c.l.b16 %v3830
  %v4767 = vunpack.c.l.b16 %v3831
  %v4768 = vunpack.c.h.b16 %v3831
  %v4769 = vunpack.c.l.b16 %v3832
  %v4770 = vunpack.c.l.b16 %v3833
  %v4771 = vunpack.c.h.b16 %v3833
  %v4772 = vunpack.c.l.b16 %v3834
  %v4773 = vunpack.c.l.b16 %v3835
  %v4774 = vunpack.c.h.b16 %v3835
  %v4775 = vunpack.c.l.b16 %v3836
  %v4776 = vunpack.c.l.b16 %v3837
  %v4777 = vunpack.c.h.b16 %v3837
  %v4778 = vunpack.c.l.b16 %v3838
  %v4779 = vunpack.c.l.b16 %v3839
  %v4780 = vunpack.c.h.b16 %v3839
  %v4781 = vunpack.c.l.b16 %v3840
  %v4782 = vunpack.c.l.b16 %v3841
  %v4783 = vunpack.c.h.b16 %v3841
  %v4784 = vunpack.c.l.b16 %v3842
  %v4785 = vunpack.c.l.b16 %v3843
  %v4786 = vunpack.c.h.b16 %v3843
  %v4787 = vunpack.c.l.b16 %v3844
  %v4788 = vunpack.c.l.b16 %v3845
  %v4789 = vunpack.c.h.b16 %v3845
  %v4790 = vunpack.c.l.b16 %v3846
  %v4791 = vunpack.c.l.b16 %v3847
  %v4792 = vunpack.c.h.b16 %v3847
  %v4793 = vunpack.c.l.b16 %v3848
  %v4794 = vunpack.c.l.b16 %v3849
  %v4795 = vunpack.c.h.b16 %v3849
  %v4796 = vunpack.c.l.b16 %v3850
  %v4797 = vunpack.c.l.b16 %v3851
  %v4798 = vunpack.c.h.b16 %v3851
  %v4799 = vunpack.c.l.b16 %v3852
  %v4800 = vunpack.c.l.b16 %v3853
  %v4801 = vunpack.c.h.b16 %v3853
  %v4802 = vunpack.c.l.b16 %v3854
  %v4803 = vunpack.c.l.b16 %v3855
  %v4804 = vunpack.c.h.b16 %v3855
  %v4805 = vunpack.c.l.b16 %v3856
  %v4806 = vunpack.c.l.b16 %v3857
  %v4807 = vunpack.c.h.b16 %v3857
  %v4808 = vunpack.c.l.b16 %v3858
  %v4809 = vunpack.c.l.b16 %v3859
  %v4810 = vunpack.c.h.b16 %v3859
  %v4811 = vunpack.c.l.b16 %v3860
  %v4812 = vunpack.c.l.b16 %v3861
  %v4813 = vunpack.c.h.b16 %v3861
  %v4814 = vunpack.c.l.b16 %v3862
  %v4815 = vunpack.c.l.b16 %v3863
  %v4816 = vunpack.c.h.b16 %v3863
  %v4817 = vunpack.c.l.b16 %v3864
  %v4818 = vunpack.c.l.b16 %v3865
  %v4819 = vunpack.c.h.b16 %v3865
  %v4820 = vunpack.c.l.b16 %v3866
  %v4821 = vunpack.c.l.b16 %v3867
  %v4822 = vunpack.c.h.b16 %v3867
  %v4823 = vunpack.c.l.b16 %v3868
  %v4824 = vunpack.c.l.b16 %v3869
  %v4825 = vunpack.c.h.b16 %v3869
  %v4826 = vunpack.c.l.b16 %v3870
  %v4827 = vunpack.c.l.b16 %v3871
  %v4828 = vunpack.c.h.b16 %v3871
  %v4829 = vunpack.c.l.b16 %v3872
  %v4830 = vunpack.c.l.b16 %v3873
  %v4831 = vunpack.c.h.b16 %v3873
  %v4832 = vunpack.c.l.b16 %v3874
  %v4833 = vunpack.c.l.b16 %v3875
  %v4834 = vunpack.c.h.b16 %v3875
  %v4835 = vunpack.c.l.b16 %v3876
  %v4836 = vunpack.c.l.b16 %v3877
  %v4837 = vunpack.c.h.b16 %v3877
  %v4838 = vunpack.c.l.b16 %v3878
  %v4839 = vunpack.c.l.b16 %v3879
  %v4840 = vunpack.c.h.b16 %v3879
  %v4841 = vunpack.c.l.b16 %v3880
  %v4842 = vunpack.c.l.b16 %v3881
  %v4843 = vunpack.c.h.b16 %v3881
  %v4844 = vunpack.c.l.b16 %v3882
  %v4845 = vunpack.c.l.b16 %v3883
  %v4846 = vunpack.c.h.b16 %v3883
  %v4847 = vunpack.c.l.b16 %v3884
  %v4848 = vunpack.c.l.b16 %v3885
  %v4849 = vunpack.c.h.b16 %v3885
  %v4850 = vunpack.c.l.b16 %v3886
  %v4851 = vunpack.c.l.b16 %v3887
  %v4852 = vunpack.c.h.b16 %v3887
  %v4853 = vunpack.c.l.b16 %v3888
  %v4854 = vunpack.c.l.b16 %v3889
  %v4855 = vunpack.c.h.b16 %v3889
  %v4856 = vunpack.c.l.b16 %v3890
  %v4857 = vunpack.c.l.b16 %v3891
  %v4858 = vunpack.c.h.b16 %v3891
  %v4859 = vunpack.c.l.b16 %v3892
  %v4860 = vunpack.c.l.b16 %v3893
  %v4861 = vunpack.c.h.b16 %v3893
  %v4862 = vunpack.c.l.b16 %v3894
  %v4863 = vunpack.c.l.b16 %v3895
  %v4864 = vunpack.c.h.b16 %v3895
  %v4865 = vunpack.c.l.b16 %v3896
  %v4866 = vunpack.c.l.b16 %v3897
  %v4867 = vunpack.c.h.b16 %v3897
  %v4868 = vunpack.c.l.b16 %v3898
  %v4869 = vunpack.c.l.b16 %v3899
  %v4870 = vunpack.c.h.b16 %v3899
  %v4871 = vunpack.c.l.b16 %v3900
  %v4872 = vunpack.c.l.b16 %v3901
  %v4873 = vunpack.c.h.b16 %v3901
  %v4874 = vunpack.c.l.b16 %v3902
  %v4875 = vunpack.c.l.b16 %v3903
  %v4876 = vunpack.c.h.b16 %v3903
  %v4877 = vunpack.c.l.b16 %v3904
  %v4878 = vunpack.c.l.b16 %v3905
  %v4879 = vunpack.c.h.b16 %v3905
  %v4880 = vunpack.c.l.b16 %v3906
  %v4881 = vunpack.c.l.b16 %v3907
  %v4882 = vunpack.c.h.b16 %v3907
  %v4883 = vunpack.c.l.b16 %v3908
  %v4884 = vunpack.c.l.b16 %v3909
  %v4885 = vunpack.c.h.b16 %v3909
  %v4886 = vunpack.c.l.b16 %v3910
  %v4887 = vunpack.c.l.b16 %v3911
  %v4888 = vunpack.c.h.b16 %v3911
  %v4889 = vunpack.c.l.b16 %v3912
  %v4890 = vpack.c.b16 %v4317, %v4314
  %v4891 = vpack.c.b16 %v4318, %v4315
  %v4892 = vpack.c.b16 %v4319, %v4316
  %v4893 = vpack.c.b16 %v4323, %v4320
  %v4894 = vpack.c.b16 %v4324, %v4321
  %v4895 = vpack.c.b16 %v4325, %v4322
  %v4896 = vpack.c.b16 %v4329, %v4326
  %v4897 = vpack.c.b16 %v4330, %v4327
  %v4898 = vpack.c.b16 %v4331, %v4328
  %v4899 = vpack.c.b16 %v4335, %v4332
  %v4900 = vpack.c.b16 %v4336, %v4333
  %v4901 = vpack.c.b16 %v4337, %v4334
  %v4902 = vpack.c.b16 %v4341, %v4338
  %v4903 = vpack.c.b16 %v4342, %v4339
  %v4904 = vpack.c.b16 %v4343, %v4340
  %v4905 = vpack.c.b16 %v4347, %v4344
  %v4906 = vpack.c.b16 %v4348, %v4345
  %v4907 = vpack.c.b16 %v4349, %v4346
  %v4908 = vpack.c.b16 %v4353, %v4350
  %v4909 = vpack.c.b16 %v4354, %v4351
  %v4910 = vpack.c.b16 %v4355, %v4352
  %v4911 = vpack.c.b16 %v4359, %v4356
  %v4912 = vpack.c.b16 %v4360, %v4357
  %v4913 = vpack.c.b16 %v4361, %v4358
  %v4914 = vpack.c.b16 %v4365, %v4362
  %v4915 = vpack.c.b16 %v4366, %v4363
  %v4916 = vpack.c.b16 %v4367, %v4364
  %v4917 = vpack.c.b16 %v4371, %v4368
  %v4918 = vpack.c.b16 %v4372, %v4369
  %v4919 = vpack.c.b16 %v4373, %v4370
  %v4920 = vpack.c.b16 %v4377, %v4374
  %v4921 = vpack.c.b16 %v4378, %v4375
  %v4922 = vpack.c.b16 %v4379, %v4376
  %v4923 = vpack.c.b16 %v4383, %v4380
  %v4924 = vpack.c.b16 %v4384, %v4381
  %v4925 = vpack.c.b16 %v4385, %v4382
  %v4926 = vpack.c.b16 %v4389, %v4386
  %v4927 = vpack.c.b16 %v4390, %v4387
  %v4928 = vpack.c.b16 %v4391, %v4388
  %v4929 = vpack.c.b16 %v4395, %v4392
  %v4930 = vpack.c.b16 %v4396, %v4393
  %v4931 = vpack.c.b16 %v4397, %v4394
  %v4932 = vpack.c.b16 %v4401, %v4398
  %v4933 = vpack.c.b16 %v4402, %v4399
  %v4934 = vpack.c.b16 %v4403, %v4400
  %v4935 = vpack.c.b16 %v4407, %v4404
  %v4936 = vpack.c.b16 %v4408, %v4405
  %v4937 = vpack.c.b16 %v4409, %v4406
  %v4938 = vpack.c.b16 %v4413, %v4410
  %v4939 = vpack.c.b16 %v4414, %v4411
  %v4940 = vpack.c.b16 %v4415, %v4412
  %v4941 = vpack.c.b16 %v4419, %v4416
  %v4942 = vpack.c.b16 %v4420, %v4417
  %v4943 = vpack.c.b16 %v4421, %v4418
  %v4944 = vpack.c.b16 %v4425, %v4422
  %v4945 = vpack.c.b16 %v4426, %v4423
  %v4946 = vpack.c.b16 %v4427, %v4424
  %v4947 = vpack.c.b16 %v4431, %v4428
  %v4948 = vpack.c.b16 %v4432, %v4429
  %v4949 = vpack.c.b16 %v4433, %v4430
  %v4950 = vpack.c.b16 %v4437, %v4434
  %v4951 = vpack.c.b16 %v4438, %v4435
  %v4952 = vpack.c.b16 %v4439, %v4436
  %v4953 = vpack.c.b16 %v4443, %v4440
  %v4954 = vpack.c.b16 %v4444, %v4441
  %v4955 = vpack.c.b16 %v4445, %v4442
  %v4956 = vpack.c.b16 %v4449, %v4446
  %v4957 = vpack.c.b16 %v4450, %v4447
  %v4958 = vpack.c.b16 %v4451, %v4448
  %v4959 = vpack.c.b16 %v4455, %v4452
  %v4960 = vpack.c.b16 %v4456, %v4453
  %v4961 = vpack.c.b16 %v4457, %v4454
  %v4962 = vpack.c.b16 %v4461, %v4458
  %v4963 = vpack.c.b16 %v4462, %v4459
  %v4964 = vpack.c.b16 %v4463, %v4460
  %v4965 = vpack.c.b16 %v4467, %v4464
  %v4966 = vpack.c.b16 %v4468, %v4465
  %v4967 = vpack.c.b16 %v4469, %v4466
  %v4968 = vpack.c.b16 %v4473, %v4470
  %v4969 = vpack.c.b16 %v4474, %v4471
  %v4970 = vpack.c.b16 %v4475, %v4472
  %v4971 = vpack.c.b16 %v4479, %v4476
  %v4972 = vpack.c.b16 %v4480, %v4477
  %v4973 = vpack.c.b16 %v4481, %v4478
  %v4974 = vpack.c.b16 %v4485, %v4482
  %v4975 = vpack.c.b16 %v4486, %v4483
  %v4976 = vpack.c.b16 %v4487, %v4484
  %v4977 = vpack.c.b16 %v4491, %v4488
  %v4978 = vpack.c.b16 %v4492, %v4489
  %v4979 = vpack.c.b16 %v4493, %v4490
  %v4980 = vpack.c.b16 %v4497, %v4494
  %v4981 = vpack.c.b16 %v4498, %v4495
  %v4982 = vpack.c.b16 %v4499, %v4496
  %v4983 = vpack.c.b16 %v4503, %v4500
  %v4984 = vpack.c.b16 %v4504, %v4501
  %v4985 = vpack.c.b16 %v4505, %v4502
  %v4986 = vpack.c.b16 %v4509, %v4506
  %v4987 = vpack.c.b16 %v4510, %v4507
  %v4988 = vpack.c.b16 %v4511, %v4508
  %v4989 = vpack.c.b16 %v4515, %v4512
  %v4990 = vpack.c.b16 %v4516, %v4513
  %v4991 = vpack.c.b16 %v4517, %v4514
  %v4992 = vpack.c.b16 %v4521, %v4518
  %v4993 = vpack.c.b16 %v4522, %v4519
  %v4994 = vpack.c.b16 %v4523, %v4520
  %v4995 = vpack.c.b16 %v4527, %v4524
  %v4996 = vpack.c.b16 %v4528, %v4525
  %v4997 = vpack.c.b16 %v4529, %v4526
  %v4998 = vpack.c.b16 %v4533, %v4530
  %v4999 = vpack.c.b16 %v4534, %v4531
  %v5000 = vpack.c.b16 %v4535, %v4532
  %v5001 = vpack.c.b16 %v4539, %v4536
  %v5002 = vpack.c.b16 %v4540, %v4537
  %v5003 = vpack.c.b16 %v4541, %v4538
  %v5004 = vpack.c.b16 %v4545, %v4542
  %v5005 = vpack.c.b16 %v4546, %v4543
  %v5006 = vpack.c.b16 %v4547, %v4544
  %v5007 = vpack.c.b16 %v4551, %v4548
  %v5008 = vpack.c.b16 %v4552, %v4549
  %v5009 = vpack.c.b16 %v4553, %v4550
  %v5010 = vpack.c.b16 %v4557, %v4554
  %v5011 = vpack.c.b16 %v4558, %v4555
  %v5012 = vpack.c.b16 %v4559, %v4556
  %v5013 = vpack.c.b16 %v4563, %v4560
  %v5014 = vpack.c.b16 %v4564, %v4561
  %v5015 = vpack.c.b16 %v4565, %v4562
  %v5016 = vpack.c.b16 %v4569, %v4566
  %v5017 = vpack.c.b16 %v4570, %v4567
  %v5018 = vpack.c.b16 %v4571, %v4568
  %v5019 = vpack.c.b16 %v4575, %v4572
  %v5020 = vpack.c.b16 %v4576, %v4573
  %v5021 = vpack.c.b16 %v4577, %v4574
  %v5022 = vpack.c.b16 %v4581, %v4578
  %v5023 = vpack.c.b16 %v4582, %v4579
  %v5024 = vpack.c.b16 %v4583, %v4580
  %v5025 = vpack.c.b16 %v4587, %v4584
  %v5026 = vpack.c.b16 %v4588, %v4585
  %v5027 = vpack.c.b16 %v4589, %v4586
  %v5028 = vpack.c.b16 %v4593, %v4590
  %v5029 = vpack.c.b16 %v4594, %v4591
  %v5030 = vpack.c.b16 %v4595, %v4592
  %v5031 = vpack.c.b16 %v4599, %v4596
  %v5032 = vpack.c.b16 %v4600, %v4597
  %v5033 = vpack.c.b16 %v4601, %v4598
  %v5034 = vpack.c.b16 %v4605, %v4602
  %v5035 = vpack.c.b16 %v4606, %v4603
  %v5036 = vpack.c.b16 %v4607, %v4604
  %v5037 = vpack.c.b16 %v4611, %v4608
  %v5038 = vpack.c.b16 %v4612, %v4609
  %v5039 = vpack.c.b16 %v4613, %v4610
  %v5040 = vpack.c.b16 %v4617, %v4614
  %v5041 = vpack.c.b16 %v4618, %v4615
  %v5042 = vpack.c.b16 %v4619, %v4616
  %v5043 = vpack.c.b16 %v4623, %v4620
  %v5044 = vpack.c.b16 %v4624, %v4621
  %v5045 = vpack.c.b16 %v4625, %v4622
  %v5046 = vpack.c.b16 %v4629, %v4626
  %v5047 = vpack.c.b16 %v4630, %v4627
  %v5048 = vpack.c.b16 %v4631, %v4628
  %v5049 = vpack.c.b16 %v4635, %v4632
  %v5050 = vpack.c.b16 %v4636, %v4633
  %v5051 = vpack.c.b16 %v4637, %v4634
  %v5052 = vpack.c.b16 %v4641, %v4638
  %v5053 = vpack.c.b16 %v4642, %v4639
  %v5054 = vpack.c.b16 %v4643, %v4640
  %v5055 = vpack.c.b16 %v4647, %v4644
  %v5056 = vpack.c.b16 %v4648, %v4645
  %v5057 = vpack.c.b16 %v4649, %v4646
  %v5058 = vpack.c.b16 %v4653, %v4650
  %v5059 = vpack.c.b16 %v4654, %v4651
  %v5060 = vpack.c.b16 %v4655, %v4652
  %v5061 = vpack.c.b16 %v4659, %v4656
  %v5062 = vpack.c.b16 %v4660, %v4657
  %v5063 = vpack.c.b16 %v4661, %v4658
  %v5064 = vpack.c.b16 %v4665, %v4662
  %v5065 = vpack.c.b16 %v4666, %v4663
  %v5066 = vpack.c.b16 %v4667, %v4664
  %v5067 = vpack.c.b16 %v4671, %v4668
  %v5068 = vpack.c.b16 %v4672, %v4669
  %v5069 = vpack.c.b16 %v4673, %v4670
  %v5070 = vpack.c.b16 %v4677, %v4674
  %v5071 = vpack.c.b16 %v4678, %v4675
  %v5072 = vpack.c.b16 %v4679, %v4676
  %v5073 = vpack.c.b16 %v4683, %v4680
  %v5074 = vpack.c.b16 %v4684, %v4681
  %v5075 = vpack.c.b16 %v4685, %v4682
  %v5076 = vpack.c.b16 %v4689, %v4686
  %v5077 = vpack.c.b16 %v4690, %v4687
  %v5078 = vpack.c.b16 %v4691, %v4688
  %v5079 = vpack.c.b16 %v4695, %v4692
  %v5080 = vpack.c.b16 %v4696, %v4693
  %v5081 = vpack.c.b16 %v4697, %v4694
  %v5082 = vpack.c.b16 %v4701, %v4698
  %v5083 = vpack.c.b16 %v4702, %v4699
  %v5084 = vpack.c.b16 %v4703, %v4700
  %v5085 = vpack.c.b16 %v4707, %v4704
  %v5086 = vpack.c.b16 %v4708, %v4705
  %v5087 = vpack.c.b16 %v4709, %v4706
  %v5088 = vpack.c.b16 %v4713, %v4710
  %v5089 = vpack.c.b16 %v4714, %v4711
  %v5090 = vpack.c.b16 %v4715, %v4712
  %v5091 = vpack.c.b16 %v4719, %v4716
  %v5092 = vpack.c.b16 %v4720, %v4717
  %v5093 = vpack.c.b16 %v4721, %v4718
  %v5094 = vpack.c.b16 %v4725, %v4722
  %v5095 = vpack.c.b16 %v4726, %v4723
  %v5096 = vpack.c.b16 %v4727, %v4724
  %v5097 = vpack.c.b16 %v4731, %v4728
  %v5098 = vpack.c.b16 %v4732, %v4729
  %v5099 = vpack.c.b16 %v4733, %v4730
  %v5100 = vpack.c.b16 %v4737, %v4734
  %v5101 = vpack.c.b16 %v4738, %v4735
  %v5102 = vpack.c.b16 %v4739, %v4736
  %v5103 = vpack.c.b16 %v4743, %v4740
  %v5104 = vpack.c.b16 %v4744, %v4741
  %v5105 = vpack.c.b16 %v4745, %v4742
  %v5106 = vpack.c.b16 %v4749, %v4746
  %v5107 = vpack.c.b16 %v4750, %v4747
  %v5108 = vpack.c.b16 %v4751, %v4748
  %v5109 = vpack.c.b16 %v4755, %v4752
  %v5110 = vpack.c.b16 %v4756, %v4753
  %v5111 = vpack.c.b16 %v4757, %v4754
  %v5112 = vpack.c.b16 %v4761, %v4758
  %v5113 = vpack.c.b16 %v4762, %v4759
  %v5114 = vpack.c.b16 %v4763, %v4760
  %v5115 = vpack.c.b16 %v4767, %v4764
  %v5116 = vpack.c.b16 %v4768, %v4765
  %v5117 = vpack.c.b16 %v4769, %v4766
  %v5118 = vpack.c.b16 %v4773, %v4770
  %v5119 = vpack.c.b16 %v4774, %v4771
  %v5120 = vpack.c.b16 %v4775, %v4772
  %v5121 = vpack.c.b16 %v4779, %v4776
  %v5122 = vpack.c.b16 %v4780, %v4777
  %v5123 = vpack.c.b16 %v4781, %v4778
  %v5124 = vpack.c.b16 %v4785, %v4782
  %v5125 = vpack.c.b16 %v4786, %v4783
  %v5126 = vpack.c.b16 %v4787, %v4784
  %v5127 = vpack.c.b16 %v4791, %v4788
  %v5128 = vpack.c.b16 %v4792, %v4789
  %v5129 = vpack.c.b16 %v4793, %v4790
  %v5130 = vpack.c.b16 %v4797, %v4794
  %v5131 = vpack.c.b16 %v4798, %v4795
  %v5132 = vpack.c.b16 %v4799, %v4796
  %v5133 = vpack.c.b16 %v4803, %v4800
  %v5134 = vpack.c.b16 %v4804, %v4801
  %v5135 = vpack.c.b16 %v4805, %v4802
  %v5136 = vpack.c.b16 %v4809, %v4806
  %v5137 = vpack.c.b16 %v4810, %v4807
  %v5138 = vpack.c.b16 %v4811, %v4808
  %v5139 = vpack.c.b16 %v4815, %v4812
  %v5140 = vpack.c.b16 %v4816, %v4813
  %v5141 = vpack.c.b16 %v4817, %v4814
  %v5142 = vpack.c.b16 %v4821, %v4818
  %v5143 = vpack.c.b16 %v4822, %v4819
  %v5144 = vpack.c.b16 %v4823, %v4820
  %v5145 = vpack.c.b16 %v4827, %v4824
  %v5146 = vpack.c.b16 %v4828, %v4825
  %v5147 = vpack.c.b16 %v4829, %v4826
  %v5148 = vpack.c.b16 %v4833, %v4830
  %v5149 = vpack.c.b16 %v4834, %v4831
  %v5150 = vpack.c.b16 %v4835, %v4832
  %v5151 = vpack.c.b16 %v4839, %v4836
  %v5152 = vpack.c.b16 %v4840, %v4837
  %v5153 = vpack.c.b16 %v4841, %v4838
  %v5154 = vpack.c.b16 %v4845, %v4842
  %v5155 = vpack.c.b16 %v4846, %v4843
  %v5156 = vpack.c.b16 %v4847, %v4844
  %v5157 = vpack.c.b16 %v4851, %v4848
  %v5158 = vpack.c.b16 %v4852, %v4849
  %v5159 = vpack.c.b16 %v4853, %v4850
  %v5160 = vpack.c.b16 %v4857, %v4854
  %v5161 = vpack.c.b16 %v4858, %v4855
  %v5162 = vpack.c.b16 %v4859, %v4856
  %v5163 = vpack.c.b16 %v4863, %v4860
  %v5164 = vpack.c.b16 %v4864, %v4861
  %v5165 = vpack.c.b16 %v4865, %v4862
  %v5166 = vpack.c.b16 %v4869, %v4866
  %v5167 = vpack.c.b16 %v4870, %v4867
  %v5168 = vpack.c.b16 %v4871, %v4868
  %v5169 = vpack.c.b16 %v4875, %v4872
  %v5170 = vpack.c.b16 %v4876, %v4873
  %v5171 = vpack.c.b16 %v4877, %v4874
  %v5172 = vpack.c.b16 %v4881, %v4878
  %v5173 = vpack.c.b16 %v4882, %v4879
  %v5174 = vpack.c.b16 %v4883, %v4880
  %v5175 = vpack.c.b16 %v4887, %v4884
  %v5176 = vpack.c.b16 %v4888, %v4885
  %v5177 = vpack.c.b16 %v4889, %v4886
  %5466 = vmatprep.subr.bf16.mxu0 %v4912
  %5467 = vmatpush1.bf16.msra.mxu0 %v4911
  %5468 = vmatprep.subr.bf16.mxu0 %v4909
  %5469 = vmatpush1.bf16.msra.mxu0 %v4908
  %5470 = vmatprep.subr.bf16.mxu0 %v4906
  %5471 = vmatpush1.bf16.msra.mxu0 %v4905
  %5472 = vmatprep.subr.bf16.mxu0 %v4903
  %5473 = vmatpush1.bf16.msra.mxu0 %v4902
  %5474 = vmatprep.subr.bf16.mxu0 %v4900
  %5475 = vmatpush1.bf16.msra.mxu0 %v4899
  %5476 = vmatprep.subr.bf16.mxu0 %v4897
  %5477 = vmatpush1.bf16.msra.mxu0 %v4896
  %5478 = vmatprep.subr.bf16.mxu0 %v4894
  %5479 = vmatpush1.bf16.msra.mxu0 %v4893
  %5480 = vmatprep.subr.bf16.mxu0 %v4891
  %5481 = vmatpush1.bf16.msra.mxu0 %v4890
  %5482 = vmatprep.subr.bf16.mxu0 %v4936
  %5483 = vmatpush2.bf16.msra.mxu0 %v4935
  %5484 = vmatprep.subr.bf16.mxu0 %v4933
  %5485 = vmatpush2.bf16.msra.mxu0 %v4932
  %5486 = vmatprep.subr.bf16.mxu0 %v4930
  %5487 = vmatpush2.bf16.msra.mxu0 %v4929
  %5488 = vmatprep.subr.bf16.mxu0 %v4927
  %5489 = vmatpush2.bf16.msra.mxu0 %v4926
  %5490 = vmatprep.subr.bf16.mxu0 %v4924
  %5491 = vmatpush2.bf16.msra.mxu0 %v4923
  %5492 = vmatprep.subr.bf16.mxu0 %v4921
  %5493 = vmatpush2.bf16.msra.mxu0 %v4920
  %5494 = vmatprep.subr.bf16.mxu0 %v4918
  %5495 = vmatpush2.bf16.msra.mxu0 %v4917
  %5496 = vmatprep.subr.bf16.mxu0 %v4915
  %5497 = vmatpush2.bf16.msra.mxu0 %v4914
  %5498 = vmatprep.mubr.bf16.mxu0 %v3434
  %5499 = vmatmul.mubr.bf16.gmra.mxu0 %v3433
  %v5500 = vpop.f32.mrf.mxu0
  %v5501 = vadd.f32 %v3918, %v5500
  %v5502 = vpop.f32.mrf.mxu0
  %v5503 = vadd.f32 %v3922, %v5502
  %v5504 = vpop.f32.mrf.mxu0
  %v5505 = vadd.f32 %v3918, %v5504
  %v5506 = vpop.f32.mrf.mxu0
  %v5507 = vadd.f32 %v3922, %v5506
  %5508 = vmatprep.mubr.bf16.mxu0 %v3446
  %5509 = vmatmul.mubr.bf16.gmra.mxu0 %v3445
  %v5510 = vpop.f32.mrf.mxu0
  %v5511 = vadd.f32 %v3918, %v5510
  %v5512 = vpop.f32.mrf.mxu0
  %v5513 = vadd.f32 %v3922, %v5512
  %v5514 = vpop.f32.mrf.mxu0
  %v5515 = vadd.f32 %v3918, %v5514
  %v5516 = vpop.f32.mrf.mxu0
  %v5517 = vadd.f32 %v3922, %v5516
  %5518 = vmatprep.mubr.bf16.mxu0 %v3458
  %5519 = vmatmul.mubr.bf16.gmra.mxu0 %v3457
  %v5520 = vpop.f32.mrf.mxu0
  %v5521 = vadd.f32 %v3918, %v5520
  %v5522 = vpop.f32.mrf.mxu0
  %v5523 = vadd.f32 %v3922, %v5522
  %v5524 = vpop.f32.mrf.mxu0
  %v5525 = vadd.f32 %v3918, %v5524
  %v5526 = vpop.f32.mrf.mxu0
  %v5527 = vadd.f32 %v3922, %v5526
  %5528 = vmatprep.mubr.bf16.mxu0 %v3470
  %5529 = vmatmul.mubr.bf16.gmra.mxu0 %v3469
  %v5530 = vpop.f32.mrf.mxu0
  %v5531 = vadd.f32 %v3918, %v5530
  %v5532 = vpop.f32.mrf.mxu0
  %v5533 = vadd.f32 %v3922, %v5532
  %v5534 = vpop.f32.mrf.mxu0
  %v5535 = vadd.f32 %v3918, %v5534
  %v5536 = vpop.f32.mrf.mxu0
  %v5537 = vadd.f32 %v3922, %v5536
  %5538 = vmatprep.mubr.bf16.mxu0 %v3482
  %5539 = vmatmul.mubr.bf16.gmra.mxu0 %v3481
  %v5540 = vpop.f32.mrf.mxu0
  %v5541 = vadd.f32 %v3918, %v5540
  %v5542 = vpop.f32.mrf.mxu0
  %v5543 = vadd.f32 %v3922, %v5542
  %v5544 = vpop.f32.mrf.mxu0
  %v5545 = vadd.f32 %v3918, %v5544
  %v5546 = vpop.f32.mrf.mxu0
  %v5547 = vadd.f32 %v3922, %v5546
  %5548 = vmatprep.mubr.bf16.mxu0 %v3494
  %5549 = vmatmul.mubr.bf16.gmra.mxu0 %v3493
  %v5550 = vpop.f32.mrf.mxu0
  %v5551 = vadd.f32 %v3918, %v5550
  %v5552 = vpop.f32.mrf.mxu0
  %v5553 = vadd.f32 %v3922, %v5552
  %v5554 = vpop.f32.mrf.mxu0
  %v5555 = vadd.f32 %v3918, %v5554
  %v5556 = vpop.f32.mrf.mxu0
  %v5557 = vadd.f32 %v3922, %v5556
  %5558 = vmatprep.mubr.bf16.mxu0 %v3506
  %5559 = vmatmul.mubr.bf16.gmra.mxu0 %v3505
  %v5560 = vpop.f32.mrf.mxu0
  %v5561 = vadd.f32 %v3918, %v5560
  %v5562 = vpop.f32.mrf.mxu0
  %v5563 = vadd.f32 %v3922, %v5562
  %v5564 = vpop.f32.mrf.mxu0
  %v5565 = vadd.f32 %v3918, %v5564
  %v5566 = vpop.f32.mrf.mxu0
  %v5567 = vadd.f32 %v3922, %v5566
  %5568 = vmatprep.mubr.bf16.mxu0 %v3518
  %5569 = vmatmul.mubr.bf16.gmra.mxu0 %v3517
  %v5570 = vpop.f32.mrf.mxu0
  %v5571 = vadd.f32 %v3918, %v5570
  %v5572 = vpop.f32.mrf.mxu0
  %v5573 = vadd.f32 %v3922, %v5572
  %v5574 = vpop.f32.mrf.mxu0
  %v5575 = vadd.f32 %v3918, %v5574
  %v5576 = vpop.f32.mrf.mxu0
  %v5577 = vadd.f32 %v3922, %v5576
  %5578 = vdwg.mxu0
  %5579 = vmatprep.subr.bf16.mxu0 %v4960
  %5580 = vmatpush1.bf16.msra.mxu0 %v4959
  %5581 = vmatprep.subr.bf16.mxu0 %v4957
  %5582 = vmatpush1.bf16.msra.mxu0 %v4956
  %5583 = vmatprep.subr.bf16.mxu0 %v4954
  %5584 = vmatpush1.bf16.msra.mxu0 %v4953
  %5585 = vmatprep.subr.bf16.mxu0 %v4951
  %5586 = vmatpush1.bf16.msra.mxu0 %v4950
  %5587 = vmatprep.subr.bf16.mxu0 %v4948
  %5588 = vmatpush1.bf16.msra.mxu0 %v4947
  %5589 = vmatprep.subr.bf16.mxu0 %v4945
  %5590 = vmatpush1.bf16.msra.mxu0 %v4944
  %5591 = vmatprep.subr.bf16.mxu0 %v4942
  %5592 = vmatpush1.bf16.msra.mxu0 %v4941
  %5593 = vmatprep.subr.bf16.mxu0 %v4939
  %5594 = vmatpush1.bf16.msra.mxu0 %v4938
  %5595 = vmatprep.subr.bf16.mxu0 %v4984
  %5596 = vmatpush2.bf16.msra.mxu0 %v4983
  %5597 = vmatprep.subr.bf16.mxu0 %v4981
  %5598 = vmatpush2.bf16.msra.mxu0 %v4980
  %5599 = vmatprep.subr.bf16.mxu0 %v4978
  %5600 = vmatpush2.bf16.msra.mxu0 %v4977
  %5601 = vmatprep.subr.bf16.mxu0 %v4975
  %5602 = vmatpush2.bf16.msra.mxu0 %v4974
  %5603 = vmatprep.subr.bf16.mxu0 %v4972
  %5604 = vmatpush2.bf16.msra.mxu0 %v4971
  %5605 = vmatprep.subr.bf16.mxu0 %v4969
  %5606 = vmatpush2.bf16.msra.mxu0 %v4968
  %5607 = vmatprep.subr.bf16.mxu0 %v4966
  %5608 = vmatpush2.bf16.msra.mxu0 %v4965
  %5609 = vmatprep.subr.bf16.mxu0 %v4963
  %5610 = vmatpush2.bf16.msra.mxu0 %v4962
  %5611 = vmatprep.mubr.bf16.mxu0 %v3436
  %5612 = vmatmul.mubr.bf16.gmra.mxu0 %v3435
  %v5613 = vpop.f32.mrf.mxu0
  %v5614 = vadd.f32 %v5501, %v5613
  %v5615 = vpop.f32.mrf.mxu0
  %v5616 = vadd.f32 %v5503, %v5615
  %v5617 = vpop.f32.mrf.mxu0
  %v5618 = vadd.f32 %v5505, %v5617
  %v5619 = vpop.f32.mrf.mxu0
  %v5620 = vadd.f32 %v5507, %v5619
  %5621 = vmatprep.mubr.bf16.mxu0 %v3448
  %5622 = vmatmul.mubr.bf16.gmra.mxu0 %v3447
  %v5623 = vpop.f32.mrf.mxu0
  %v5624 = vadd.f32 %v5511, %v5623
  %v5625 = vpop.f32.mrf.mxu0
  %v5626 = vadd.f32 %v5513, %v5625
  %v5627 = vpop.f32.mrf.mxu0
  %v5628 = vadd.f32 %v5515, %v5627
  %v5629 = vpop.f32.mrf.mxu0
  %v5630 = vadd.f32 %v5517, %v5629
  %5631 = vmatprep.mubr.bf16.mxu0 %v3460
  %5632 = vmatmul.mubr.bf16.gmra.mxu0 %v3459
  %v5633 = vpop.f32.mrf.mxu0
  %v5634 = vadd.f32 %v5521, %v5633
  %v5635 = vpop.f32.mrf.mxu0
  %v5636 = vadd.f32 %v5523, %v5635
  %v5637 = vpop.f32.mrf.mxu0
  %v5638 = vadd.f32 %v5525, %v5637
  %v5639 = vpop.f32.mrf.mxu0
  %v5640 = vadd.f32 %v5527, %v5639
  %5641 = vmatprep.mubr.bf16.mxu0 %v3472
  %5642 = vmatmul.mubr.bf16.gmra.mxu0 %v3471
  %v5643 = vpop.f32.mrf.mxu0
  %v5644 = vadd.f32 %v5531, %v5643
  %v5645 = vpop.f32.mrf.mxu0
  %v5646 = vadd.f32 %v5533, %v5645
  %v5647 = vpop.f32.mrf.mxu0
  %v5648 = vadd.f32 %v5535, %v5647
  %v5649 = vpop.f32.mrf.mxu0
  %v5650 = vadd.f32 %v5537, %v5649
  %5651 = vmatprep.mubr.bf16.mxu0 %v3484
  %5652 = vmatmul.mubr.bf16.gmra.mxu0 %v3483
  %v5653 = vpop.f32.mrf.mxu0
  %v5654 = vadd.f32 %v5541, %v5653
  %v5655 = vpop.f32.mrf.mxu0
  %v5656 = vadd.f32 %v5543, %v5655
  %v5657 = vpop.f32.mrf.mxu0
  %v5658 = vadd.f32 %v5545, %v5657
  %v5659 = vpop.f32.mrf.mxu0
  %v5660 = vadd.f32 %v5547, %v5659
  %5661 = vmatprep.mubr.bf16.mxu0 %v3496
  %5662 = vmatmul.mubr.bf16.gmra.mxu0 %v3495
  %v5663 = vpop.f32.mrf.mxu0
  %v5664 = vadd.f32 %v5551, %v5663
  %v5665 = vpop.f32.mrf.mxu0
  %v5666 = vadd.f32 %v5553, %v5665
  %v5667 = vpop.f32.mrf.mxu0
  %v5668 = vadd.f32 %v5555, %v5667
  %v5669 = vpop.f32.mrf.mxu0
  %v5670 = vadd.f32 %v5557, %v5669
  %5671 = vmatprep.mubr.bf16.mxu0 %v3508
  %5672 = vmatmul.mubr.bf16.gmra.mxu0 %v3507
  %v5673 = vpop.f32.mrf.mxu0
  %v5674 = vadd.f32 %v5561, %v5673
  %v5675 = vpop.f32.mrf.mxu0
  %v5676 = vadd.f32 %v5563, %v5675
  %v5677 = vpop.f32.mrf.mxu0
  %v5678 = vadd.f32 %v5565, %v5677
  %v5679 = vpop.f32.mrf.mxu0
  %v5680 = vadd.f32 %v5567, %v5679
  %5681 = vmatprep.mubr.bf16.mxu0 %v3520
  %5682 = vmatmul.mubr.bf16.gmra.mxu0 %v3519
  %v5683 = vpop.f32.mrf.mxu0
  %v5684 = vadd.f32 %v5571, %v5683
  %v5685 = vpop.f32.mrf.mxu0
  %v5686 = vadd.f32 %v5573, %v5685
  %v5687 = vpop.f32.mrf.mxu0
  %v5688 = vadd.f32 %v5575, %v5687
  %v5689 = vpop.f32.mrf.mxu0
  %v5690 = vadd.f32 %v5577, %v5689
  %5691 = vdwg.mxu0
  %5692 = vmatprep.subr.bf16.mxu0 %v5008
  %5693 = vmatpush1.bf16.msra.mxu0 %v5007
  %5694 = vmatprep.subr.bf16.mxu0 %v5005
  %5695 = vmatpush1.bf16.msra.mxu0 %v5004
  %5696 = vmatprep.subr.bf16.mxu0 %v5002
  %5697 = vmatpush1.bf16.msra.mxu0 %v5001
  %5698 = vmatprep.subr.bf16.mxu0 %v4999
  %5699 = vmatpush1.bf16.msra.mxu0 %v4998
  %5700 = vmatprep.subr.bf16.mxu0 %v4996
  %5701 = vmatpush1.bf16.msra.mxu0 %v4995
  %5702 = vmatprep.subr.bf16.mxu0 %v4993
  %5703 = vmatpush1.bf16.msra.mxu0 %v4992
  %5704 = vmatprep.subr.bf16.mxu0 %v4990
  %5705 = vmatpush1.bf16.msra.mxu0 %v4989
  %5706 = vmatprep.subr.bf16.mxu0 %v4987
  %5707 = vmatpush1.bf16.msra.mxu0 %v4986
  %5708 = vmatprep.subr.bf16.mxu0 %v5032
  %5709 = vmatpush2.bf16.msra.mxu0 %v5031
  %5710 = vmatprep.subr.bf16.mxu0 %v5029
  %5711 = vmatpush2.bf16.msra.mxu0 %v5028
  %5712 = vmatprep.subr.bf16.mxu0 %v5026
  %5713 = vmatpush2.bf16.msra.mxu0 %v5025
  %5714 = vmatprep.subr.bf16.mxu0 %v5023
  %5715 = vmatpush2.bf16.msra.mxu0 %v5022
  %5716 = vmatprep.subr.bf16.mxu0 %v5020
  %5717 = vmatpush2.bf16.msra.mxu0 %v5019
  %5718 = vmatprep.subr.bf16.mxu0 %v5017
  %5719 = vmatpush2.bf16.msra.mxu0 %v5016
  %5720 = vmatprep.subr.bf16.mxu0 %v5014
  %5721 = vmatpush2.bf16.msra.mxu0 %v5013
  %5722 = vmatprep.subr.bf16.mxu0 %v5011
  %5723 = vmatpush2.bf16.msra.mxu0 %v5010
  %5724 = vmatprep.mubr.bf16.mxu0 %v3438
  %5725 = vmatmul.mubr.bf16.gmra.mxu0 %v3437
  %v5726 = vpop.f32.mrf.mxu0
  %v5727 = vadd.f32 %v5614, %v5726
  %v5728 = vpop.f32.mrf.mxu0
  %v5729 = vadd.f32 %v5616, %v5728
  %v5730 = vpop.f32.mrf.mxu0
  %v5731 = vadd.f32 %v5618, %v5730
  %v5732 = vpop.f32.mrf.mxu0
  %v5733 = vadd.f32 %v5620, %v5732
  %5734 = vmatprep.mubr.bf16.mxu0 %v3450
  %5735 = vmatmul.mubr.bf16.gmra.mxu0 %v3449
  %v5736 = vpop.f32.mrf.mxu0
  %v5737 = vadd.f32 %v5624, %v5736
  %v5738 = vpop.f32.mrf.mxu0
  %v5739 = vadd.f32 %v5626, %v5738
  %v5740 = vpop.f32.mrf.mxu0
  %v5741 = vadd.f32 %v5628, %v5740
  %v5742 = vpop.f32.mrf.mxu0
  %v5743 = vadd.f32 %v5630, %v5742
  %5744 = vmatprep.mubr.bf16.mxu0 %v3462
  %5745 = vmatmul.mubr.bf16.gmra.mxu0 %v3461
  %v5746 = vpop.f32.mrf.mxu0
  %v5747 = vadd.f32 %v5634, %v5746
  %v5748 = vpop.f32.mrf.mxu0
  %v5749 = vadd.f32 %v5636, %v5748
  %v5750 = vpop.f32.mrf.mxu0
  %v5751 = vadd.f32 %v5638, %v5750
  %v5752 = vpop.f32.mrf.mxu0
  %v5753 = vadd.f32 %v5640, %v5752
  %5754 = vmatprep.mubr.bf16.mxu0 %v3474
  %5755 = vmatmul.mubr.bf16.gmra.mxu0 %v3473
  %v5756 = vpop.f32.mrf.mxu0
  %v5757 = vadd.f32 %v5644, %v5756
  %v5758 = vpop.f32.mrf.mxu0
  %v5759 = vadd.f32 %v5646, %v5758
  %v5760 = vpop.f32.mrf.mxu0
  %v5761 = vadd.f32 %v5648, %v5760
  %v5762 = vpop.f32.mrf.mxu0
  %v5763 = vadd.f32 %v5650, %v5762
  %5764 = vmatprep.mubr.bf16.mxu0 %v3486
  %5765 = vmatmul.mubr.bf16.gmra.mxu0 %v3485
  %v5766 = vpop.f32.mrf.mxu0
  %v5767 = vadd.f32 %v5654, %v5766
  %v5768 = vpop.f32.mrf.mxu0
  %v5769 = vadd.f32 %v5656, %v5768
  %v5770 = vpop.f32.mrf.mxu0
  %v5771 = vadd.f32 %v5658, %v5770
  %v5772 = vpop.f32.mrf.mxu0
  %v5773 = vadd.f32 %v5660, %v5772
  %5774 = vmatprep.mubr.bf16.mxu0 %v3498
  %5775 = vmatmul.mubr.bf16.gmra.mxu0 %v3497
  %v5776 = vpop.f32.mrf.mxu0
  %v5777 = vadd.f32 %v5664, %v5776
  %v5778 = vpop.f32.mrf.mxu0
  %v5779 = vadd.f32 %v5666, %v5778
  %v5780 = vpop.f32.mrf.mxu0
  %v5781 = vadd.f32 %v5668, %v5780
  %v5782 = vpop.f32.mrf.mxu0
  %v5783 = vadd.f32 %v5670, %v5782
  %5784 = vmatprep.mubr.bf16.mxu0 %v3510
  %5785 = vmatmul.mubr.bf16.gmra.mxu0 %v3509
  %v5786 = vpop.f32.mrf.mxu0
  %v5787 = vadd.f32 %v5674, %v5786
  %v5788 = vpop.f32.mrf.mxu0
  %v5789 = vadd.f32 %v5676, %v5788
  %v5790 = vpop.f32.mrf.mxu0
  %v5791 = vadd.f32 %v5678, %v5790
  %v5792 = vpop.f32.mrf.mxu0
  %v5793 = vadd.f32 %v5680, %v5792
  %5794 = vmatprep.mubr.bf16.mxu0 %v3522
  %5795 = vmatmul.mubr.bf16.gmra.mxu0 %v3521
  %v5796 = vpop.f32.mrf.mxu0
  %v5797 = vadd.f32 %v5684, %v5796
  %v5798 = vpop.f32.mrf.mxu0
  %v5799 = vadd.f32 %v5686, %v5798
  %v5800 = vpop.f32.mrf.mxu0
  %v5801 = vadd.f32 %v5688, %v5800
  %v5802 = vpop.f32.mrf.mxu0
  %v5803 = vadd.f32 %v5690, %v5802
  %5804 = vdwg.mxu0
  %5805 = vmatprep.subr.bf16.mxu0 %v5056
  %5806 = vmatpush1.bf16.msra.mxu0 %v5055
  %5807 = vmatprep.subr.bf16.mxu0 %v5053
  %5808 = vmatpush1.bf16.msra.mxu0 %v5052
  %5809 = vmatprep.subr.bf16.mxu0 %v5050
  %5810 = vmatpush1.bf16.msra.mxu0 %v5049
  %5811 = vmatprep.subr.bf16.mxu0 %v5047
  %5812 = vmatpush1.bf16.msra.mxu0 %v5046
  %5813 = vmatprep.subr.bf16.mxu0 %v5044
  %5814 = vmatpush1.bf16.msra.mxu0 %v5043
  %5815 = vmatprep.subr.bf16.mxu0 %v5041
  %5816 = vmatpush1.bf16.msra.mxu0 %v5040
  %5817 = vmatprep.subr.bf16.mxu0 %v5038
  %5818 = vmatpush1.bf16.msra.mxu0 %v5037
  %5819 = vmatprep.subr.bf16.mxu0 %v5035
  %5820 = vmatpush1.bf16.msra.mxu0 %v5034
  %5821 = vmatprep.subr.bf16.mxu0 %v5080
  %5822 = vmatpush2.bf16.msra.mxu0 %v5079
  %5823 = vmatprep.subr.bf16.mxu0 %v5077
  %5824 = vmatpush2.bf16.msra.mxu0 %v5076
  %5825 = vmatprep.subr.bf16.mxu0 %v5074
  %5826 = vmatpush2.bf16.msra.mxu0 %v5073
  %5827 = vmatprep.subr.bf16.mxu0 %v5071
  %5828 = vmatpush2.bf16.msra.mxu0 %v5070
  %5829 = vmatprep.subr.bf16.mxu0 %v5068
  %5830 = vmatpush2.bf16.msra.mxu0 %v5067
  %5831 = vmatprep.subr.bf16.mxu0 %v5065
  %5832 = vmatpush2.bf16.msra.mxu0 %v5064
  %5833 = vmatprep.subr.bf16.mxu0 %v5062
  %5834 = vmatpush2.bf16.msra.mxu0 %v5061
  %5835 = vmatprep.subr.bf16.mxu0 %v5059
  %5836 = vmatpush2.bf16.msra.mxu0 %v5058
  %5837 = vmatprep.mubr.bf16.mxu0 %v3440
  %5838 = vmatmul.mubr.bf16.gmra.mxu0 %v3439
  %v5839 = vpop.f32.mrf.mxu0
  %v5840 = vadd.f32 %v5727, %v5839
  %v5841 = vpop.f32.mrf.mxu0
  %v5842 = vadd.f32 %v5729, %v5841
  %v5843 = vpop.f32.mrf.mxu0
  %v5844 = vadd.f32 %v5731, %v5843
  %v5845 = vpop.f32.mrf.mxu0
  %v5846 = vadd.f32 %v5733, %v5845
  %5847 = vmatprep.mubr.bf16.mxu0 %v3452
  %5848 = vmatmul.mubr.bf16.gmra.mxu0 %v3451
  %v5849 = vpop.f32.mrf.mxu0
  %v5850 = vadd.f32 %v5737, %v5849
  %v5851 = vpop.f32.mrf.mxu0
  %v5852 = vadd.f32 %v5739, %v5851
  %v5853 = vpop.f32.mrf.mxu0
  %v5854 = vadd.f32 %v5741, %v5853
  %v5855 = vpop.f32.mrf.mxu0
  %v5856 = vadd.f32 %v5743, %v5855
  %5857 = vmatprep.mubr.bf16.mxu0 %v3464
  %5858 = vmatmul.mubr.bf16.gmra.mxu0 %v3463
  %v5859 = vpop.f32.mrf.mxu0
  %v5860 = vadd.f32 %v5747, %v5859
  %v5861 = vpop.f32.mrf.mxu0
  %v5862 = vadd.f32 %v5749, %v5861
  %v5863 = vpop.f32.mrf.mxu0
  %v5864 = vadd.f32 %v5751, %v5863
  %v5865 = vpop.f32.mrf.mxu0
  %v5866 = vadd.f32 %v5753, %v5865
  %5867 = vmatprep.mubr.bf16.mxu0 %v3476
  %5868 = vmatmul.mubr.bf16.gmra.mxu0 %v3475
  %v5869 = vpop.f32.mrf.mxu0
  %v5870 = vadd.f32 %v5757, %v5869
  %v5871 = vpop.f32.mrf.mxu0
  %v5872 = vadd.f32 %v5759, %v5871
  %v5873 = vpop.f32.mrf.mxu0
  %v5874 = vadd.f32 %v5761, %v5873
  %v5875 = vpop.f32.mrf.mxu0
  %v5876 = vadd.f32 %v5763, %v5875
  %5877 = vmatprep.mubr.bf16.mxu0 %v3488
  %5878 = vmatmul.mubr.bf16.gmra.mxu0 %v3487
  %v5879 = vpop.f32.mrf.mxu0
  %v5880 = vadd.f32 %v5767, %v5879
  %v5881 = vpop.f32.mrf.mxu0
  %v5882 = vadd.f32 %v5769, %v5881
  %v5883 = vpop.f32.mrf.mxu0
  %v5884 = vadd.f32 %v5771, %v5883
  %v5885 = vpop.f32.mrf.mxu0
  %v5886 = vadd.f32 %v5773, %v5885
  %5887 = vmatprep.mubr.bf16.mxu0 %v3500
  %5888 = vmatmul.mubr.bf16.gmra.mxu0 %v3499
  %v5889 = vpop.f32.mrf.mxu0
  %v5890 = vadd.f32 %v5777, %v5889
  %v5891 = vpop.f32.mrf.mxu0
  %v5892 = vadd.f32 %v5779, %v5891
  %v5893 = vpop.f32.mrf.mxu0
  %v5894 = vadd.f32 %v5781, %v5893
  %v5895 = vpop.f32.mrf.mxu0
  %v5896 = vadd.f32 %v5783, %v5895
  %5897 = vmatprep.mubr.bf16.mxu0 %v3512
  %5898 = vmatmul.mubr.bf16.gmra.mxu0 %v3511
  %v5899 = vpop.f32.mrf.mxu0
  %v5900 = vadd.f32 %v5787, %v5899
  %v5901 = vpop.f32.mrf.mxu0
  %v5902 = vadd.f32 %v5789, %v5901
  %v5903 = vpop.f32.mrf.mxu0
  %v5904 = vadd.f32 %v5791, %v5903
  %v5905 = vpop.f32.mrf.mxu0
  %v5906 = vadd.f32 %v5793, %v5905
  %5907 = vmatprep.mubr.bf16.mxu0 %v3524
  %5908 = vmatmul.mubr.bf16.gmra.mxu0 %v3523
  %v5909 = vpop.f32.mrf.mxu0
  %v5910 = vadd.f32 %v5797, %v5909
  %v5911 = vpop.f32.mrf.mxu0
  %v5912 = vadd.f32 %v5799, %v5911
  %v5913 = vpop.f32.mrf.mxu0
  %v5914 = vadd.f32 %v5801, %v5913
  %v5915 = vpop.f32.mrf.mxu0
  %v5916 = vadd.f32 %v5803, %v5915
  %5917 = vdwg.mxu0
  %5918 = vmatprep.subr.bf16.mxu0 %v5104
  %5919 = vmatpush1.bf16.msra.mxu0 %v5103
  %5920 = vmatprep.subr.bf16.mxu0 %v5101
  %5921 = vmatpush1.bf16.msra.mxu0 %v5100
  %5922 = vmatprep.subr.bf16.mxu0 %v5098
  %5923 = vmatpush1.bf16.msra.mxu0 %v5097
  %5924 = vmatprep.subr.bf16.mxu0 %v5095
  %5925 = vmatpush1.bf16.msra.mxu0 %v5094
  %5926 = vmatprep.subr.bf16.mxu0 %v5092
  %5927 = vmatpush1.bf16.msra.mxu0 %v5091
  %5928 = vmatprep.subr.bf16.mxu0 %v5089
  %5929 = vmatpush1.bf16.msra.mxu0 %v5088
  %5930 = vmatprep.subr.bf16.mxu0 %v5086
  %5931 = vmatpush1.bf16.msra.mxu0 %v5085
  %5932 = vmatprep.subr.bf16.mxu0 %v5083
  %5933 = vmatpush1.bf16.msra.mxu0 %v5082
  %5934 = vmatprep.subr.bf16.mxu0 %v5128
  %5935 = vmatpush2.bf16.msra.mxu0 %v5127
  %5936 = vmatprep.subr.bf16.mxu0 %v5125
  %5937 = vmatpush2.bf16.msra.mxu0 %v5124
  %5938 = vmatprep.subr.bf16.mxu0 %v5122
  %5939 = vmatpush2.bf16.msra.mxu0 %v5121
  %5940 = vmatprep.subr.bf16.mxu0 %v5119
  %5941 = vmatpush2.bf16.msra.mxu0 %v5118
  %5942 = vmatprep.subr.bf16.mxu0 %v5116
  %5943 = vmatpush2.bf16.msra.mxu0 %v5115
  %5944 = vmatprep.subr.bf16.mxu0 %v5113
  %5945 = vmatpush2.bf16.msra.mxu0 %v5112
  %5946 = vmatprep.subr.bf16.mxu0 %v5110
  %5947 = vmatpush2.bf16.msra.mxu0 %v5109
  %5948 = vmatprep.subr.bf16.mxu0 %v5107
  %5949 = vmatpush2.bf16.msra.mxu0 %v5106
  %5950 = vmatprep.mubr.bf16.mxu0 %v3442
  %5951 = vmatmul.mubr.bf16.gmra.mxu0 %v3441
  %v5952 = vpop.f32.mrf.mxu0
  %v5953 = vadd.f32 %v5840, %v5952
  %v5954 = vpop.f32.mrf.mxu0
  %v5955 = vadd.f32 %v5842, %v5954
  %v5956 = vpop.f32.mrf.mxu0
  %v5957 = vadd.f32 %v5844, %v5956
  %v5958 = vpop.f32.mrf.mxu0
  %v5959 = vadd.f32 %v5846, %v5958
  %5960 = vmatprep.mubr.bf16.mxu0 %v3454
  %5961 = vmatmul.mubr.bf16.gmra.mxu0 %v3453
  %v5962 = vpop.f32.mrf.mxu0
  %v5963 = vadd.f32 %v5850, %v5962
  %v5964 = vpop.f32.mrf.mxu0
  %v5965 = vadd.f32 %v5852, %v5964
  %v5966 = vpop.f32.mrf.mxu0
  %v5967 = vadd.f32 %v5854, %v5966
  %v5968 = vpop.f32.mrf.mxu0
  %v5969 = vadd.f32 %v5856, %v5968
  %5970 = vmatprep.mubr.bf16.mxu0 %v3466
  %5971 = vmatmul.mubr.bf16.gmra.mxu0 %v3465
  %v5972 = vpop.f32.mrf.mxu0
  %v5973 = vadd.f32 %v5860, %v5972
  %v5974 = vpop.f32.mrf.mxu0
  %v5975 = vadd.f32 %v5862, %v5974
  %v5976 = vpop.f32.mrf.mxu0
  %v5977 = vadd.f32 %v5864, %v5976
  %v5978 = vpop.f32.mrf.mxu0
  %v5979 = vadd.f32 %v5866, %v5978
  %5980 = vmatprep.mubr.bf16.mxu0 %v3478
  %5981 = vmatmul.mubr.bf16.gmra.mxu0 %v3477
  %v5982 = vpop.f32.mrf.mxu0
  %v5983 = vadd.f32 %v5870, %v5982
  %v5984 = vpop.f32.mrf.mxu0
  %v5985 = vadd.f32 %v5872, %v5984
  %v5986 = vpop.f32.mrf.mxu0
  %v5987 = vadd.f32 %v5874, %v5986
  %v5988 = vpop.f32.mrf.mxu0
  %v5989 = vadd.f32 %v5876, %v5988
  %5990 = vmatprep.mubr.bf16.mxu0 %v3490
  %5991 = vmatmul.mubr.bf16.gmra.mxu0 %v3489
  %v5992 = vpop.f32.mrf.mxu0
  %v5993 = vadd.f32 %v5880, %v5992
  %v5994 = vpop.f32.mrf.mxu0
  %v5995 = vadd.f32 %v5882, %v5994
  %v5996 = vpop.f32.mrf.mxu0
  %v5997 = vadd.f32 %v5884, %v5996
  %v5998 = vpop.f32.mrf.mxu0
  %v5999 = vadd.f32 %v5886, %v5998
  %6000 = vmatprep.mubr.bf16.mxu0 %v3502
  %6001 = vmatmul.mubr.bf16.gmra.mxu0 %v3501
  %v6002 = vpop.f32.mrf.mxu0
  %v6003 = vadd.f32 %v5890, %v6002
  %v6004 = vpop.f32.mrf.mxu0
  %v6005 = vadd.f32 %v5892, %v6004
  %v6006 = vpop.f32.mrf.mxu0
  %v6007 = vadd.f32 %v5894, %v6006
  %v6008 = vpop.f32.mrf.mxu0
  %v6009 = vadd.f32 %v5896, %v6008
  %6010 = vmatprep.mubr.bf16.mxu0 %v3514
  %6011 = vmatmul.mubr.bf16.gmra.mxu0 %v3513
  %v6012 = vpop.f32.mrf.mxu0
  %v6013 = vadd.f32 %v5900, %v6012
  %v6014 = vpop.f32.mrf.mxu0
  %v6015 = vadd.f32 %v5902, %v6014
  %v6016 = vpop.f32.mrf.mxu0
  %v6017 = vadd.f32 %v5904, %v6016
  %v6018 = vpop.f32.mrf.mxu0
  %v6019 = vadd.f32 %v5906, %v6018
  %6020 = vmatprep.mubr.bf16.mxu0 %v3526
  %6021 = vmatmul.mubr.bf16.gmra.mxu0 %v3525
  %v6022 = vpop.f32.mrf.mxu0
  %v6023 = vadd.f32 %v5910, %v6022
  %v6024 = vpop.f32.mrf.mxu0
  %v6025 = vadd.f32 %v5912, %v6024
  %v6026 = vpop.f32.mrf.mxu0
  %v6027 = vadd.f32 %v5914, %v6026
  %v6028 = vpop.f32.mrf.mxu0
  %v6029 = vadd.f32 %v5916, %v6028
  %6030 = vdwg.mxu0
  %6031 = vmatprep.subr.bf16.mxu0 %v5152
  %6032 = vmatpush1.bf16.msra.mxu0 %v5151
  %6033 = vmatprep.subr.bf16.mxu0 %v5149
  %6034 = vmatpush1.bf16.msra.mxu0 %v5148
  %6035 = vmatprep.subr.bf16.mxu0 %v5146
  %6036 = vmatpush1.bf16.msra.mxu0 %v5145
  %6037 = vmatprep.subr.bf16.mxu0 %v5143
  %6038 = vmatpush1.bf16.msra.mxu0 %v5142
  %6039 = vmatprep.subr.bf16.mxu0 %v5140
  %6040 = vmatpush1.bf16.msra.mxu0 %v5139
  %6041 = vmatprep.subr.bf16.mxu0 %v5137
  %6042 = vmatpush1.bf16.msra.mxu0 %v5136
  %6043 = vmatprep.subr.bf16.mxu0 %v5134
  %6044 = vmatpush1.bf16.msra.mxu0 %v5133
  %6045 = vmatprep.subr.bf16.mxu0 %v5131
  %6046 = vmatpush1.bf16.msra.mxu0 %v5130
  %6047 = vmatprep.subr.bf16.mxu0 %v5176
  %6048 = vmatpush2.bf16.msra.mxu0 %v5175
  %6049 = vmatprep.subr.bf16.mxu0 %v5173
  %6050 = vmatpush2.bf16.msra.mxu0 %v5172
  %6051 = vmatprep.subr.bf16.mxu0 %v5170
  %6052 = vmatpush2.bf16.msra.mxu0 %v5169
  %6053 = vmatprep.subr.bf16.mxu0 %v5167
  %6054 = vmatpush2.bf16.msra.mxu0 %v5166
  %6055 = vmatprep.subr.bf16.mxu0 %v5164
  %6056 = vmatpush2.bf16.msra.mxu0 %v5163
  %6057 = vmatprep.subr.bf16.mxu0 %v5161
  %6058 = vmatpush2.bf16.msra.mxu0 %v5160
  %6059 = vmatprep.subr.bf16.mxu0 %v5158
  %6060 = vmatpush2.bf16.msra.mxu0 %v5157
  %6061 = vmatprep.subr.bf16.mxu0 %v5155
  %6062 = vmatpush2.bf16.msra.mxu0 %v5154
  %6063 = vmatprep.mubr.bf16.mxu0 %v3444
  %6064 = vmatmul.mubr.bf16.gmra.mxu0 %v3443
  %v6065 = vpop.f32.mrf.mxu0
  %v6066 = vadd.f32 %v5953, %v6065
  %v6067 = vpop.f32.mrf.mxu0
  %v6068 = vadd.f32 %v5955, %v6067
  %v6069 = vpop.f32.mrf.mxu0
  %v6070 = vadd.f32 %v5957, %v6069
  %v6071 = vpop.f32.mrf.mxu0
  %v6072 = vadd.f32 %v5959, %v6071
  %6073 = vmatprep.mubr.bf16.mxu0 %v3456
  %6074 = vmatmul.mubr.bf16.gmra.mxu0 %v3455
  %v6075 = vpop.f32.mrf.mxu0
  %v6076 = vadd.f32 %v5963, %v6075
  %v6077 = vpop.f32.mrf.mxu0
  %v6078 = vadd.f32 %v5965, %v6077
  %v6079 = vpop.f32.mrf.mxu0
  %v6080 = vadd.f32 %v5967, %v6079
  %v6081 = vpop.f32.mrf.mxu0
  %v6082 = vadd.f32 %v5969, %v6081
  %6083 = vmatprep.mubr.bf16.mxu0 %v3468
  %6084 = vmatmul.mubr.bf16.gmra.mxu0 %v3467
  %v6085 = vpop.f32.mrf.mxu0
  %v6086 = vadd.f32 %v5973, %v6085
  %v6087 = vpop.f32.mrf.mxu0
  %v6088 = vadd.f32 %v5975, %v6087
  %v6089 = vpop.f32.mrf.mxu0
  %v6090 = vadd.f32 %v5977, %v6089
  %v6091 = vpop.f32.mrf.mxu0
  %v6092 = vadd.f32 %v5979, %v6091
  %6093 = vmatprep.mubr.bf16.mxu0 %v3480
  %6094 = vmatmul.mubr.bf16.gmra.mxu0 %v3479
  %v6095 = vpop.f32.mrf.mxu0
  %v6096 = vadd.f32 %v5983, %v6095
  %v6097 = vpop.f32.mrf.mxu0
  %v6098 = vadd.f32 %v5985, %v6097
  %v6099 = vpop.f32.mrf.mxu0
  %v6100 = vadd.f32 %v5987, %v6099
  %v6101 = vpop.f32.mrf.mxu0
  %v6102 = vadd.f32 %v5989, %v6101
  %6103 = vmatprep.mubr.bf16.mxu0 %v3492
  %6104 = vmatmul.mubr.bf16.gmra.mxu0 %v3491
  %v6105 = vpop.f32.mrf.mxu0
  %v6106 = vadd.f32 %v5993, %v6105
  %v6107 = vpop.f32.mrf.mxu0
  %v6108 = vadd.f32 %v5995, %v6107
  %v6109 = vpop.f32.mrf.mxu0
  %v6110 = vadd.f32 %v5997, %v6109
  %v6111 = vpop.f32.mrf.mxu0
  %v6112 = vadd.f32 %v5999, %v6111
  %6113 = vmatprep.mubr.bf16.mxu0 %v3504
  %6114 = vmatmul.mubr.bf16.gmra.mxu0 %v3503
  %v6115 = vpop.f32.mrf.mxu0
  %v6116 = vadd.f32 %v6003, %v6115
  %v6117 = vpop.f32.mrf.mxu0
  %v6118 = vadd.f32 %v6005, %v6117
  %v6119 = vpop.f32.mrf.mxu0
  %v6120 = vadd.f32 %v6007, %v6119
  %v6121 = vpop.f32.mrf.mxu0
  %v6122 = vadd.f32 %v6009, %v6121
  %6123 = vmatprep.mubr.bf16.mxu0 %v3516
  %6124 = vmatmul.mubr.bf16.gmra.mxu0 %v3515
  %v6125 = vpop.f32.mrf.mxu0
  %v6126 = vadd.f32 %v6013, %v6125
  %v6127 = vpop.f32.mrf.mxu0
  %v6128 = vadd.f32 %v6015, %v6127
  %v6129 = vpop.f32.mrf.mxu0
  %v6130 = vadd.f32 %v6017, %v6129
  %v6131 = vpop.f32.mrf.mxu0
  %v6132 = vadd.f32 %v6019, %v6131
  %6133 = vmatprep.mubr.bf16.mxu0 %v3528
  %6134 = vmatmul.mubr.bf16.gmra.mxu0 %v3527
  %v6135 = vpop.f32.mrf.mxu0
  %v6136 = vadd.f32 %v6023, %v6135
  %v6137 = vpop.f32.mrf.mxu0
  %v6138 = vadd.f32 %v6025, %v6137
  %v6139 = vpop.f32.mrf.mxu0
  %v6140 = vadd.f32 %v6027, %v6139
  %v6141 = vpop.f32.mrf.mxu0
  %v6142 = vadd.f32 %v6029, %v6141
  %6143 = vdwg.mxu0
  %6144 = vmatprep.subr.bf16.mxu0 0
  %6145 = vmatpush1.bf16.msra.mxu0 %v4913
  %6146 = vmatprep.subr.bf16.mxu0 0
  %6147 = vmatpush1.bf16.msra.mxu0 %v4910
  %6148 = vmatprep.subr.bf16.mxu0 0
  %6149 = vmatpush1.bf16.msra.mxu0 %v4907
  %6150 = vmatprep.subr.bf16.mxu0 0
  %6151 = vmatpush1.bf16.msra.mxu0 %v4904
  %6152 = vmatprep.subr.bf16.mxu0 0
  %6153 = vmatpush1.bf16.msra.mxu0 %v4901
  %6154 = vmatprep.subr.bf16.mxu0 0
  %6155 = vmatpush1.bf16.msra.mxu0 %v4898
  %6156 = vmatprep.subr.bf16.mxu0 0
  %6157 = vmatpush1.bf16.msra.mxu0 %v4895
  %6158 = vmatprep.subr.bf16.mxu0 0
  %6159 = vmatpush1.bf16.msra.mxu0 %v4892
  %6160 = vmatprep.subr.bf16.mxu0 0
  %6161 = vmatpush2.bf16.msra.mxu0 %v4937
  %6162 = vmatprep.subr.bf16.mxu0 0
  %6163 = vmatpush2.bf16.msra.mxu0 %v4934
  %6164 = vmatprep.subr.bf16.mxu0 0
  %6165 = vmatpush2.bf16.msra.mxu0 %v4931
  %6166 = vmatprep.subr.bf16.mxu0 0
  %6167 = vmatpush2.bf16.msra.mxu0 %v4928
  %6168 = vmatprep.subr.bf16.mxu0 0
  %6169 = vmatpush2.bf16.msra.mxu0 %v4925
  %6170 = vmatprep.subr.bf16.mxu0 0
  %6171 = vmatpush2.bf16.msra.mxu0 %v4922
  %6172 = vmatprep.subr.bf16.mxu0 0
  %6173 = vmatpush2.bf16.msra.mxu0 %v4919
  %6174 = vmatprep.subr.bf16.mxu0 0
  %6175 = vmatpush2.bf16.msra.mxu0 %v4916
  %6176 = vmatprep.mubr.bf16.mxu0 %v3434
  %6177 = vmatmul.mubr.bf16.gmra.mxu0 %v3433
  %v6178 = vpop.f32.mrf.mxu0
  %v6179 = vadd.f32 %v3926, %v6178
  %v6180 = vpop.f32.mrf.mxu0
  %v6181 = vpop.f32.mrf.mxu0
  %v6182 = vadd.f32 %v3926, %v6181
  %v6183 = vpop.f32.mrf.mxu0
  %6184 = vmatprep.mubr.bf16.mxu0 %v3446
  %6185 = vmatmul.mubr.bf16.gmra.mxu0 %v3445
  %v6186 = vpop.f32.mrf.mxu0
  %v6187 = vadd.f32 %v3926, %v6186
  %v6188 = vpop.f32.mrf.mxu0
  %v6189 = vpop.f32.mrf.mxu0
  %v6190 = vadd.f32 %v3926, %v6189
  %v6191 = vpop.f32.mrf.mxu0
  %6192 = vmatprep.mubr.bf16.mxu0 %v3458
  %6193 = vmatmul.mubr.bf16.gmra.mxu0 %v3457
  %v6194 = vpop.f32.mrf.mxu0
  %v6195 = vadd.f32 %v3926, %v6194
  %v6196 = vpop.f32.mrf.mxu0
  %v6197 = vpop.f32.mrf.mxu0
  %v6198 = vadd.f32 %v3926, %v6197
  %v6199 = vpop.f32.mrf.mxu0
  %6200 = vmatprep.mubr.bf16.mxu0 %v3470
  %6201 = vmatmul.mubr.bf16.gmra.mxu0 %v3469
  %v6202 = vpop.f32.mrf.mxu0
  %v6203 = vadd.f32 %v3926, %v6202
  %v6204 = vpop.f32.mrf.mxu0
  %v6205 = vpop.f32.mrf.mxu0
  %v6206 = vadd.f32 %v3926, %v6205
  %v6207 = vpop.f32.mrf.mxu0
  %6208 = vmatprep.mubr.bf16.mxu0 %v3482
  %6209 = vmatmul.mubr.bf16.gmra.mxu0 %v3481
  %v6210 = vpop.f32.mrf.mxu0
  %v6211 = vadd.f32 %v3926, %v6210
  %v6212 = vpop.f32.mrf.mxu0
  %v6213 = vpop.f32.mrf.mxu0
  %v6214 = vadd.f32 %v3926, %v6213
  %v6215 = vpop.f32.mrf.mxu0
  %6216 = vmatprep.mubr.bf16.mxu0 %v3494
  %6217 = vmatmul.mubr.bf16.gmra.mxu0 %v3493
  %v6218 = vpop.f32.mrf.mxu0
  %v6219 = vadd.f32 %v3926, %v6218
  %v6220 = vpop.f32.mrf.mxu0
  %v6221 = vpop.f32.mrf.mxu0
  %v6222 = vadd.f32 %v3926, %v6221
  %v6223 = vpop.f32.mrf.mxu0
  %6224 = vmatprep.mubr.bf16.mxu0 %v3506
  %6225 = vmatmul.mubr.bf16.gmra.mxu0 %v3505
  %v6226 = vpop.f32.mrf.mxu0
  %v6227 = vadd.f32 %v3926, %v6226
  %v6228 = vpop.f32.mrf.mxu0
  %v6229 = vpop.f32.mrf.mxu0
  %v6230 = vadd.f32 %v3926, %v6229
  %v6231 = vpop.f32.mrf.mxu0
  %6232 = vmatprep.mubr.bf16.mxu0 %v3518
  %6233 = vmatmul.mubr.bf16.gmra.mxu0 %v3517
  %v6234 = vpop.f32.mrf.mxu0
  %v6235 = vadd.f32 %v3926, %v6234
  %v6236 = vpop.f32.mrf.mxu0
  %v6237 = vpop.f32.mrf.mxu0
  %v6238 = vadd.f32 %v3926, %v6237
  %v6239 = vpop.f32.mrf.mxu0
  %6240 = vdwg.mxu0
  %6241 = vmatprep.subr.bf16.mxu0 0
  %6242 = vmatpush1.bf16.msra.mxu0 %v4961
  %6243 = vmatprep.subr.bf16.mxu0 0
  %6244 = vmatpush1.bf16.msra.mxu0 %v4958
  %6245 = vmatprep.subr.bf16.mxu0 0
  %6246 = vmatpush1.bf16.msra.mxu0 %v4955
  %6247 = vmatprep.subr.bf16.mxu0 0
  %6248 = vmatpush1.bf16.msra.mxu0 %v4952
  %6249 = vmatprep.subr.bf16.mxu0 0
  %6250 = vmatpush1.bf16.msra.mxu0 %v4949
  %6251 = vmatprep.subr.bf16.mxu0 0
  %6252 = vmatpush1.bf16.msra.mxu0 %v4946
  %6253 = vmatprep.subr.bf16.mxu0 0
  %6254 = vmatpush1.bf16.msra.mxu0 %v4943
  %6255 = vmatprep.subr.bf16.mxu0 0
  %6256 = vmatpush1.bf16.msra.mxu0 %v4940
  %6257 = vmatprep.subr.bf16.mxu0 0
  %6258 = vmatpush2.bf16.msra.mxu0 %v4985
  %6259 = vmatprep.subr.bf16.mxu0 0
  %6260 = vmatpush2.bf16.msra.mxu0 %v4982
  %6261 = vmatprep.subr.bf16.mxu0 0
  %6262 = vmatpush2.bf16.msra.mxu0 %v4979
  %6263 = vmatprep.subr.bf16.mxu0 0
  %6264 = vmatpush2.bf16.msra.mxu0 %v4976
  %6265 = vmatprep.subr.bf16.mxu0 0
  %6266 = vmatpush2.bf16.msra.mxu0 %v4973
  %6267 = vmatprep.subr.bf16.mxu0 0
  %6268 = vmatpush2.bf16.msra.mxu0 %v4970
  %6269 = vmatprep.subr.bf16.mxu0 0
  %6270 = vmatpush2.bf16.msra.mxu0 %v4967
  %6271 = vmatprep.subr.bf16.mxu0 0
  %6272 = vmatpush2.bf16.msra.mxu0 %v4964
  %6273 = vmatprep.mubr.bf16.mxu0 %v3436
  %6274 = vmatmul.mubr.bf16.gmra.mxu0 %v3435
  %v6275 = vpop.f32.mrf.mxu0
  %v6276 = vadd.f32 %v6179, %v6275
  %v6277 = vpop.f32.mrf.mxu0
  %v6278 = vpop.f32.mrf.mxu0
  %v6279 = vadd.f32 %v6182, %v6278
  %v6280 = vpop.f32.mrf.mxu0
  %6281 = vmatprep.mubr.bf16.mxu0 %v3448
  %6282 = vmatmul.mubr.bf16.gmra.mxu0 %v3447
  %v6283 = vpop.f32.mrf.mxu0
  %v6284 = vadd.f32 %v6187, %v6283
  %v6285 = vpop.f32.mrf.mxu0
  %v6286 = vpop.f32.mrf.mxu0
  %v6287 = vadd.f32 %v6190, %v6286
  %v6288 = vpop.f32.mrf.mxu0
  %6289 = vmatprep.mubr.bf16.mxu0 %v3460
  %6290 = vmatmul.mubr.bf16.gmra.mxu0 %v3459
  %v6291 = vpop.f32.mrf.mxu0
  %v6292 = vadd.f32 %v6195, %v6291
  %v6293 = vpop.f32.mrf.mxu0
  %v6294 = vpop.f32.mrf.mxu0
  %v6295 = vadd.f32 %v6198, %v6294
  %v6296 = vpop.f32.mrf.mxu0
  %6297 = vmatprep.mubr.bf16.mxu0 %v3472
  %6298 = vmatmul.mubr.bf16.gmra.mxu0 %v3471
  %v6299 = vpop.f32.mrf.mxu0
  %v6300 = vadd.f32 %v6203, %v6299
  %v6301 = vpop.f32.mrf.mxu0
  %v6302 = vpop.f32.mrf.mxu0
  %v6303 = vadd.f32 %v6206, %v6302
  %v6304 = vpop.f32.mrf.mxu0
  %6305 = vmatprep.mubr.bf16.mxu0 %v3484
  %6306 = vmatmul.mubr.bf16.gmra.mxu0 %v3483
  %v6307 = vpop.f32.mrf.mxu0
  %v6308 = vadd.f32 %v6211, %v6307
  %v6309 = vpop.f32.mrf.mxu0
  %v6310 = vpop.f32.mrf.mxu0
  %v6311 = vadd.f32 %v6214, %v6310
  %v6312 = vpop.f32.mrf.mxu0
  %6313 = vmatprep.mubr.bf16.mxu0 %v3496
  %6314 = vmatmul.mubr.bf16.gmra.mxu0 %v3495
  %v6315 = vpop.f32.mrf.mxu0
  %v6316 = vadd.f32 %v6219, %v6315
  %v6317 = vpop.f32.mrf.mxu0
  %v6318 = vpop.f32.mrf.mxu0
  %v6319 = vadd.f32 %v6222, %v6318
  %v6320 = vpop.f32.mrf.mxu0
  %6321 = vmatprep.mubr.bf16.mxu0 %v3508
  %6322 = vmatmul.mubr.bf16.gmra.mxu0 %v3507
  %v6323 = vpop.f32.mrf.mxu0
  %v6324 = vadd.f32 %v6227, %v6323
  %v6325 = vpop.f32.mrf.mxu0
  %v6326 = vpop.f32.mrf.mxu0
  %v6327 = vadd.f32 %v6230, %v6326
  %v6328 = vpop.f32.mrf.mxu0
  %6329 = vmatprep.mubr.bf16.mxu0 %v3520
  %6330 = vmatmul.mubr.bf16.gmra.mxu0 %v3519
  %v6331 = vpop.f32.mrf.mxu0
  %v6332 = vadd.f32 %v6235, %v6331
  %v6333 = vpop.f32.mrf.mxu0
  %v6334 = vpop.f32.mrf.mxu0
  %v6335 = vadd.f32 %v6238, %v6334
  %v6336 = vpop.f32.mrf.mxu0
  %6337 = vdwg.mxu0
  %6338 = vmatprep.subr.bf16.mxu0 0
  %6339 = vmatpush1.bf16.msra.mxu0 %v5009
  %6340 = vmatprep.subr.bf16.mxu0 0
  %6341 = vmatpush1.bf16.msra.mxu0 %v5006
  %6342 = vmatprep.subr.bf16.mxu0 0
  %6343 = vmatpush1.bf16.msra.mxu0 %v5003
  %6344 = vmatprep.subr.bf16.mxu0 0
  %6345 = vmatpush1.bf16.msra.mxu0 %v5000
  %6346 = vmatprep.subr.bf16.mxu0 0
  %6347 = vmatpush1.bf16.msra.mxu0 %v4997
  %6348 = vmatprep.subr.bf16.mxu0 0
  %6349 = vmatpush1.bf16.msra.mxu0 %v4994
  %6350 = vmatprep.subr.bf16.mxu0 0
  %6351 = vmatpush1.bf16.msra.mxu0 %v4991
  %6352 = vmatprep.subr.bf16.mxu0 0
  %6353 = vmatpush1.bf16.msra.mxu0 %v4988
  %6354 = vmatprep.subr.bf16.mxu0 0
  %6355 = vmatpush2.bf16.msra.mxu0 %v5033
  %6356 = vmatprep.subr.bf16.mxu0 0
  %6357 = vmatpush2.bf16.msra.mxu0 %v5030
  %6358 = vmatprep.subr.bf16.mxu0 0
  %6359 = vmatpush2.bf16.msra.mxu0 %v5027
  %6360 = vmatprep.subr.bf16.mxu0 0
  %6361 = vmatpush2.bf16.msra.mxu0 %v5024
  %6362 = vmatprep.subr.bf16.mxu0 0
  %6363 = vmatpush2.bf16.msra.mxu0 %v5021
  %6364 = vmatprep.subr.bf16.mxu0 0
  %6365 = vmatpush2.bf16.msra.mxu0 %v5018
  %6366 = vmatprep.subr.bf16.mxu0 0
  %6367 = vmatpush2.bf16.msra.mxu0 %v5015
  %6368 = vmatprep.subr.bf16.mxu0 0
  %6369 = vmatpush2.bf16.msra.mxu0 %v5012
  %6370 = vmatprep.mubr.bf16.mxu0 %v3438
  %6371 = vmatmul.mubr.bf16.gmra.mxu0 %v3437
  %v6372 = vpop.f32.mrf.mxu0
  %v6373 = vadd.f32 %v6276, %v6372
  %v6374 = vpop.f32.mrf.mxu0
  %v6375 = vpop.f32.mrf.mxu0
  %v6376 = vadd.f32 %v6279, %v6375
  %v6377 = vpop.f32.mrf.mxu0
  %6378 = vmatprep.mubr.bf16.mxu0 %v3450
  %6379 = vmatmul.mubr.bf16.gmra.mxu0 %v3449
  %v6380 = vpop.f32.mrf.mxu0
  %v6381 = vadd.f32 %v6284, %v6380
  %v6382 = vpop.f32.mrf.mxu0
  %v6383 = vpop.f32.mrf.mxu0
  %v6384 = vadd.f32 %v6287, %v6383
  %v6385 = vpop.f32.mrf.mxu0
  %6386 = vmatprep.mubr.bf16.mxu0 %v3462
  %6387 = vmatmul.mubr.bf16.gmra.mxu0 %v3461
  %v6388 = vpop.f32.mrf.mxu0
  %v6389 = vadd.f32 %v6292, %v6388
  %v6390 = vpop.f32.mrf.mxu0
  %v6391 = vpop.f32.mrf.mxu0
  %v6392 = vadd.f32 %v6295, %v6391
  %v6393 = vpop.f32.mrf.mxu0
  %6394 = vmatprep.mubr.bf16.mxu0 %v3474
  %6395 = vmatmul.mubr.bf16.gmra.mxu0 %v3473
  %v6396 = vpop.f32.mrf.mxu0
  %v6397 = vadd.f32 %v6300, %v6396
  %v6398 = vpop.f32.mrf.mxu0
  %v6399 = vpop.f32.mrf.mxu0
  %v6400 = vadd.f32 %v6303, %v6399
  %v6401 = vpop.f32.mrf.mxu0
  %6402 = vmatprep.mubr.bf16.mxu0 %v3486
  %6403 = vmatmul.mubr.bf16.gmra.mxu0 %v3485
  %v6404 = vpop.f32.mrf.mxu0
  %v6405 = vadd.f32 %v6308, %v6404
  %v6406 = vpop.f32.mrf.mxu0
  %v6407 = vpop.f32.mrf.mxu0
  %v6408 = vadd.f32 %v6311, %v6407
  %v6409 = vpop.f32.mrf.mxu0
  %6410 = vmatprep.mubr.bf16.mxu0 %v3498
  %6411 = vmatmul.mubr.bf16.gmra.mxu0 %v3497
  %v6412 = vpop.f32.mrf.mxu0
  %v6413 = vadd.f32 %v6316, %v6412
  %v6414 = vpop.f32.mrf.mxu0
  %v6415 = vpop.f32.mrf.mxu0
  %v6416 = vadd.f32 %v6319, %v6415
  %v6417 = vpop.f32.mrf.mxu0
  %6418 = vmatprep.mubr.bf16.mxu0 %v3510
  %6419 = vmatmul.mubr.bf16.gmra.mxu0 %v3509
  %v6420 = vpop.f32.mrf.mxu0
  %v6421 = vadd.f32 %v6324, %v6420
  %v6422 = vpop.f32.mrf.mxu0
  %v6423 = vpop.f32.mrf.mxu0
  %v6424 = vadd.f32 %v6327, %v6423
  %v6425 = vpop.f32.mrf.mxu0
  %6426 = vmatprep.mubr.bf16.mxu0 %v3522
  %6427 = vmatmul.mubr.bf16.gmra.mxu0 %v3521
  %v6428 = vpop.f32.mrf.mxu0
  %v6429 = vadd.f32 %v6332, %v6428
  %v6430 = vpop.f32.mrf.mxu0
  %v6431 = vpop.f32.mrf.mxu0
  %v6432 = vadd.f32 %v6335, %v6431
  %v6433 = vpop.f32.mrf.mxu0
  %6434 = vdwg.mxu0
  %6435 = vmatprep.subr.bf16.mxu0 0
  %6436 = vmatpush1.bf16.msra.mxu0 %v5057
  %6437 = vmatprep.subr.bf16.mxu0 0
  %6438 = vmatpush1.bf16.msra.mxu0 %v5054
  %6439 = vmatprep.subr.bf16.mxu0 0
  %6440 = vmatpush1.bf16.msra.mxu0 %v5051
  %6441 = vmatprep.subr.bf16.mxu0 0
  %6442 = vmatpush1.bf16.msra.mxu0 %v5048
  %6443 = vmatprep.subr.bf16.mxu0 0
  %6444 = vmatpush1.bf16.msra.mxu0 %v5045
  %6445 = vmatprep.subr.bf16.mxu0 0
  %6446 = vmatpush1.bf16.msra.mxu0 %v5042
  %6447 = vmatprep.subr.bf16.mxu0 0
  %6448 = vmatpush1.bf16.msra.mxu0 %v5039
  %6449 = vmatprep.subr.bf16.mxu0 0
  %6450 = vmatpush1.bf16.msra.mxu0 %v5036
  %6451 = vmatprep.subr.bf16.mxu0 0
  %6452 = vmatpush2.bf16.msra.mxu0 %v5081
  %6453 = vmatprep.subr.bf16.mxu0 0
  %6454 = vmatpush2.bf16.msra.mxu0 %v5078
  %6455 = vmatprep.subr.bf16.mxu0 0
  %6456 = vmatpush2.bf16.msra.mxu0 %v5075
  %6457 = vmatprep.subr.bf16.mxu0 0
  %6458 = vmatpush2.bf16.msra.mxu0 %v5072
  %6459 = vmatprep.subr.bf16.mxu0 0
  %6460 = vmatpush2.bf16.msra.mxu0 %v5069
  %6461 = vmatprep.subr.bf16.mxu0 0
  %6462 = vmatpush2.bf16.msra.mxu0 %v5066
  %6463 = vmatprep.subr.bf16.mxu0 0
  %6464 = vmatpush2.bf16.msra.mxu0 %v5063
  %6465 = vmatprep.subr.bf16.mxu0 0
  %6466 = vmatpush2.bf16.msra.mxu0 %v5060
  %6467 = vmatprep.mubr.bf16.mxu0 %v3440
  %6468 = vmatmul.mubr.bf16.gmra.mxu0 %v3439
  %v6469 = vpop.f32.mrf.mxu0
  %v6470 = vadd.f32 %v6373, %v6469
  %v6471 = vpop.f32.mrf.mxu0
  %v6472 = vpop.f32.mrf.mxu0
  %v6473 = vadd.f32 %v6376, %v6472
  %v6474 = vpop.f32.mrf.mxu0
  %6475 = vmatprep.mubr.bf16.mxu0 %v3452
  %6476 = vmatmul.mubr.bf16.gmra.mxu0 %v3451
  %v6477 = vpop.f32.mrf.mxu0
  %v6478 = vadd.f32 %v6381, %v6477
  %v6479 = vpop.f32.mrf.mxu0
  %v6480 = vpop.f32.mrf.mxu0
  %v6481 = vadd.f32 %v6384, %v6480
  %v6482 = vpop.f32.mrf.mxu0
  %6483 = vmatprep.mubr.bf16.mxu0 %v3464
  %6484 = vmatmul.mubr.bf16.gmra.mxu0 %v3463
  %v6485 = vpop.f32.mrf.mxu0
  %v6486 = vadd.f32 %v6389, %v6485
  %v6487 = vpop.f32.mrf.mxu0
  %v6488 = vpop.f32.mrf.mxu0
  %v6489 = vadd.f32 %v6392, %v6488
  %v6490 = vpop.f32.mrf.mxu0
  %6491 = vmatprep.mubr.bf16.mxu0 %v3476
  %6492 = vmatmul.mubr.bf16.gmra.mxu0 %v3475
  %v6493 = vpop.f32.mrf.mxu0
  %v6494 = vadd.f32 %v6397, %v6493
  %v6495 = vpop.f32.mrf.mxu0
  %v6496 = vpop.f32.mrf.mxu0
  %v6497 = vadd.f32 %v6400, %v6496
  %v6498 = vpop.f32.mrf.mxu0
  %6499 = vmatprep.mubr.bf16.mxu0 %v3488
  %6500 = vmatmul.mubr.bf16.gmra.mxu0 %v3487
  %v6501 = vpop.f32.mrf.mxu0
  %v6502 = vadd.f32 %v6405, %v6501
  %v6503 = vpop.f32.mrf.mxu0
  %v6504 = vpop.f32.mrf.mxu0
  %v6505 = vadd.f32 %v6408, %v6504
  %v6506 = vpop.f32.mrf.mxu0
  %6507 = vmatprep.mubr.bf16.mxu0 %v3500
  %6508 = vmatmul.mubr.bf16.gmra.mxu0 %v3499
  %v6509 = vpop.f32.mrf.mxu0
  %v6510 = vadd.f32 %v6413, %v6509
  %v6511 = vpop.f32.mrf.mxu0
  %v6512 = vpop.f32.mrf.mxu0
  %v6513 = vadd.f32 %v6416, %v6512
  %v6514 = vpop.f32.mrf.mxu0
  %6515 = vmatprep.mubr.bf16.mxu0 %v3512
  %6516 = vmatmul.mubr.bf16.gmra.mxu0 %v3511
  %v6517 = vpop.f32.mrf.mxu0
  %v6518 = vadd.f32 %v6421, %v6517
  %v6519 = vpop.f32.mrf.mxu0
  %v6520 = vpop.f32.mrf.mxu0
  %v6521 = vadd.f32 %v6424, %v6520
  %v6522 = vpop.f32.mrf.mxu0
  %6523 = vmatprep.mubr.bf16.mxu0 %v3524
  %6524 = vmatmul.mubr.bf16.gmra.mxu0 %v3523
  %v6525 = vpop.f32.mrf.mxu0
  %v6526 = vadd.f32 %v6429, %v6525
  %v6527 = vpop.f32.mrf.mxu0
  %v6528 = vpop.f32.mrf.mxu0
  %v6529 = vadd.f32 %v6432, %v6528
  %v6530 = vpop.f32.mrf.mxu0
  %6531 = vdwg.mxu0
  %6532 = vmatprep.subr.bf16.mxu0 0
  %6533 = vmatpush1.bf16.msra.mxu0 %v5105
  %6534 = vmatprep.subr.bf16.mxu0 0
  %6535 = vmatpush1.bf16.msra.mxu0 %v5102
  %6536 = vmatprep.subr.bf16.mxu0 0
  %6537 = vmatpush1.bf16.msra.mxu0 %v5099
  %6538 = vmatprep.subr.bf16.mxu0 0
  %6539 = vmatpush1.bf16.msra.mxu0 %v5096
  %6540 = vmatprep.subr.bf16.mxu0 0
  %6541 = vmatpush1.bf16.msra.mxu0 %v5093
  %6542 = vmatprep.subr.bf16.mxu0 0
  %6543 = vmatpush1.bf16.msra.mxu0 %v5090
  %6544 = vmatprep.subr.bf16.mxu0 0
  %6545 = vmatpush1.bf16.msra.mxu0 %v5087
  %6546 = vmatprep.subr.bf16.mxu0 0
  %6547 = vmatpush1.bf16.msra.mxu0 %v5084
  %6548 = vmatprep.subr.bf16.mxu0 0
  %6549 = vmatpush2.bf16.msra.mxu0 %v5129
  %6550 = vmatprep.subr.bf16.mxu0 0
  %6551 = vmatpush2.bf16.msra.mxu0 %v5126
  %6552 = vmatprep.subr.bf16.mxu0 0
  %6553 = vmatpush2.bf16.msra.mxu0 %v5123
  %6554 = vmatprep.subr.bf16.mxu0 0
  %6555 = vmatpush2.bf16.msra.mxu0 %v5120
  %6556 = vmatprep.subr.bf16.mxu0 0
  %6557 = vmatpush2.bf16.msra.mxu0 %v5117
  %6558 = vmatprep.subr.bf16.mxu0 0
  %6559 = vmatpush2.bf16.msra.mxu0 %v5114
  %6560 = vmatprep.subr.bf16.mxu0 0
  %6561 = vmatpush2.bf16.msra.mxu0 %v5111
  %6562 = vmatprep.subr.bf16.mxu0 0
  %6563 = vmatpush2.bf16.msra.mxu0 %v5108
  %6564 = vmatprep.mubr.bf16.mxu0 %v3442
  %6565 = vmatmul.mubr.bf16.gmra.mxu0 %v3441
  %v6566 = vpop.f32.mrf.mxu0
  %v6567 = vadd.f32 %v6470, %v6566
  %v6568 = vpop.f32.mrf.mxu0
  %v6569 = vpop.f32.mrf.mxu0
  %v6570 = vadd.f32 %v6473, %v6569
  %v6571 = vpop.f32.mrf.mxu0
  %6572 = vmatprep.mubr.bf16.mxu0 %v3454
  %6573 = vmatmul.mubr.bf16.gmra.mxu0 %v3453
  %v6574 = vpop.f32.mrf.mxu0
  %v6575 = vadd.f32 %v6478, %v6574
  %v6576 = vpop.f32.mrf.mxu0
  %v6577 = vpop.f32.mrf.mxu0
  %v6578 = vadd.f32 %v6481, %v6577
  %v6579 = vpop.f32.mrf.mxu0
  %6580 = vmatprep.mubr.bf16.mxu0 %v3466
  %6581 = vmatmul.mubr.bf16.gmra.mxu0 %v3465
  %v6582 = vpop.f32.mrf.mxu0
  %v6583 = vadd.f32 %v6486, %v6582
  %v6584 = vpop.f32.mrf.mxu0
  %v6585 = vpop.f32.mrf.mxu0
  %v6586 = vadd.f32 %v6489, %v6585
  %v6587 = vpop.f32.mrf.mxu0
  %6588 = vmatprep.mubr.bf16.mxu0 %v3478
  %6589 = vmatmul.mubr.bf16.gmra.mxu0 %v3477
  %v6590 = vpop.f32.mrf.mxu0
  %v6591 = vadd.f32 %v6494, %v6590
  %v6592 = vpop.f32.mrf.mxu0
  %v6593 = vpop.f32.mrf.mxu0
  %v6594 = vadd.f32 %v6497, %v6593
  %v6595 = vpop.f32.mrf.mxu0
  %6596 = vmatprep.mubr.bf16.mxu0 %v3490
  %6597 = vmatmul.mubr.bf16.gmra.mxu0 %v3489
  %v6598 = vpop.f32.mrf.mxu0
  %v6599 = vadd.f32 %v6502, %v6598
  %v6600 = vpop.f32.mrf.mxu0
  %v6601 = vpop.f32.mrf.mxu0
  %v6602 = vadd.f32 %v6505, %v6601
  %v6603 = vpop.f32.mrf.mxu0
  %6604 = vmatprep.mubr.bf16.mxu0 %v3502
  %6605 = vmatmul.mubr.bf16.gmra.mxu0 %v3501
  %v6606 = vpop.f32.mrf.mxu0
  %v6607 = vadd.f32 %v6510, %v6606
  %v6608 = vpop.f32.mrf.mxu0
  %v6609 = vpop.f32.mrf.mxu0
  %v6610 = vadd.f32 %v6513, %v6609
  %v6611 = vpop.f32.mrf.mxu0
  %6612 = vmatprep.mubr.bf16.mxu0 %v3514
  %6613 = vmatmul.mubr.bf16.gmra.mxu0 %v3513
  %v6614 = vpop.f32.mrf.mxu0
  %v6615 = vadd.f32 %v6518, %v6614
  %v6616 = vpop.f32.mrf.mxu0
  %v6617 = vpop.f32.mrf.mxu0
  %v6618 = vadd.f32 %v6521, %v6617
  %v6619 = vpop.f32.mrf.mxu0
  %6620 = vmatprep.mubr.bf16.mxu0 %v3526
  %6621 = vmatmul.mubr.bf16.gmra.mxu0 %v3525
  %v6622 = vpop.f32.mrf.mxu0
  %v6623 = vadd.f32 %v6526, %v6622
  %v6624 = vpop.f32.mrf.mxu0
  %v6625 = vpop.f32.mrf.mxu0
  %v6626 = vadd.f32 %v6529, %v6625
  %v6627 = vpop.f32.mrf.mxu0
  %6628 = vdwg.mxu0
  %6629 = vmatprep.subr.bf16.mxu0 0
  %6630 = vmatpush1.bf16.msra.mxu0 %v5153
  %6631 = vmatprep.subr.bf16.mxu0 0
  %6632 = vmatpush1.bf16.msra.mxu0 %v5150
  %6633 = vmatprep.subr.bf16.mxu0 0
  %6634 = vmatpush1.bf16.msra.mxu0 %v5147
  %6635 = vmatprep.subr.bf16.mxu0 0
  %6636 = vmatpush1.bf16.msra.mxu0 %v5144
  %6637 = vmatprep.subr.bf16.mxu0 0
  %6638 = vmatpush1.bf16.msra.mxu0 %v5141
  %6639 = vmatprep.subr.bf16.mxu0 0
  %6640 = vmatpush1.bf16.msra.mxu0 %v5138
  %6641 = vmatprep.subr.bf16.mxu0 0
  %6642 = vmatpush1.bf16.msra.mxu0 %v5135
  %6643 = vmatprep.subr.bf16.mxu0 0
  %6644 = vmatpush1.bf16.msra.mxu0 %v5132
  %6645 = vmatprep.subr.bf16.mxu0 0
  %6646 = vmatpush2.bf16.msra.mxu0 %v5177
  %6647 = vmatprep.subr.bf16.mxu0 0
  %6648 = vmatpush2.bf16.msra.mxu0 %v5174
  %6649 = vmatprep.subr.bf16.mxu0 0
  %6650 = vmatpush2.bf16.msra.mxu0 %v5171
  %6651 = vmatprep.subr.bf16.mxu0 0
  %6652 = vmatpush2.bf16.msra.mxu0 %v5168
  %6653 = vmatprep.subr.bf16.mxu0 0
  %6654 = vmatpush2.bf16.msra.mxu0 %v5165
  %6655 = vmatprep.subr.bf16.mxu0 0
  %6656 = vmatpush2.bf16.msra.mxu0 %v5162
  %6657 = vmatprep.subr.bf16.mxu0 0
  %6658 = vmatpush2.bf16.msra.mxu0 %v5159
  %6659 = vmatprep.subr.bf16.mxu0 0
  %6660 = vmatpush2.bf16.msra.mxu0 %v5156
  %6661 = vmatprep.mubr.bf16.mxu0 %v3444
  %6662 = vmatmul.mubr.bf16.gmra.mxu0 %v3443
  %v6663 = vpop.f32.mrf.mxu0
  %v6664 = vadd.f32 %v6567, %v6663
  %v6665 = vpop.f32.mrf.mxu0
  %v6666 = vpop.f32.mrf.mxu0
  %v6667 = vadd.f32 %v6570, %v6666
  %v6668 = vpop.f32.mrf.mxu0
  %6669 = vmatprep.mubr.bf16.mxu0 %v3456
  %6670 = vmatmul.mubr.bf16.gmra.mxu0 %v3455
  %v6671 = vpop.f32.mrf.mxu0
  %v6672 = vadd.f32 %v6575, %v6671
  %v6673 = vpop.f32.mrf.mxu0
  %v6674 = vpop.f32.mrf.mxu0
  %v6675 = vadd.f32 %v6578, %v6674
  %v6676 = vpop.f32.mrf.mxu0
  %6677 = vmatprep.mubr.bf16.mxu0 %v3468
  %6678 = vmatmul.mubr.bf16.gmra.mxu0 %v3467
  %v6679 = vpop.f32.mrf.mxu0
  %v6680 = vadd.f32 %v6583, %v6679
  %v6681 = vpop.f32.mrf.mxu0
  %v6682 = vpop.f32.mrf.mxu0
  %v6683 = vadd.f32 %v6586, %v6682
  %v6684 = vpop.f32.mrf.mxu0
  %6685 = vmatprep.mubr.bf16.mxu0 %v3480
  %6686 = vmatmul.mubr.bf16.gmra.mxu0 %v3479
  %v6687 = vpop.f32.mrf.mxu0
  %v6688 = vadd.f32 %v6591, %v6687
  %v6689 = vpop.f32.mrf.mxu0
  %v6690 = vpop.f32.mrf.mxu0
  %v6691 = vadd.f32 %v6594, %v6690
  %v6692 = vpop.f32.mrf.mxu0
  %6693 = vmatprep.mubr.bf16.mxu0 %v3492
  %6694 = vmatmul.mubr.bf16.gmra.mxu0 %v3491
  %v6695 = vpop.f32.mrf.mxu0
  %v6696 = vadd.f32 %v6599, %v6695
  %v6697 = vpop.f32.mrf.mxu0
  %v6698 = vpop.f32.mrf.mxu0
  %v6699 = vadd.f32 %v6602, %v6698
  %v6700 = vpop.f32.mrf.mxu0
  %6701 = vmatprep.mubr.bf16.mxu0 %v3504
  %6702 = vmatmul.mubr.bf16.gmra.mxu0 %v3503
  %v6703 = vpop.f32.mrf.mxu0
  %v6704 = vadd.f32 %v6607, %v6703
  %v6705 = vpop.f32.mrf.mxu0
  %v6706 = vpop.f32.mrf.mxu0
  %v6707 = vadd.f32 %v6610, %v6706
  %v6708 = vpop.f32.mrf.mxu0
  %6709 = vmatprep.mubr.bf16.mxu0 %v3516
  %6710 = vmatmul.mubr.bf16.gmra.mxu0 %v3515
  %v6711 = vpop.f32.mrf.mxu0
  %v6712 = vadd.f32 %v6615, %v6711
  %v6713 = vpop.f32.mrf.mxu0
  %v6714 = vpop.f32.mrf.mxu0
  %v6715 = vadd.f32 %v6618, %v6714
  %v6716 = vpop.f32.mrf.mxu0
  %6717 = vmatprep.mubr.bf16.mxu0 %v3528
  %6718 = vmatmul.mubr.bf16.gmra.mxu0 %v3527
  %v6719 = vpop.f32.mrf.mxu0
  %v6720 = vadd.f32 %v6623, %v6719
  %v6721 = vpop.f32.mrf.mxu0
  %v6722 = vpop.f32.mrf.mxu0
  %v6723 = vadd.f32 %v6626, %v6722
  %v6724 = vpop.f32.mrf.mxu0
  %6725 = vdwg.mxu0
  %6726 = vst [vmem:[%s5] sm:$0xff] %v6066
  %6727 = vst [vmem:[%s5 + $0x8] sm:$0xff] %v6068
  %6728 = vst [vmem:[%s5 + $0x10] sm:$0xff] %v6664
  %6729 = vst [vmem:[%s5 + $0x18] sm:$0xff] %v6070
  %6730 = vst [vmem:[%s5 + $0x20] sm:$0xff] %v6072
  %6731 = vst [vmem:[%s5 + $0x28] sm:$0xff] %v6667
  %6732 = vst [vmem:[%s5 + $0x30] sm:$0xff] %v6076
  %6733 = vst [vmem:[%s5 + $0x38] sm:$0xff] %v6078
  %6734 = vst [vmem:[%s5 + $0x40] sm:$0xff] %v6672
  %6735 = vst [vmem:[%s5 + $0x48] sm:$0xff] %v6080
  %6736 = vst [vmem:[%s5 + $0x50] sm:$0xff] %v6082
  %6737 = vst [vmem:[%s5 + $0x58] sm:$0xff] %v6675
  %6738 = vst [vmem:[%s5 + $0x60] sm:$0xff] %v6086
  %6739 = vst [vmem:[%s5 + $0x68] sm:$0xff] %v6088
  %6740 = vst [vmem:[%s5 + $0x70] sm:$0xff] %v6680
  %6741 = vst [vmem:[%s5 + $0x78] sm:$0xff] %v6090
  %6742 = vst [vmem:[%s5 + $0x80] sm:$0xff] %v6092
  %6743 = vst [vmem:[%s5 + $0x88] sm:$0xff] %v6683
  %6744 = vst [vmem:[%s5 + $0x90] sm:$0xff] %v6096
  %6745 = vst [vmem:[%s5 + $0x98] sm:$0xff] %v6098
  %6746 = vst [vmem:[%s5 + $0xa0] sm:$0xff] %v6688
  %6747 = vst [vmem:[%s5 + $0xa8] sm:$0xff] %v6100
  %6748 = vst [vmem:[%s5 + $0xb0] sm:$0xff] %v6102
  %6749 = vst [vmem:[%s5 + $0xb8] sm:$0xff] %v6691
  %6750 = vst [vmem:[%s5 + $0xc0] sm:$0xff] %v6106
  %6751 = vst [vmem:[%s5 + $0xc8] sm:$0xff] %v6108
  %6752 = vst [vmem:[%s5 + $0xd0] sm:$0xff] %v6696
  %6753 = vst [vmem:[%s5 + $0xd8] sm:$0xff] %v6110
  %6754 = vst [vmem:[%s5 + $0xe0] sm:$0xff] %v6112
  %6755 = vst [vmem:[%s5 + $0xe8] sm:$0xff] %v6699
  %6756 = vst [vmem:[%s5 + $0xf0] sm:$0xff] %v6116
  %6757 = vst [vmem:[%s5 + $0xf8] sm:$0xff] %v6118
  %6758 = vst [vmem:[%s5 + $0x100] sm:$0xff] %v6704
  %6759 = vst [vmem:[%s5 + $0x108] sm:$0xff] %v6120
  %6760 = vst [vmem:[%s5 + $0x110] sm:$0xff] %v6122
  %6761 = vst [vmem:[%s5 + $0x118] sm:$0xff] %v6707
  %6762 = vst [vmem:[%s5 + $0x120] sm:$0xff] %v6126
  %6763 = vst [vmem:[%s5 + $0x128] sm:$0xff] %v6128
  %6764 = vst [vmem:[%s5 + $0x130] sm:$0xff] %v6712
  %6765 = vst [vmem:[%s5 + $0x138] sm:$0xff] %v6130
  %6766 = vst [vmem:[%s5 + $0x140] sm:$0xff] %v6132
  %6767 = vst [vmem:[%s5 + $0x148] sm:$0xff] %v6715
  %6768 = vst [vmem:[%s5 + $0x150] sm:$0xff] %v6136
  %6769 = vst [vmem:[%s5 + $0x158] sm:$0xff] %v6138
  %6770 = vst [vmem:[%s5 + $0x160] sm:$0xff] %v6720
  %6771 = vst [vmem:[%s5 + $0x168] sm:$0xff] %v6140
  %6772 = vst [vmem:[%s5 + $0x170] sm:$0xff] %v6142
  %6773 = vst [vmem:[%s5 + $0x178] sm:$0xff] %v6723
  // Predicated region
  $region22: #{feed_forward.1} parent=0 // pred_check
    _
  $region23: #{feed_forward.1} parent=0 // pred_check_branch
    %6775 = sbr.rel (0) target = $region25
  $region24: #{feed_forward.1} parent=0 // pred_region
    _
  $region25: #{feed_forward.1} parent=0 // pred_fallthru
    _
  // Predicated region
  $region26: #{feed_forward.1} parent=0 // pred_check
    _
  $region27: #{feed_forward.1} parent=0 // pred_check_branch
    %6777 = sbr.rel (0) target = $region29
  $region28: #{feed_forward.1} parent=0 // pred_region
    _
  $region29: #{feed_forward.1} parent=0 // pred_fallthru
    _

</llo_original>
